<compile_context>
chip_gen: v7x
topology: tpu7x:2x2x1
jax: 0.10.0
libtpu: 0.0.40
codegen_flags: <defaults>
</compile_context>

<pallas_src>
import math

import jax
import jax.numpy as jnp
from jax.experimental import pallas as pl
from jax.experimental.pallas import tpu as pltpu

HIDDEN = 32        # hidden_size
INPUT = 1          # input_size
NUM_LAYERS = 2     # num_layers (hard-wired as two explicit cells below)
OUTPUT = 1         # output_size
SEQ = 9            # sequence_length
B_PAD = 8          # f32 sublane minimum -> pad batch to full (8, 128) vreg tiles

# Packed weight-slab row offsets (all segments 8-row aligned so no slice straddles an
# (8,128) tile boundary).
_ROW_WIH0 = 0                      # (1, 4H)
_ROW_B0 = 1                        # (1, 4H)
_ROW_B1 = 2                        # (1, 4H)
_ROW_WHH0 = 8                      # (H, 4H)
_ROW_WIH1 = 8 + HIDDEN             # (H, 4H)
_ROW_WHH1 = 8 + 2 * HIDDEN         # (H, 4H)
_WPACK_ROWS = 8 + 3 * HIDDEN       # 104

# Packed fc-slab row offsets.
_ROW_WFC1 = 0                      # (H, H//2)
_ROW_BFC1 = HIDDEN                 # (1, H//2)
_ROW_WFC2 = HIDDEN + 1             # (1, H//2) pre-transposed
_ROW_BFC2 = HIDDEN + 2             # scalar at column 0
_FC_ROWS = HIDDEN + 8              # 40


def lstm_forward_kernel(x_ref,        # (T, B_PAD, 1)  time-major input
                        wpack_ref,    # (104, 4H)      packed LSTM weights/biases
                        fc_ref,       # (40, H//2)     packed fc1/fc2 params
                        out_ref):     # (B_PAD, OUTPUT)
    T, Bp, _ = x_ref.shape
    H = HIDDEN

    # Static, tile-aligned slices out of the packed slab (one DMA brought it all in).
    w_ih0 = wpack_ref[_ROW_WIH0:_ROW_WIH0 + 1, :]          # (1, 4H)
    b0 = wpack_ref[_ROW_B0:_ROW_B0 + 1, :]                 # (1, 4H)
    b1 = wpack_ref[_ROW_B1:_ROW_B1 + 1, :]                 # (1, 4H)
    w_hh0 = wpack_ref[_ROW_WHH0:_ROW_WHH0 + H, :]          # (H, 4H)
    w_ih1 = wpack_ref[_ROW_WIH1:_ROW_WIH1 + H, :]          # (H, 4H)
    w_hh1 = wpack_ref[_ROW_WHH1:_ROW_WHH1 + H, :]          # (H, 4H)

    # Layer-0 input projection hoisted out of the recurrence (I == 1): one broadcast
    # FMA for all T steps.  At T=9 this is ~9 vregs; for much larger T stage it in a
    # pltpu.VMEM scratch instead to bound vreg live ranges.
    gx_all = x_ref[...] * w_ih0 + b0                       # (T, Bp, 4H)

    # Gate layout (repacked at init): [i, f, o, g].  One sigmoid covers the whole
    # 4H-lane gate vreg; tanh(g) = 2*sigmoid(2*g_pre) - 1 is recovered with static
    # lane masks (loop-invariant, built once).
    lane = jax.lax.broadcasted_iota(jnp.int32, (1, 4 * H), 1)
    g_lane = (lane >= 3 * H).astype(jnp.float32)           # 1.0 on the g lanes
    pre_scale = 1.0 + g_lane                               # 2 on g lanes, 1 elsewhere
    post_add = -g_lane                                     # -1 on g lanes, 0 elsewhere

    def cell_update(gates, c):
        s = jax.nn.sigmoid(gates * pre_scale)              # single EUP push (i|f|o|g)
        act = s * pre_scale + post_add                     # [sig(i)|sig(f)|sig(o)|tanh(g)]
        i = act[:, 0 * H:1 * H]
        f = act[:, 1 * H:2 * H]
        o = act[:, 2 * H:3 * H]
        g = act[:, 3 * H:4 * H]
        c_new = f * c + i * g
        h_new = o * jnp.tanh(c_new)                        # second (and last) EUP push
        return h_new, c_new

    # h0 / c0 initialized to zeros (matches torch.zeros in forward()).
    h0 = jnp.zeros((Bp, H), jnp.float32)
    c0 = jnp.zeros((Bp, H), jnp.float32)
    h1 = jnp.zeros((Bp, H), jnp.float32)
    c1 = jnp.zeros((Bp, H), jnp.float32)

    # SEQ is a small static constant -> fully unrolled (full LLO visibility).
    for t in range(T):
        # h1's recurrent matmul depends only on h1_{t-1}; keeping it un-fused from the
        # h0_t matmul lets the MXU pass overlap layer-0's EUP/VPU cell update.
        gates1_h = jnp.dot(h1, w_hh1, preferred_element_type=jnp.float32)
        # Layer 0: only the hidden-state matmul sits on the recurrent path.
        gates0 = gx_all[t] + jnp.dot(h0, w_hh0, preferred_element_type=jnp.float32)
        h0, c0 = cell_update(gates0, c0)
        # Layer 1: input projection of the fresh h0_t plus the pre-issued h1 term.
        gates1 = gates1_h + jnp.dot(h0, w_ih1, preferred_element_type=jnp.float32) + b1
        h1, c1 = cell_update(gates1, c1)

    # out[:, -1, :] of the top layer is just h1 after the last step.
    w_fc1 = fc_ref[_ROW_WFC1:_ROW_WFC1 + H, :]             # (H, H//2)
    b_fc1 = fc_ref[_ROW_BFC1:_ROW_BFC1 + 1, :]             # (1, H//2)
    w_fc2 = fc_ref[_ROW_WFC2:_ROW_WFC2 + 1, :]             # (1, H//2)
    b_fc2 = fc_ref[_ROW_BFC2:_ROW_BFC2 + 1, 0:1]           # (1, 1)

    y = jnp.dot(h1, w_fc1, preferred_element_type=jnp.float32) + b_fc1
    # fc2: out_features == 1 -> lane reduction against the pre-transposed (1, H//2) row.
    y = jnp.sum(y * w_fc2, axis=-1, keepdims=True) + b_fc2
    out_ref[...] = y.astype(out_ref.dtype)


def lstm_forward(x, kp):
    """x: (B, T, I) float32, batch_first (PyTorch convention)."""
    B, T, I = x.shape
    assert B <= B_PAD, "this demo kernel handles batch <= 8; grow B_PAD (sublane dim) for more"
    x_tm = jnp.transpose(x, (1, 0, 2)).astype(jnp.float32)        # time-major (T, B, I)
    x_tm = jnp.pad(x_tm, ((0, 0), (0, B_PAD - B), (0, 0)))        # (T, B_PAD, I)
    vmem = pl.BlockSpec(memory_space=pltpu.MemorySpace.VMEM)
    out_pad = pl.pallas_call(
        lstm_forward_kernel,
        out_shape=jax.ShapeDtypeStruct((B_PAD, OUTPUT), jnp.float32),
        in_specs=[vmem, vmem, vmem],                              # 3 input DMAs total
        out_specs=vmem,
    )(x_tm, kp['wpack'], kp['fcpack'])
    return out_pad[:B]                                            # drop padded rows


def init_torch_params(key):
    """Deterministic synthetic params in PyTorch layout / gate order [i, f, g, o]."""
    Hh = HIDDEN // 2
    k_lstm = 1.0 / math.sqrt(HIDDEN)
    k_fc1 = 1.0 / math.sqrt(HIDDEN)
    k_fc2 = 1.0 / math.sqrt(Hh)
    keys = jax.random.split(key, 12)

    def u(kk, shape, k):
        return jax.random.uniform(kk, shape, jnp.float32, -k, k)

    return dict(
        w_ih0=u(keys[0], (4 * HIDDEN, INPUT), k_lstm),
        w_hh0=u(keys[1], (4 * HIDDEN, HIDDEN), k_lstm),
        b_ih0=u(keys[2], (4 * HIDDEN,), k_lstm),
        b_hh0=u(keys[3], (4 * HIDDEN,), k_lstm),
        w_ih1=u(keys[4], (4 * HIDDEN, HIDDEN), k_lstm),
        w_hh1=u(keys[5], (4 * HIDDEN, HIDDEN), k_lstm),
        b_ih1=u(keys[6], (4 * HIDDEN,), k_lstm),
        b_hh1=u(keys[7], (4 * HIDDEN,), k_lstm),
        w_fc1=u(keys[8], (Hh, HIDDEN), k_fc1),
        b_fc1=u(keys[9], (Hh,), k_fc1),
        w_fc2=u(keys[10], (OUTPUT, Hh), k_fc2),
        b_fc2=u(keys[11], (OUTPUT,), k_fc2),
    )


def pack_kernel_params(tp):
    """PyTorch-layout params -> two packed kernel buffers.

    * gate reorder [i,f,g,o] -> [i,f,o,g] and transpose to (in, out)
    * fused biases (b_ih + b_hh)
    * one (104, 4H) lane-wide slab with 8-row-aligned segments
    * one (40, H//2) fc slab (w_fc1^T | b_fc1 | w_fc2 row | b_fc2 scalar)
    """
    H = HIDDEN
    Hh = H // 2

    def reorder(w):  # stacked-gate axis: [i, f, g, o] -> [i, f, o, g]
        return jnp.concatenate([w[:H], w[H:2 * H], w[3 * H:], w[2 * H:3 * H]], axis=0)

    w_ih0 = reorder(tp['w_ih0']).T                                 # (1, 4H)
    w_hh0 = reorder(tp['w_hh0']).T                                 # (H, 4H)
    w_ih1 = reorder(tp['w_ih1']).T                                 # (H, 4H)
    w_hh1 = reorder(tp['w_hh1']).T                                 # (H, 4H)
    b0 = reorder(tp['b_ih0'] + tp['b_hh0'])                        # (4H,)
    b1 = reorder(tp['b_ih1'] + tp['b_hh1'])                        # (4H,)

    head = jnp.zeros((8, 4 * H), jnp.float32)
    head = head.at[_ROW_WIH0].set(w_ih0[0]).at[_ROW_B0].set(b0).at[_ROW_B1].set(b1)
    wpack = jnp.concatenate([head, w_hh0, w_ih1, w_hh1], axis=0)   # (104, 4H)
    assert wpack.shape == (_WPACK_ROWS, 4 * H)

    fc = jnp.zeros((_FC_ROWS, Hh), jnp.float32)
    fc = fc.at[_ROW_WFC1:_ROW_WFC1 + H, :].set(tp['w_fc1'].T)
    fc = fc.at[_ROW_BFC1, :].set(tp['b_fc1'])
    fc = fc.at[_ROW_WFC2, :].set(tp['w_fc2'][0])
    fc = fc.at[_ROW_BFC2, 0].set(tp['b_fc2'][0])

    return dict(wpack=wpack, fcpack=fc)


def lstm_forward_ref(x, tp):
    """Pure-JAX reference with exact PyTorch LSTM semantics (gate order [i,f,g,o])."""
    B, T, _ = x.shape
    H = HIDDEN

    def cell(x_t, h, c, w_ih, w_hh, b_ih, b_hh):
        gates = x_t @ w_ih.T + h @ w_hh.T + b_ih + b_hh
        i = jax.nn.sigmoid(gates[:, :H])
        f = jax.nn.sigmoid(gates[:, H:2 * H])
        g = jnp.tanh(gates[:, 2 * H:3 * H])
        o = jax.nn.sigmoid(gates[:, 3 * H:])
        c = f * c + i * g
        h = o * jnp.tanh(c)
        return h, c

    h0 = c0 = h1 = c1 = jnp.zeros((B, H), jnp.float32)
    for t in range(T):
        h0, c0 = cell(x[:, t, :], h0, c0, tp['w_ih0'], tp['w_hh0'], tp['b_ih0'], tp['b_hh0'])
        h1, c1 = cell(h0, h1, c1, tp['w_ih1'], tp['w_hh1'], tp['b_ih1'], tp['b_hh1'])
    y = h1 @ tp['w_fc1'].T + tp['b_fc1']
    y = y @ tp['w_fc2'].T + tp['b_fc2']
    return y


if __name__ == "__main__":
    key = jax.random.PRNGKey(0)
    kparam, kx = jax.random.split(key)
    torch_params = init_torch_params(kparam)
    kernel_params = pack_kernel_params(torch_params)

    B = 2
    x = jax.random.normal(kx, (B, SEQ, INPUT), jnp.float32)

    out = jax.block_until_ready(lstm_forward(x, kernel_params))
    ref = lstm_forward_ref(x, torch_params)

    assert out.shape == (B, OUTPUT), out.shape
    if not jnp.allclose(out, ref, atol=1e-5, rtol=1e-5):
        raise AssertionError("Pallas kernel does not match pure-JAX reference")
    print("KERNEL_OK")
</pallas_src>

<mosaic_0001>
module attributes {stable_mosaic.version = 11 : i64} {
  func.func @lstm_forward_kernel(%arg0: memref<9x8x1xf32, #tpu.memory_space<vmem>>, %arg1: memref<104x128xf32, #tpu.memory_space<vmem>>, %arg2: memref<40x16xf32, #tpu.memory_space<vmem>>, %arg3: memref<8x1xf32, #tpu.memory_space<vmem>>) attributes {dimension_semantics = [], scalar_prefetch = 0 : i64, scratch_operands = 0 : i64, tpu.core_type = #tpu.core_type<tc>} {
    %c0 = arith.constant 0 : index
    %c0_0 = arith.constant 0 : index
    %0 = vector.load %arg1[%c0, %c0_0] : memref<104x128xf32, #tpu.memory_space<vmem>>, vector<1x128xf32>
    %c1 = arith.constant 1 : index
    %c0_1 = arith.constant 0 : index
    %1 = vector.load %arg1[%c1, %c0_1] : memref<104x128xf32, #tpu.memory_space<vmem>>, vector<1x128xf32>
    %c2 = arith.constant 2 : index
    %c0_2 = arith.constant 0 : index
    %2 = vector.load %arg1[%c2, %c0_2] : memref<104x128xf32, #tpu.memory_space<vmem>>, vector<1x128xf32>
    %c8 = arith.constant 8 : index
    %c0_3 = arith.constant 0 : index
    %3 = vector.load %arg1[%c8, %c0_3] : memref<104x128xf32, #tpu.memory_space<vmem>>, vector<32x128xf32>
    %c40 = arith.constant 40 : index
    %c0_4 = arith.constant 0 : index
    %4 = vector.load %arg1[%c40, %c0_4] : memref<104x128xf32, #tpu.memory_space<vmem>>, vector<32x128xf32>
    %c72 = arith.constant 72 : index
    %c0_5 = arith.constant 0 : index
    %5 = vector.load %arg1[%c72, %c0_5] : memref<104x128xf32, #tpu.memory_space<vmem>>, vector<32x128xf32>
    %c0_6 = arith.constant 0 : index
    %c0_7 = arith.constant 0 : index
    %c0_8 = arith.constant 0 : index
    %6 = vector.load %arg0[%c0_6, %c0_7, %c0_8] : memref<9x8x1xf32, #tpu.memory_space<vmem>>, vector<9x8x1xf32>
    %7 = vector.shape_cast %0 : vector<1x128xf32> to vector<1x1x128xf32>
    %8 = vector.broadcast %6 : vector<9x8x1xf32> to vector<9x8x128xf32>
    %9 = vector.broadcast %7 : vector<1x1x128xf32> to vector<9x8x128xf32>
    %10 = arith.mulf %8, %9 : vector<9x8x128xf32>
    %11 = vector.shape_cast %1 : vector<1x128xf32> to vector<1x1x128xf32>
    %12 = vector.broadcast %11 : vector<1x1x128xf32> to vector<9x8x128xf32>
    %13 = arith.addf %10, %12 : vector<9x8x128xf32>
    %14 = tpu.iota {dimensions = array<i32: 1>} : vector<1x128xi32>
    %c96_i32 = arith.constant 96 : i32
    %15 = vector.broadcast %c96_i32 : i32 to vector<1x128xi32>
    %16 = arith.cmpi sge, %14, %15 : vector<1x128xi32>
    %17 = arith.extui %16 : vector<1x128xi1> to vector<1x128xi32>
    %18 = arith.sitofp %17 : vector<1x128xi32> to vector<1x128xf32>
    %cst = arith.constant 1.000000e+00 : f32
    %19 = vector.broadcast %cst : f32 to vector<1x128xf32>
    %20 = arith.addf %19, %18 : vector<1x128xf32>
    %cst_9 = arith.constant 0.000000e+00 : f32
    %21 = vector.broadcast %cst_9 : f32 to vector<1x128xf32>
    %22 = arith.subf %21, %18 : vector<1x128xf32>
    %cst_10 = arith.constant 0.000000e+00 : f32
    %23 = vector.broadcast %cst_10 : f32 to vector<8x32xf32>
    %cst_11 = arith.constant 0.000000e+00 : f32
    %24 = vector.broadcast %cst_11 : f32 to vector<8x32xf32>
    %cst_12 = arith.constant 0.000000e+00 : f32
    %25 = vector.broadcast %cst_12 : f32 to vector<8x32xf32>
    %cst_13 = arith.constant 0.000000e+00 : f32
    %26 = vector.broadcast %cst_13 : f32 to vector<8x32xf32>
    %cst_14 = arith.constant dense<0.000000e+00> : vector<8x128xf32>
    %27 = tpu.matmul %25, %5, %cst_14 {dimension_numbers = #tpu.dot_dimension_numbers<[1], [0], [0], [1], [0, 0, 1, 1], [], []>} : vector<8x32xf32>, vector<32x128xf32>, vector<8x128xf32> -> vector<8x128xf32>
    %28 = vector.extract_strided_slice %13 {offsets = [0, 0, 0], sizes = [1, 8, 128], strides = [1, 1, 1]} : vector<9x8x128xf32> to vector<1x8x128xf32>
    %29 = vector.shape_cast %28 : vector<1x8x128xf32> to vector<8x128xf32>
    %cst_15 = arith.constant dense<0.000000e+00> : vector<8x128xf32>
    %30 = tpu.matmul %23, %3, %cst_15 {dimension_numbers = #tpu.dot_dimension_numbers<[1], [0], [0], [1], [0, 0, 1, 1], [], []>} : vector<8x32xf32>, vector<32x128xf32>, vector<8x128xf32> -> vector<8x128xf32>
    %31 = arith.addf %29, %30 : vector<8x128xf32>
    %32 = vector.broadcast %20 : vector<1x128xf32> to vector<8x128xf32>
    %33 = arith.mulf %31, %32 : vector<8x128xf32>
    %34 = arith.negf %33 : vector<8x128xf32>
    %35 = math.exp %34 : vector<8x128xf32>
    %cst_16 = arith.constant 1.000000e+00 : f32
    %36 = vector.broadcast %cst_16 : f32 to vector<8x128xf32>
    %37 = arith.addf %36, %35 : vector<8x128xf32>
    %38 = arith.divf %36, %37 : vector<8x128xf32>
    %39 = vector.broadcast %20 : vector<1x128xf32> to vector<8x128xf32>
    %40 = arith.mulf %38, %39 : vector<8x128xf32>
    %41 = vector.broadcast %22 : vector<1x128xf32> to vector<8x128xf32>
    %42 = arith.addf %40, %41 : vector<8x128xf32>
    %43 = vector.extract_strided_slice %42 {offsets = [0, 0], sizes = [8, 32], strides = [1, 1]} : vector<8x128xf32> to vector<8x32xf32>
    %44 = vector.extract_strided_slice %42 {offsets = [0, 32], sizes = [8, 32], strides = [1, 1]} : vector<8x128xf32> to vector<8x32xf32>
    %45 = vector.extract_strided_slice %42 {offsets = [0, 64], sizes = [8, 32], strides = [1, 1]} : vector<8x128xf32> to vector<8x32xf32>
    %46 = vector.extract_strided_slice %42 {offsets = [0, 96], sizes = [8, 32], strides = [1, 1]} : vector<8x128xf32> to vector<8x32xf32>
    %47 = arith.mulf %44, %24 : vector<8x32xf32>
    %48 = arith.mulf %43, %46 : vector<8x32xf32>
    %49 = arith.addf %47, %48 : vector<8x32xf32>
    %50 = math.tanh %49 : vector<8x32xf32>
    %51 = arith.mulf %45, %50 : vector<8x32xf32>
    %cst_17 = arith.constant dense<0.000000e+00> : vector<8x128xf32>
    %52 = tpu.matmul %51, %4, %cst_17 {dimension_numbers = #tpu.dot_dimension_numbers<[1], [0], [0], [1], [0, 0, 1, 1], [], []>} : vector<8x32xf32>, vector<32x128xf32>, vector<8x128xf32> -> vector<8x128xf32>
    %53 = arith.addf %27, %52 : vector<8x128xf32>
    %54 = vector.broadcast %2 : vector<1x128xf32> to vector<8x128xf32>
    %55 = arith.addf %53, %54 : vector<8x128xf32>
    %56 = vector.broadcast %20 : vector<1x128xf32> to vector<8x128xf32>
    %57 = arith.mulf %55, %56 : vector<8x128xf32>
    %58 = arith.negf %57 : vector<8x128xf32>
    %59 = math.exp %58 : vector<8x128xf32>
    %cst_18 = arith.constant 1.000000e+00 : f32
    %60 = vector.broadcast %cst_18 : f32 to vector<8x128xf32>
    %61 = arith.addf %60, %59 : vector<8x128xf32>
    %62 = arith.divf %60, %61 : vector<8x128xf32>
    %63 = vector.broadcast %20 : vector<1x128xf32> to vector<8x128xf32>
    %64 = arith.mulf %62, %63 : vector<8x128xf32>
    %65 = vector.broadcast %22 : vector<1x128xf32> to vector<8x128xf32>
    %66 = arith.addf %64, %65 : vector<8x128xf32>
    %67 = vector.extract_strided_slice %66 {offsets = [0, 0], sizes = [8, 32], strides = [1, 1]} : vector<8x128xf32> to vector<8x32xf32>
    %68 = vector.extract_strided_slice %66 {offsets = [0, 32], sizes = [8, 32], strides = [1, 1]} : vector<8x128xf32> to vector<8x32xf32>
    %69 = vector.extract_strided_slice %66 {offsets = [0, 64], sizes = [8, 32], strides = [1, 1]} : vector<8x128xf32> to vector<8x32xf32>
    %70 = vector.extract_strided_slice %66 {offsets = [0, 96], sizes = [8, 32], strides = [1, 1]} : vector<8x128xf32> to vector<8x32xf32>
    %71 = arith.mulf %68, %26 : vector<8x32xf32>
    %72 = arith.mulf %67, %70 : vector<8x32xf32>
    %73 = arith.addf %71, %72 : vector<8x32xf32>
    %74 = math.tanh %73 : vector<8x32xf32>
    %75 = arith.mulf %69, %74 : vector<8x32xf32>
    %cst_19 = arith.constant dense<0.000000e+00> : vector<8x128xf32>
    %76 = tpu.matmul %75, %5, %cst_19 {dimension_numbers = #tpu.dot_dimension_numbers<[1], [0], [0], [1], [0, 0, 1, 1], [], []>} : vector<8x32xf32>, vector<32x128xf32>, vector<8x128xf32> -> vector<8x128xf32>
    %77 = vector.extract_strided_slice %13 {offsets = [1, 0, 0], sizes = [1, 8, 128], strides = [1, 1, 1]} : vector<9x8x128xf32> to vector<1x8x128xf32>
    %78 = vector.shape_cast %77 : vector<1x8x128xf32> to vector<8x128xf32>
    %cst_20 = arith.constant dense<0.000000e+00> : vector<8x128xf32>
    %79 = tpu.matmul %51, %3, %cst_20 {dimension_numbers = #tpu.dot_dimension_numbers<[1], [0], [0], [1], [0, 0, 1, 1], [], []>} : vector<8x32xf32>, vector<32x128xf32>, vector<8x128xf32> -> vector<8x128xf32>
    %80 = arith.addf %78, %79 : vector<8x128xf32>
    %81 = vector.broadcast %20 : vector<1x128xf32> to vector<8x128xf32>
    %82 = arith.mulf %80, %81 : vector<8x128xf32>
    %83 = arith.negf %82 : vector<8x128xf32>
    %84 = math.exp %83 : vector<8x128xf32>
    %cst_21 = arith.constant 1.000000e+00 : f32
    %85 = vector.broadcast %cst_21 : f32 to vector<8x128xf32>
    %86 = arith.addf %85, %84 : vector<8x128xf32>
    %87 = arith.divf %85, %86 : vector<8x128xf32>
    %88 = vector.broadcast %20 : vector<1x128xf32> to vector<8x128xf32>
    %89 = arith.mulf %87, %88 : vector<8x128xf32>
    %90 = vector.broadcast %22 : vector<1x128xf32> to vector<8x128xf32>
    %91 = arith.addf %89, %90 : vector<8x128xf32>
    %92 = vector.extract_strided_slice %91 {offsets = [0, 0], sizes = [8, 32], strides = [1, 1]} : vector<8x128xf32> to vector<8x32xf32>
    %93 = vector.extract_strided_slice %91 {offsets = [0, 32], sizes = [8, 32], strides = [1, 1]} : vector<8x128xf32> to vector<8x32xf32>
    %94 = vector.extract_strided_slice %91 {offsets = [0, 64], sizes = [8, 32], strides = [1, 1]} : vector<8x128xf32> to vector<8x32xf32>
    %95 = vector.extract_strided_slice %91 {offsets = [0, 96], sizes = [8, 32], strides = [1, 1]} : vector<8x128xf32> to vector<8x32xf32>
    %96 = arith.mulf %93, %49 : vector<8x32xf32>
    %97 = arith.mulf %92, %95 : vector<8x32xf32>
    %98 = arith.addf %96, %97 : vector<8x32xf32>
    %99 = math.tanh %98 : vector<8x32xf32>
    %100 = arith.mulf %94, %99 : vector<8x32xf32>
    %cst_22 = arith.constant dense<0.000000e+00> : vector<8x128xf32>
    %101 = tpu.matmul %100, %4, %cst_22 {dimension_numbers = #tpu.dot_dimension_numbers<[1], [0], [0], [1], [0, 0, 1, 1], [], []>} : vector<8x32xf32>, vector<32x128xf32>, vector<8x128xf32> -> vector<8x128xf32>
    %102 = arith.addf %76, %101 : vector<8x128xf32>
    %103 = vector.broadcast %2 : vector<1x128xf32> to vector<8x128xf32>
    %104 = arith.addf %102, %103 : vector<8x128xf32>
    %105 = vector.broadcast %20 : vector<1x128xf32> to vector<8x128xf32>
    %106 = arith.mulf %104, %105 : vector<8x128xf32>
    %107 = arith.negf %106 : vector<8x128xf32>
    %108 = math.exp %107 : vector<8x128xf32>
    %cst_23 = arith.constant 1.000000e+00 : f32
    %109 = vector.broadcast %cst_23 : f32 to vector<8x128xf32>
    %110 = arith.addf %109, %108 : vector<8x128xf32>
    %111 = arith.divf %109, %110 : vector<8x128xf32>
    %112 = vector.broadcast %20 : vector<1x128xf32> to vector<8x128xf32>
    %113 = arith.mulf %111, %112 : vector<8x128xf32>
    %114 = vector.broadcast %22 : vector<1x128xf32> to vector<8x128xf32>
    %115 = arith.addf %113, %114 : vector<8x128xf32>
    %116 = vector.extract_strided_slice %115 {offsets = [0, 0], sizes = [8, 32], strides = [1, 1]} : vector<8x128xf32> to vector<8x32xf32>
    %117 = vector.extract_strided_slice %115 {offsets = [0, 32], sizes = [8, 32], strides = [1, 1]} : vector<8x128xf32> to vector<8x32xf32>
    %118 = vector.extract_strided_slice %115 {offsets = [0, 64], sizes = [8, 32], strides = [1, 1]} : vector<8x128xf32> to vector<8x32xf32>
    %119 = vector.extract_strided_slice %115 {offsets = [0, 96], sizes = [8, 32], strides = [1, 1]} : vector<8x128xf32> to vector<8x32xf32>
    %120 = arith.mulf %117, %73 : vector<8x32xf32>
    %121 = arith.mulf %116, %119 : vector<8x32xf32>
    %122 = arith.addf %120, %121 : vector<8x32xf32>
    %123 = math.tanh %122 : vector<8x32xf32>
    %124 = arith.mulf %118, %123 : vector<8x32xf32>
    %cst_24 = arith.constant dense<0.000000e+00> : vector<8x128xf32>
    %125 = tpu.matmul %124, %5, %cst_24 {dimension_numbers = #tpu.dot_dimension_numbers<[1], [0], [0], [1], [0, 0, 1, 1], [], []>} : vector<8x32xf32>, vector<32x128xf32>, vector<8x128xf32> -> vector<8x128xf32>
    %126 = vector.extract_strided_slice %13 {offsets = [2, 0, 0], sizes = [1, 8, 128], strides = [1, 1, 1]} : vector<9x8x128xf32> to vector<1x8x128xf32>
    %127 = vector.shape_cast %126 : vector<1x8x128xf32> to vector<8x128xf32>
    %cst_25 = arith.constant dense<0.000000e+00> : vector<8x128xf32>
    %128 = tpu.matmul %100, %3, %cst_25 {dimension_numbers = #tpu.dot_dimension_numbers<[1], [0], [0], [1], [0, 0, 1, 1], [], []>} : vector<8x32xf32>, vector<32x128xf32>, vector<8x128xf32> -> vector<8x128xf32>
    %129 = arith.addf %127, %128 : vector<8x128xf32>
    %130 = vector.broadcast %20 : vector<1x128xf32> to vector<8x128xf32>
    %131 = arith.mulf %129, %130 : vector<8x128xf32>
    %132 = arith.negf %131 : vector<8x128xf32>
    %133 = math.exp %132 : vector<8x128xf32>
    %cst_26 = arith.constant 1.000000e+00 : f32
    %134 = vector.broadcast %cst_26 : f32 to vector<8x128xf32>
    %135 = arith.addf %134, %133 : vector<8x128xf32>
    %136 = arith.divf %134, %135 : vector<8x128xf32>
    %137 = vector.broadcast %20 : vector<1x128xf32> to vector<8x128xf32>
    %138 = arith.mulf %136, %137 : vector<8x128xf32>
    %139 = vector.broadcast %22 : vector<1x128xf32> to vector<8x128xf32>
    %140 = arith.addf %138, %139 : vector<8x128xf32>
    %141 = vector.extract_strided_slice %140 {offsets = [0, 0], sizes = [8, 32], strides = [1, 1]} : vector<8x128xf32> to vector<8x32xf32>
    %142 = vector.extract_strided_slice %140 {offsets = [0, 32], sizes = [8, 32], strides = [1, 1]} : vector<8x128xf32> to vector<8x32xf32>
    %143 = vector.extract_strided_slice %140 {offsets = [0, 64], sizes = [8, 32], strides = [1, 1]} : vector<8x128xf32> to vector<8x32xf32>
    %144 = vector.extract_strided_slice %140 {offsets = [0, 96], sizes = [8, 32], strides = [1, 1]} : vector<8x128xf32> to vector<8x32xf32>
    %145 = arith.mulf %142, %98 : vector<8x32xf32>
    %146 = arith.mulf %141, %144 : vector<8x32xf32>
    %147 = arith.addf %145, %146 : vector<8x32xf32>
    %148 = math.tanh %147 : vector<8x32xf32>
    %149 = arith.mulf %143, %148 : vector<8x32xf32>
    %cst_27 = arith.constant dense<0.000000e+00> : vector<8x128xf32>
    %150 = tpu.matmul %149, %4, %cst_27 {dimension_numbers = #tpu.dot_dimension_numbers<[1], [0], [0], [1], [0, 0, 1, 1], [], []>} : vector<8x32xf32>, vector<32x128xf32>, vector<8x128xf32> -> vector<8x128xf32>
    %151 = arith.addf %125, %150 : vector<8x128xf32>
    %152 = vector.broadcast %2 : vector<1x128xf32> to vector<8x128xf32>
    %153 = arith.addf %151, %152 : vector<8x128xf32>
    %154 = vector.broadcast %20 : vector<1x128xf32> to vector<8x128xf32>
    %155 = arith.mulf %153, %154 : vector<8x128xf32>
    %156 = arith.negf %155 : vector<8x128xf32>
    %157 = math.exp %156 : vector<8x128xf32>
    %cst_28 = arith.constant 1.000000e+00 : f32
    %158 = vector.broadcast %cst_28 : f32 to vector<8x128xf32>
    %159 = arith.addf %158, %157 : vector<8x128xf32>
    %160 = arith.divf %158, %159 : vector<8x128xf32>
    %161 = vector.broadcast %20 : vector<1x128xf32> to vector<8x128xf32>
    %162 = arith.mulf %160, %161 : vector<8x128xf32>
    %163 = vector.broadcast %22 : vector<1x128xf32> to vector<8x128xf32>
    %164 = arith.addf %162, %163 : vector<8x128xf32>
    %165 = vector.extract_strided_slice %164 {offsets = [0, 0], sizes = [8, 32], strides = [1, 1]} : vector<8x128xf32> to vector<8x32xf32>
    %166 = vector.extract_strided_slice %164 {offsets = [0, 32], sizes = [8, 32], strides = [1, 1]} : vector<8x128xf32> to vector<8x32xf32>
    %167 = vector.extract_strided_slice %164 {offsets = [0, 64], sizes = [8, 32], strides = [1, 1]} : vector<8x128xf32> to vector<8x32xf32>
    %168 = vector.extract_strided_slice %164 {offsets = [0, 96], sizes = [8, 32], strides = [1, 1]} : vector<8x128xf32> to vector<8x32xf32>
    %169 = arith.mulf %166, %122 : vector<8x32xf32>
    %170 = arith.mulf %165, %168 : vector<8x32xf32>
    %171 = arith.addf %169, %170 : vector<8x32xf32>
    %172 = math.tanh %171 : vector<8x32xf32>
    %173 = arith.mulf %167, %172 : vector<8x32xf32>
    %cst_29 = arith.constant dense<0.000000e+00> : vector<8x128xf32>
    %174 = tpu.matmul %173, %5, %cst_29 {dimension_numbers = #tpu.dot_dimension_numbers<[1], [0], [0], [1], [0, 0, 1, 1], [], []>} : vector<8x32xf32>, vector<32x128xf32>, vector<8x128xf32> -> vector<8x128xf32>
    %175 = vector.extract_strided_slice %13 {offsets = [3, 0, 0], sizes = [1, 8, 128], strides = [1, 1, 1]} : vector<9x8x128xf32> to vector<1x8x128xf32>
    %176 = vector.shape_cast %175 : vector<1x8x128xf32> to vector<8x128xf32>
    %cst_30 = arith.constant dense<0.000000e+00> : vector<8x128xf32>
    %177 = tpu.matmul %149, %3, %cst_30 {dimension_numbers = #tpu.dot_dimension_numbers<[1], [0], [0], [1], [0, 0, 1, 1], [], []>} : vector<8x32xf32>, vector<32x128xf32>, vector<8x128xf32> -> vector<8x128xf32>
    %178 = arith.addf %176, %177 : vector<8x128xf32>
    %179 = vector.broadcast %20 : vector<1x128xf32> to vector<8x128xf32>
    %180 = arith.mulf %178, %179 : vector<8x128xf32>
    %181 = arith.negf %180 : vector<8x128xf32>
    %182 = math.exp %181 : vector<8x128xf32>
    %cst_31 = arith.constant 1.000000e+00 : f32
    %183 = vector.broadcast %cst_31 : f32 to vector<8x128xf32>
    %184 = arith.addf %183, %182 : vector<8x128xf32>
    %185 = arith.divf %183, %184 : vector<8x128xf32>
    %186 = vector.broadcast %20 : vector<1x128xf32> to vector<8x128xf32>
    %187 = arith.mulf %185, %186 : vector<8x128xf32>
    %188 = vector.broadcast %22 : vector<1x128xf32> to vector<8x128xf32>
    %189 = arith.addf %187, %188 : vector<8x128xf32>
    %190 = vector.extract_strided_slice %189 {offsets = [0, 0], sizes = [8, 32], strides = [1, 1]} : vector<8x128xf32> to vector<8x32xf32>
    %191 = vector.extract_strided_slice %189 {offsets = [0, 32], sizes = [8, 32], strides = [1, 1]} : vector<8x128xf32> to vector<8x32xf32>
    %192 = vector.extract_strided_slice %189 {offsets = [0, 64], sizes = [8, 32], strides = [1, 1]} : vector<8x128xf32> to vector<8x32xf32>
    %193 = vector.extract_strided_slice %189 {offsets = [0, 96], sizes = [8, 32], strides = [1, 1]} : vector<8x128xf32> to vector<8x32xf32>
    %194 = arith.mulf %191, %147 : vector<8x32xf32>
    %195 = arith.mulf %190, %193 : vector<8x32xf32>
    %196 = arith.addf %194, %195 : vector<8x32xf32>
    %197 = math.tanh %196 : vector<8x32xf32>
    %198 = arith.mulf %192, %197 : vector<8x32xf32>
    %cst_32 = arith.constant dense<0.000000e+00> : vector<8x128xf32>
    %199 = tpu.matmul %198, %4, %cst_32 {dimension_numbers = #tpu.dot_dimension_numbers<[1], [0], [0], [1], [0, 0, 1, 1], [], []>} : vector<8x32xf32>, vector<32x128xf32>, vector<8x128xf32> -> vector<8x128xf32>
    %200 = arith.addf %174, %199 : vector<8x128xf32>
    %201 = vector.broadcast %2 : vector<1x128xf32> to vector<8x128xf32>
    %202 = arith.addf %200, %201 : vector<8x128xf32>
    %203 = vector.broadcast %20 : vector<1x128xf32> to vector<8x128xf32>
    %204 = arith.mulf %202, %203 : vector<8x128xf32>
    %205 = arith.negf %204 : vector<8x128xf32>
    %206 = math.exp %205 : vector<8x128xf32>
    %cst_33 = arith.constant 1.000000e+00 : f32
    %207 = vector.broadcast %cst_33 : f32 to vector<8x128xf32>
    %208 = arith.addf %207, %206 : vector<8x128xf32>
    %209 = arith.divf %207, %208 : vector<8x128xf32>
    %210 = vector.broadcast %20 : vector<1x128xf32> to vector<8x128xf32>
    %211 = arith.mulf %209, %210 : vector<8x128xf32>
    %212 = vector.broadcast %22 : vector<1x128xf32> to vector<8x128xf32>
    %213 = arith.addf %211, %212 : vector<8x128xf32>
    %214 = vector.extract_strided_slice %213 {offsets = [0, 0], sizes = [8, 32], strides = [1, 1]} : vector<8x128xf32> to vector<8x32xf32>
    %215 = vector.extract_strided_slice %213 {offsets = [0, 32], sizes = [8, 32], strides = [1, 1]} : vector<8x128xf32> to vector<8x32xf32>
    %216 = vector.extract_strided_slice %213 {offsets = [0, 64], sizes = [8, 32], strides = [1, 1]} : vector<8x128xf32> to vector<8x32xf32>
    %217 = vector.extract_strided_slice %213 {offsets = [0, 96], sizes = [8, 32], strides = [1, 1]} : vector<8x128xf32> to vector<8x32xf32>
    %218 = arith.mulf %215, %171 : vector<8x32xf32>
    %219 = arith.mulf %214, %217 : vector<8x32xf32>
    %220 = arith.addf %218, %219 : vector<8x32xf32>
    %221 = math.tanh %220 : vector<8x32xf32>
    %222 = arith.mulf %216, %221 : vector<8x32xf32>
    %cst_34 = arith.constant dense<0.000000e+00> : vector<8x128xf32>
    %223 = tpu.matmul %222, %5, %cst_34 {dimension_numbers = #tpu.dot_dimension_numbers<[1], [0], [0], [1], [0, 0, 1, 1], [], []>} : vector<8x32xf32>, vector<32x128xf32>, vector<8x128xf32> -> vector<8x128xf32>
    %224 = vector.extract_strided_slice %13 {offsets = [4, 0, 0], sizes = [1, 8, 128], strides = [1, 1, 1]} : vector<9x8x128xf32> to vector<1x8x128xf32>
    %225 = vector.shape_cast %224 : vector<1x8x128xf32> to vector<8x128xf32>
    %cst_35 = arith.constant dense<0.000000e+00> : vector<8x128xf32>
    %226 = tpu.matmul %198, %3, %cst_35 {dimension_numbers = #tpu.dot_dimension_numbers<[1], [0], [0], [1], [0, 0, 1, 1], [], []>} : vector<8x32xf32>, vector<32x128xf32>, vector<8x128xf32> -> vector<8x128xf32>
    %227 = arith.addf %225, %226 : vector<8x128xf32>
    %228 = vector.broadcast %20 : vector<1x128xf32> to vector<8x128xf32>
    %229 = arith.mulf %227, %228 : vector<8x128xf32>
    %230 = arith.negf %229 : vector<8x128xf32>
    %231 = math.exp %230 : vector<8x128xf32>
    %cst_36 = arith.constant 1.000000e+00 : f32
    %232 = vector.broadcast %cst_36 : f32 to vector<8x128xf32>
    %233 = arith.addf %232, %231 : vector<8x128xf32>
    %234 = arith.divf %232, %233 : vector<8x128xf32>
    %235 = vector.broadcast %20 : vector<1x128xf32> to vector<8x128xf32>
    %236 = arith.mulf %234, %235 : vector<8x128xf32>
    %237 = vector.broadcast %22 : vector<1x128xf32> to vector<8x128xf32>
    %238 = arith.addf %236, %237 : vector<8x128xf32>
    %239 = vector.extract_strided_slice %238 {offsets = [0, 0], sizes = [8, 32], strides = [1, 1]} : vector<8x128xf32> to vector<8x32xf32>
    %240 = vector.extract_strided_slice %238 {offsets = [0, 32], sizes = [8, 32], strides = [1, 1]} : vector<8x128xf32> to vector<8x32xf32>
    %241 = vector.extract_strided_slice %238 {offsets = [0, 64], sizes = [8, 32], strides = [1, 1]} : vector<8x128xf32> to vector<8x32xf32>
    %242 = vector.extract_strided_slice %238 {offsets = [0, 96], sizes = [8, 32], strides = [1, 1]} : vector<8x128xf32> to vector<8x32xf32>
    %243 = arith.mulf %240, %196 : vector<8x32xf32>
    %244 = arith.mulf %239, %242 : vector<8x32xf32>
    %245 = arith.addf %243, %244 : vector<8x32xf32>
    %246 = math.tanh %245 : vector<8x32xf32>
    %247 = arith.mulf %241, %246 : vector<8x32xf32>
    %cst_37 = arith.constant dense<0.000000e+00> : vector<8x128xf32>
    %248 = tpu.matmul %247, %4, %cst_37 {dimension_numbers = #tpu.dot_dimension_numbers<[1], [0], [0], [1], [0, 0, 1, 1], [], []>} : vector<8x32xf32>, vector<32x128xf32>, vector<8x128xf32> -> vector<8x128xf32>
    %249 = arith.addf %223, %248 : vector<8x128xf32>
    %250 = vector.broadcast %2 : vector<1x128xf32> to vector<8x128xf32>
    %251 = arith.addf %249, %250 : vector<8x128xf32>
    %252 = vector.broadcast %20 : vector<1x128xf32> to vector<8x128xf32>
    %253 = arith.mulf %251, %252 : vector<8x128xf32>
    %254 = arith.negf %253 : vector<8x128xf32>
    %255 = math.exp %254 : vector<8x128xf32>
    %cst_38 = arith.constant 1.000000e+00 : f32
    %256 = vector.broadcast %cst_38 : f32 to vector<8x128xf32>
    %257 = arith.addf %256, %255 : vector<8x128xf32>
    %258 = arith.divf %256, %257 : vector<8x128xf32>
    %259 = vector.broadcast %20 : vector<1x128xf32> to vector<8x128xf32>
    %260 = arith.mulf %258, %259 : vector<8x128xf32>
    %261 = vector.broadcast %22 : vector<1x128xf32> to vector<8x128xf32>
    %262 = arith.addf %260, %261 : vector<8x128xf32>
    %263 = vector.extract_strided_slice %262 {offsets = [0, 0], sizes = [8, 32], strides = [1, 1]} : vector<8x128xf32> to vector<8x32xf32>
    %264 = vector.extract_strided_slice %262 {offsets = [0, 32], sizes = [8, 32], strides = [1, 1]} : vector<8x128xf32> to vector<8x32xf32>
    %265 = vector.extract_strided_slice %262 {offsets = [0, 64], sizes = [8, 32], strides = [1, 1]} : vector<8x128xf32> to vector<8x32xf32>
    %266 = vector.extract_strided_slice %262 {offsets = [0, 96], sizes = [8, 32], strides = [1, 1]} : vector<8x128xf32> to vector<8x32xf32>
    %267 = arith.mulf %264, %220 : vector<8x32xf32>
    %268 = arith.mulf %263, %266 : vector<8x32xf32>
    %269 = arith.addf %267, %268 : vector<8x32xf32>
    %270 = math.tanh %269 : vector<8x32xf32>
    %271 = arith.mulf %265, %270 : vector<8x32xf32>
    %cst_39 = arith.constant dense<0.000000e+00> : vector<8x128xf32>
    %272 = tpu.matmul %271, %5, %cst_39 {dimension_numbers = #tpu.dot_dimension_numbers<[1], [0], [0], [1], [0, 0, 1, 1], [], []>} : vector<8x32xf32>, vector<32x128xf32>, vector<8x128xf32> -> vector<8x128xf32>
    %273 = vector.extract_strided_slice %13 {offsets = [5, 0, 0], sizes = [1, 8, 128], strides = [1, 1, 1]} : vector<9x8x128xf32> to vector<1x8x128xf32>
    %274 = vector.shape_cast %273 : vector<1x8x128xf32> to vector<8x128xf32>
    %cst_40 = arith.constant dense<0.000000e+00> : vector<8x128xf32>
    %275 = tpu.matmul %247, %3, %cst_40 {dimension_numbers = #tpu.dot_dimension_numbers<[1], [0], [0], [1], [0, 0, 1, 1], [], []>} : vector<8x32xf32>, vector<32x128xf32>, vector<8x128xf32> -> vector<8x128xf32>
    %276 = arith.addf %274, %275 : vector<8x128xf32>
    %277 = vector.broadcast %20 : vector<1x128xf32> to vector<8x128xf32>
    %278 = arith.mulf %276, %277 : vector<8x128xf32>
    %279 = arith.negf %278 : vector<8x128xf32>
    %280 = math.exp %279 : vector<8x128xf32>
    %cst_41 = arith.constant 1.000000e+00 : f32
    %281 = vector.broadcast %cst_41 : f32 to vector<8x128xf32>
    %282 = arith.addf %281, %280 : vector<8x128xf32>
    %283 = arith.divf %281, %282 : vector<8x128xf32>
    %284 = vector.broadcast %20 : vector<1x128xf32> to vector<8x128xf32>
    %285 = arith.mulf %283, %284 : vector<8x128xf32>
    %286 = vector.broadcast %22 : vector<1x128xf32> to vector<8x128xf32>
    %287 = arith.addf %285, %286 : vector<8x128xf32>
    %288 = vector.extract_strided_slice %287 {offsets = [0, 0], sizes = [8, 32], strides = [1, 1]} : vector<8x128xf32> to vector<8x32xf32>
    %289 = vector.extract_strided_slice %287 {offsets = [0, 32], sizes = [8, 32], strides = [1, 1]} : vector<8x128xf32> to vector<8x32xf32>
    %290 = vector.extract_strided_slice %287 {offsets = [0, 64], sizes = [8, 32], strides = [1, 1]} : vector<8x128xf32> to vector<8x32xf32>
    %291 = vector.extract_strided_slice %287 {offsets = [0, 96], sizes = [8, 32], strides = [1, 1]} : vector<8x128xf32> to vector<8x32xf32>
    %292 = arith.mulf %289, %245 : vector<8x32xf32>
    %293 = arith.mulf %288, %291 : vector<8x32xf32>
    %294 = arith.addf %292, %293 : vector<8x32xf32>
    %295 = math.tanh %294 : vector<8x32xf32>
    %296 = arith.mulf %290, %295 : vector<8x32xf32>
    %cst_42 = arith.constant dense<0.000000e+00> : vector<8x128xf32>
    %297 = tpu.matmul %296, %4, %cst_42 {dimension_numbers = #tpu.dot_dimension_numbers<[1], [0], [0], [1], [0, 0, 1, 1], [], []>} : vector<8x32xf32>, vector<32x128xf32>, vector<8x128xf32> -> vector<8x128xf32>
    %298 = arith.addf %272, %297 : vector<8x128xf32>
    %299 = vector.broadcast %2 : vector<1x128xf32> to vector<8x128xf32>
    %300 = arith.addf %298, %299 : vector<8x128xf32>
    %301 = vector.broadcast %20 : vector<1x128xf32> to vector<8x128xf32>
    %302 = arith.mulf %300, %301 : vector<8x128xf32>
    %303 = arith.negf %302 : vector<8x128xf32>
    %304 = math.exp %303 : vector<8x128xf32>
    %cst_43 = arith.constant 1.000000e+00 : f32
    %305 = vector.broadcast %cst_43 : f32 to vector<8x128xf32>
    %306 = arith.addf %305, %304 : vector<8x128xf32>
    %307 = arith.divf %305, %306 : vector<8x128xf32>
    %308 = vector.broadcast %20 : vector<1x128xf32> to vector<8x128xf32>
    %309 = arith.mulf %307, %308 : vector<8x128xf32>
    %310 = vector.broadcast %22 : vector<1x128xf32> to vector<8x128xf32>
    %311 = arith.addf %309, %310 : vector<8x128xf32>
    %312 = vector.extract_strided_slice %311 {offsets = [0, 0], sizes = [8, 32], strides = [1, 1]} : vector<8x128xf32> to vector<8x32xf32>
    %313 = vector.extract_strided_slice %311 {offsets = [0, 32], sizes = [8, 32], strides = [1, 1]} : vector<8x128xf32> to vector<8x32xf32>
    %314 = vector.extract_strided_slice %311 {offsets = [0, 64], sizes = [8, 32], strides = [1, 1]} : vector<8x128xf32> to vector<8x32xf32>
    %315 = vector.extract_strided_slice %311 {offsets = [0, 96], sizes = [8, 32], strides = [1, 1]} : vector<8x128xf32> to vector<8x32xf32>
    %316 = arith.mulf %313, %269 : vector<8x32xf32>
    %317 = arith.mulf %312, %315 : vector<8x32xf32>
    %318 = arith.addf %316, %317 : vector<8x32xf32>
    %319 = math.tanh %318 : vector<8x32xf32>
    %320 = arith.mulf %314, %319 : vector<8x32xf32>
    %cst_44 = arith.constant dense<0.000000e+00> : vector<8x128xf32>
    %321 = tpu.matmul %320, %5, %cst_44 {dimension_numbers = #tpu.dot_dimension_numbers<[1], [0], [0], [1], [0, 0, 1, 1], [], []>} : vector<8x32xf32>, vector<32x128xf32>, vector<8x128xf32> -> vector<8x128xf32>
    %322 = vector.extract_strided_slice %13 {offsets = [6, 0, 0], sizes = [1, 8, 128], strides = [1, 1, 1]} : vector<9x8x128xf32> to vector<1x8x128xf32>
    %323 = vector.shape_cast %322 : vector<1x8x128xf32> to vector<8x128xf32>
    %cst_45 = arith.constant dense<0.000000e+00> : vector<8x128xf32>
    %324 = tpu.matmul %296, %3, %cst_45 {dimension_numbers = #tpu.dot_dimension_numbers<[1], [0], [0], [1], [0, 0, 1, 1], [], []>} : vector<8x32xf32>, vector<32x128xf32>, vector<8x128xf32> -> vector<8x128xf32>
    %325 = arith.addf %323, %324 : vector<8x128xf32>
    %326 = vector.broadcast %20 : vector<1x128xf32> to vector<8x128xf32>
    %327 = arith.mulf %325, %326 : vector<8x128xf32>
    %328 = arith.negf %327 : vector<8x128xf32>
    %329 = math.exp %328 : vector<8x128xf32>
    %cst_46 = arith.constant 1.000000e+00 : f32
    %330 = vector.broadcast %cst_46 : f32 to vector<8x128xf32>
    %331 = arith.addf %330, %329 : vector<8x128xf32>
    %332 = arith.divf %330, %331 : vector<8x128xf32>
    %333 = vector.broadcast %20 : vector<1x128xf32> to vector<8x128xf32>
    %334 = arith.mulf %332, %333 : vector<8x128xf32>
    %335 = vector.broadcast %22 : vector<1x128xf32> to vector<8x128xf32>
    %336 = arith.addf %334, %335 : vector<8x128xf32>
    %337 = vector.extract_strided_slice %336 {offsets = [0, 0], sizes = [8, 32], strides = [1, 1]} : vector<8x128xf32> to vector<8x32xf32>
    %338 = vector.extract_strided_slice %336 {offsets = [0, 32], sizes = [8, 32], strides = [1, 1]} : vector<8x128xf32> to vector<8x32xf32>
    %339 = vector.extract_strided_slice %336 {offsets = [0, 64], sizes = [8, 32], strides = [1, 1]} : vector<8x128xf32> to vector<8x32xf32>
    %340 = vector.extract_strided_slice %336 {offsets = [0, 96], sizes = [8, 32], strides = [1, 1]} : vector<8x128xf32> to vector<8x32xf32>
    %341 = arith.mulf %338, %294 : vector<8x32xf32>
    %342 = arith.mulf %337, %340 : vector<8x32xf32>
    %343 = arith.addf %341, %342 : vector<8x32xf32>
    %344 = math.tanh %343 : vector<8x32xf32>
    %345 = arith.mulf %339, %344 : vector<8x32xf32>
    %cst_47 = arith.constant dense<0.000000e+00> : vector<8x128xf32>
    %346 = tpu.matmul %345, %4, %cst_47 {dimension_numbers = #tpu.dot_dimension_numbers<[1], [0], [0], [1], [0, 0, 1, 1], [], []>} : vector<8x32xf32>, vector<32x128xf32>, vector<8x128xf32> -> vector<8x128xf32>
    %347 = arith.addf %321, %346 : vector<8x128xf32>
    %348 = vector.broadcast %2 : vector<1x128xf32> to vector<8x128xf32>
    %349 = arith.addf %347, %348 : vector<8x128xf32>
    %350 = vector.broadcast %20 : vector<1x128xf32> to vector<8x128xf32>
    %351 = arith.mulf %349, %350 : vector<8x128xf32>
    %352 = arith.negf %351 : vector<8x128xf32>
    %353 = math.exp %352 : vector<8x128xf32>
    %cst_48 = arith.constant 1.000000e+00 : f32
    %354 = vector.broadcast %cst_48 : f32 to vector<8x128xf32>
    %355 = arith.addf %354, %353 : vector<8x128xf32>
    %356 = arith.divf %354, %355 : vector<8x128xf32>
    %357 = vector.broadcast %20 : vector<1x128xf32> to vector<8x128xf32>
    %358 = arith.mulf %356, %357 : vector<8x128xf32>
    %359 = vector.broadcast %22 : vector<1x128xf32> to vector<8x128xf32>
    %360 = arith.addf %358, %359 : vector<8x128xf32>
    %361 = vector.extract_strided_slice %360 {offsets = [0, 0], sizes = [8, 32], strides = [1, 1]} : vector<8x128xf32> to vector<8x32xf32>
    %362 = vector.extract_strided_slice %360 {offsets = [0, 32], sizes = [8, 32], strides = [1, 1]} : vector<8x128xf32> to vector<8x32xf32>
    %363 = vector.extract_strided_slice %360 {offsets = [0, 64], sizes = [8, 32], strides = [1, 1]} : vector<8x128xf32> to vector<8x32xf32>
    %364 = vector.extract_strided_slice %360 {offsets = [0, 96], sizes = [8, 32], strides = [1, 1]} : vector<8x128xf32> to vector<8x32xf32>
    %365 = arith.mulf %362, %318 : vector<8x32xf32>
    %366 = arith.mulf %361, %364 : vector<8x32xf32>
    %367 = arith.addf %365, %366 : vector<8x32xf32>
    %368 = math.tanh %367 : vector<8x32xf32>
    %369 = arith.mulf %363, %368 : vector<8x32xf32>
    %cst_49 = arith.constant dense<0.000000e+00> : vector<8x128xf32>
    %370 = tpu.matmul %369, %5, %cst_49 {dimension_numbers = #tpu.dot_dimension_numbers<[1], [0], [0], [1], [0, 0, 1, 1], [], []>} : vector<8x32xf32>, vector<32x128xf32>, vector<8x128xf32> -> vector<8x128xf32>
    %371 = vector.extract_strided_slice %13 {offsets = [7, 0, 0], sizes = [1, 8, 128], strides = [1, 1, 1]} : vector<9x8x128xf32> to vector<1x8x128xf32>
    %372 = vector.shape_cast %371 : vector<1x8x128xf32> to vector<8x128xf32>
    %cst_50 = arith.constant dense<0.000000e+00> : vector<8x128xf32>
    %373 = tpu.matmul %345, %3, %cst_50 {dimension_numbers = #tpu.dot_dimension_numbers<[1], [0], [0], [1], [0, 0, 1, 1], [], []>} : vector<8x32xf32>, vector<32x128xf32>, vector<8x128xf32> -> vector<8x128xf32>
    %374 = arith.addf %372, %373 : vector<8x128xf32>
    %375 = vector.broadcast %20 : vector<1x128xf32> to vector<8x128xf32>
    %376 = arith.mulf %374, %375 : vector<8x128xf32>
    %377 = arith.negf %376 : vector<8x128xf32>
    %378 = math.exp %377 : vector<8x128xf32>
    %cst_51 = arith.constant 1.000000e+00 : f32
    %379 = vector.broadcast %cst_51 : f32 to vector<8x128xf32>
    %380 = arith.addf %379, %378 : vector<8x128xf32>
    %381 = arith.divf %379, %380 : vector<8x128xf32>
    %382 = vector.broadcast %20 : vector<1x128xf32> to vector<8x128xf32>
    %383 = arith.mulf %381, %382 : vector<8x128xf32>
    %384 = vector.broadcast %22 : vector<1x128xf32> to vector<8x128xf32>
    %385 = arith.addf %383, %384 : vector<8x128xf32>
    %386 = vector.extract_strided_slice %385 {offsets = [0, 0], sizes = [8, 32], strides = [1, 1]} : vector<8x128xf32> to vector<8x32xf32>
    %387 = vector.extract_strided_slice %385 {offsets = [0, 32], sizes = [8, 32], strides = [1, 1]} : vector<8x128xf32> to vector<8x32xf32>
    %388 = vector.extract_strided_slice %385 {offsets = [0, 64], sizes = [8, 32], strides = [1, 1]} : vector<8x128xf32> to vector<8x32xf32>
    %389 = vector.extract_strided_slice %385 {offsets = [0, 96], sizes = [8, 32], strides = [1, 1]} : vector<8x128xf32> to vector<8x32xf32>
    %390 = arith.mulf %387, %343 : vector<8x32xf32>
    %391 = arith.mulf %386, %389 : vector<8x32xf32>
    %392 = arith.addf %390, %391 : vector<8x32xf32>
    %393 = math.tanh %392 : vector<8x32xf32>
    %394 = arith.mulf %388, %393 : vector<8x32xf32>
    %cst_52 = arith.constant dense<0.000000e+00> : vector<8x128xf32>
    %395 = tpu.matmul %394, %4, %cst_52 {dimension_numbers = #tpu.dot_dimension_numbers<[1], [0], [0], [1], [0, 0, 1, 1], [], []>} : vector<8x32xf32>, vector<32x128xf32>, vector<8x128xf32> -> vector<8x128xf32>
    %396 = arith.addf %370, %395 : vector<8x128xf32>
    %397 = vector.broadcast %2 : vector<1x128xf32> to vector<8x128xf32>
    %398 = arith.addf %396, %397 : vector<8x128xf32>
    %399 = vector.broadcast %20 : vector<1x128xf32> to vector<8x128xf32>
    %400 = arith.mulf %398, %399 : vector<8x128xf32>
    %401 = arith.negf %400 : vector<8x128xf32>
    %402 = math.exp %401 : vector<8x128xf32>
    %cst_53 = arith.constant 1.000000e+00 : f32
    %403 = vector.broadcast %cst_53 : f32 to vector<8x128xf32>
    %404 = arith.addf %403, %402 : vector<8x128xf32>
    %405 = arith.divf %403, %404 : vector<8x128xf32>
    %406 = vector.broadcast %20 : vector<1x128xf32> to vector<8x128xf32>
    %407 = arith.mulf %405, %406 : vector<8x128xf32>
    %408 = vector.broadcast %22 : vector<1x128xf32> to vector<8x128xf32>
    %409 = arith.addf %407, %408 : vector<8x128xf32>
    %410 = vector.extract_strided_slice %409 {offsets = [0, 0], sizes = [8, 32], strides = [1, 1]} : vector<8x128xf32> to vector<8x32xf32>
    %411 = vector.extract_strided_slice %409 {offsets = [0, 32], sizes = [8, 32], strides = [1, 1]} : vector<8x128xf32> to vector<8x32xf32>
    %412 = vector.extract_strided_slice %409 {offsets = [0, 64], sizes = [8, 32], strides = [1, 1]} : vector<8x128xf32> to vector<8x32xf32>
    %413 = vector.extract_strided_slice %409 {offsets = [0, 96], sizes = [8, 32], strides = [1, 1]} : vector<8x128xf32> to vector<8x32xf32>
    %414 = arith.mulf %411, %367 : vector<8x32xf32>
    %415 = arith.mulf %410, %413 : vector<8x32xf32>
    %416 = arith.addf %414, %415 : vector<8x32xf32>
    %417 = math.tanh %416 : vector<8x32xf32>
    %418 = arith.mulf %412, %417 : vector<8x32xf32>
    %cst_54 = arith.constant dense<0.000000e+00> : vector<8x128xf32>
    %419 = tpu.matmul %418, %5, %cst_54 {dimension_numbers = #tpu.dot_dimension_numbers<[1], [0], [0], [1], [0, 0, 1, 1], [], []>} : vector<8x32xf32>, vector<32x128xf32>, vector<8x128xf32> -> vector<8x128xf32>
    %420 = vector.extract_strided_slice %13 {offsets = [8, 0, 0], sizes = [1, 8, 128], strides = [1, 1, 1]} : vector<9x8x128xf32> to vector<1x8x128xf32>
    %421 = vector.shape_cast %420 : vector<1x8x128xf32> to vector<8x128xf32>
    %cst_55 = arith.constant dense<0.000000e+00> : vector<8x128xf32>
    %422 = tpu.matmul %394, %3, %cst_55 {dimension_numbers = #tpu.dot_dimension_numbers<[1], [0], [0], [1], [0, 0, 1, 1], [], []>} : vector<8x32xf32>, vector<32x128xf32>, vector<8x128xf32> -> vector<8x128xf32>
    %423 = arith.addf %421, %422 : vector<8x128xf32>
    %424 = vector.broadcast %20 : vector<1x128xf32> to vector<8x128xf32>
    %425 = arith.mulf %423, %424 : vector<8x128xf32>
    %426 = arith.negf %425 : vector<8x128xf32>
    %427 = math.exp %426 : vector<8x128xf32>
    %cst_56 = arith.constant 1.000000e+00 : f32
    %428 = vector.broadcast %cst_56 : f32 to vector<8x128xf32>
    %429 = arith.addf %428, %427 : vector<8x128xf32>
    %430 = arith.divf %428, %429 : vector<8x128xf32>
    %431 = vector.broadcast %20 : vector<1x128xf32> to vector<8x128xf32>
    %432 = arith.mulf %430, %431 : vector<8x128xf32>
    %433 = vector.broadcast %22 : vector<1x128xf32> to vector<8x128xf32>
    %434 = arith.addf %432, %433 : vector<8x128xf32>
    %435 = vector.extract_strided_slice %434 {offsets = [0, 0], sizes = [8, 32], strides = [1, 1]} : vector<8x128xf32> to vector<8x32xf32>
    %436 = vector.extract_strided_slice %434 {offsets = [0, 32], sizes = [8, 32], strides = [1, 1]} : vector<8x128xf32> to vector<8x32xf32>
    %437 = vector.extract_strided_slice %434 {offsets = [0, 64], sizes = [8, 32], strides = [1, 1]} : vector<8x128xf32> to vector<8x32xf32>
    %438 = vector.extract_strided_slice %434 {offsets = [0, 96], sizes = [8, 32], strides = [1, 1]} : vector<8x128xf32> to vector<8x32xf32>
    %439 = arith.mulf %436, %392 : vector<8x32xf32>
    %440 = arith.mulf %435, %438 : vector<8x32xf32>
    %441 = arith.addf %439, %440 : vector<8x32xf32>
    %442 = math.tanh %441 : vector<8x32xf32>
    %443 = arith.mulf %437, %442 : vector<8x32xf32>
    %cst_57 = arith.constant dense<0.000000e+00> : vector<8x128xf32>
    %444 = tpu.matmul %443, %4, %cst_57 {dimension_numbers = #tpu.dot_dimension_numbers<[1], [0], [0], [1], [0, 0, 1, 1], [], []>} : vector<8x32xf32>, vector<32x128xf32>, vector<8x128xf32> -> vector<8x128xf32>
    %445 = arith.addf %419, %444 : vector<8x128xf32>
    %446 = vector.broadcast %2 : vector<1x128xf32> to vector<8x128xf32>
    %447 = arith.addf %445, %446 : vector<8x128xf32>
    %448 = vector.broadcast %20 : vector<1x128xf32> to vector<8x128xf32>
    %449 = arith.mulf %447, %448 : vector<8x128xf32>
    %450 = arith.negf %449 : vector<8x128xf32>
    %451 = math.exp %450 : vector<8x128xf32>
    %cst_58 = arith.constant 1.000000e+00 : f32
    %452 = vector.broadcast %cst_58 : f32 to vector<8x128xf32>
    %453 = arith.addf %452, %451 : vector<8x128xf32>
    %454 = arith.divf %452, %453 : vector<8x128xf32>
    %455 = vector.broadcast %20 : vector<1x128xf32> to vector<8x128xf32>
    %456 = arith.mulf %454, %455 : vector<8x128xf32>
    %457 = vector.broadcast %22 : vector<1x128xf32> to vector<8x128xf32>
    %458 = arith.addf %456, %457 : vector<8x128xf32>
    %459 = vector.extract_strided_slice %458 {offsets = [0, 0], sizes = [8, 32], strides = [1, 1]} : vector<8x128xf32> to vector<8x32xf32>
    %460 = vector.extract_strided_slice %458 {offsets = [0, 32], sizes = [8, 32], strides = [1, 1]} : vector<8x128xf32> to vector<8x32xf32>
    %461 = vector.extract_strided_slice %458 {offsets = [0, 64], sizes = [8, 32], strides = [1, 1]} : vector<8x128xf32> to vector<8x32xf32>
    %462 = vector.extract_strided_slice %458 {offsets = [0, 96], sizes = [8, 32], strides = [1, 1]} : vector<8x128xf32> to vector<8x32xf32>
    %463 = arith.mulf %460, %416 : vector<8x32xf32>
    %464 = arith.mulf %459, %462 : vector<8x32xf32>
    %465 = arith.addf %463, %464 : vector<8x32xf32>
    %466 = math.tanh %465 : vector<8x32xf32>
    %467 = arith.mulf %461, %466 : vector<8x32xf32>
    %c0_59 = arith.constant 0 : index
    %c0_60 = arith.constant 0 : index
    %468 = vector.load %arg2[%c0_59, %c0_60] : memref<40x16xf32, #tpu.memory_space<vmem>>, vector<32x16xf32>
    %c32 = arith.constant 32 : index
    %c0_61 = arith.constant 0 : index
    %469 = vector.load %arg2[%c32, %c0_61] : memref<40x16xf32, #tpu.memory_space<vmem>>, vector<1x16xf32>
    %c33 = arith.constant 33 : index
    %c0_62 = arith.constant 0 : index
    %470 = vector.load %arg2[%c33, %c0_62] : memref<40x16xf32, #tpu.memory_space<vmem>>, vector<1x16xf32>
    %c34 = arith.constant 34 : index
    %c0_63 = arith.constant 0 : index
    %471 = vector.load %arg2[%c34, %c0_63] : memref<40x16xf32, #tpu.memory_space<vmem>>, vector<1x1xf32>
    %cst_64 = arith.constant dense<0.000000e+00> : vector<8x16xf32>
    %472 = tpu.matmul %467, %468, %cst_64 {dimension_numbers = #tpu.dot_dimension_numbers<[1], [0], [0], [1], [0, 0, 1, 1], [], []>} : vector<8x32xf32>, vector<32x16xf32>, vector<8x16xf32> -> vector<8x16xf32>
    %473 = vector.broadcast %469 : vector<1x16xf32> to vector<8x16xf32>
    %474 = arith.addf %472, %473 : vector<8x16xf32>
    %475 = vector.broadcast %470 : vector<1x16xf32> to vector<8x16xf32>
    %476 = arith.mulf %474, %475 : vector<8x16xf32>
    %cst_65 = arith.constant dense<0.000000e+00> : vector<8xf32>
    %477 = vector.multi_reduction <add>, %476, %cst_65 [1] : vector<8x16xf32> to vector<8xf32>
    %478 = vector.shape_cast %477 : vector<8xf32> to vector<8x1xf32>
    %479 = vector.broadcast %471 : vector<1x1xf32> to vector<8x1xf32>
    %480 = arith.addf %478, %479 : vector<8x1xf32>
    %c0_66 = arith.constant 0 : index
    %c0_67 = arith.constant 0 : index
    %481 = vector.load %arg3[%c0_66, %c0_67] : memref<8x1xf32, #tpu.memory_space<vmem>>, vector<8x1xf32>
    tpu.vector_store %arg3[%c0_66, %c0_67], %480 {strides = array<i32>} : memref<8x1xf32, #tpu.memory_space<vmem>>, vector<8x1xf32>,
    return
  }
}

</mosaic_0001>

<llo_original>
// kernel: tpu_custom_call.1
$region0: #{tpu_custom_call.1}
  #allocation0 [shape = 'u32[]', space=smem, size = 0x4, offset = 0x4, fixed_abs, tag = 'smem constant byte address 0x4 - core index']
  #allocation1 [shape = 'u32[144,128]{1,0:T(1,128)}', space=vmem, size = 0x12000, scoped, tag = 'internal scratch']
  %s0 = inlined_call_operand.vmem [shape: f32[9,8,1], index: 0, kind: input, shape index: {}]
  %s1 = inlined_call_operand.vmem [shape: f32[104,128], index: 1, kind: input, shape index: {}]
  %s2 = inlined_call_operand.vmem [shape: f32[40,16], index: 2, kind: input, shape index: {}]
  %s3 = inlined_call_operand.vmem [shape: f32[8,1], index: 3, kind: output, shape index: {}]
  %s4 = sld [smem:[#allocation0]]
  $region22: #{tpu_custom_call.1} parent=0
    _
  %s6 = ssub.s32 1, %s4
  %s7 = scalar_select 0, %s6, %s4
  // Predicated region
  $region2: #{tpu_custom_call.1} parent=0 // pred_check
    _
  $region3: #{tpu_custom_call.1} parent=0 // pred_check_branch
    %9 = sbr.rel (0) target = $region5
  $region4: #{tpu_custom_call.1} parent=0 // pred_region
    _
  $region5: #{tpu_custom_call.1} parent=0 // pred_fallthru
    _
  // Predicated region
  $region6: #{tpu_custom_call.1} parent=0 // pred_check
    _
  $region7: #{tpu_custom_call.1} parent=0 // pred_check_branch
    %11 = sbr.rel (0) target = $region9
  $region8: #{tpu_custom_call.1} parent=0 // pred_region
    _
  $region9: #{tpu_custom_call.1} parent=0 // pred_fallthru
    _
  // Predicated region
  $region10: #{tpu_custom_call.1} parent=0 // pred_check
    _
  $region11: #{tpu_custom_call.1} parent=0 // pred_check_branch
    %13 = sbr.rel (0) target = $region13
  $region12: #{tpu_custom_call.1} parent=0 // pred_region
    _
  $region13: #{tpu_custom_call.1} parent=0 // pred_fallthru
    _
  %v14 = vld [vmem:[%s1] sm:$0x1]
  %v15 = vld [vmem:[%s1 + $0x1] sm:$0x1]
  %v16 = vld [vmem:[%s1 + $0x2] sm:$0x1]
  %v17 = vld [vmem:[%s1 + $0x8] sm:$0xff]
  %v18 = vld [vmem:[%s1 + $0x10] sm:$0xff]
  %v19 = vld [vmem:[%s1 + $0x18] sm:$0xff]
  %v20 = vld [vmem:[%s1 + $0x20] sm:$0xff]
  %v21 = vld [vmem:[%s1 + $0x28] sm:$0xff]
  %v22 = vld [vmem:[%s1 + $0x30] sm:$0xff]
  %v23 = vld [vmem:[%s1 + $0x38] sm:$0xff]
  %v24 = vld [vmem:[%s1 + $0x40] sm:$0xff]
  %v25 = vld [vmem:[%s1 + $0x48] sm:$0xff]
  %v26 = vld [vmem:[%s1 + $0x50] sm:$0xff]
  %v27 = vld [vmem:[%s1 + $0x58] sm:$0xff]
  %v28 = vld [vmem:[%s1 + $0x60] sm:$0xff]
  %v29 = vld [vmem:[%s0] sm:$0xff]
  %v30 = vld [vmem:[%s0 + $0x8] sm:$0xff]
  %v31 = vld [vmem:[%s0 + $0x10] sm:$0xff]
  %v32 = vld [vmem:[%s0 + $0x18] sm:$0xff]
  %v33 = vld [vmem:[%s0 + $0x20] sm:$0xff]
  %v34 = vld [vmem:[%s0 + $0x28] sm:$0xff]
  %v35 = vld [vmem:[%s0 + $0x30] sm:$0xff]
  %v36 = vld [vmem:[%s0 + $0x38] sm:$0xff]
  %v37 = vld [vmem:[%s0 + $0x40] sm:$0xff]
  %39 = vset.pattern.permute.xlu0 0
  %40 = vperm.xlu0 %39, %v29
  %v41 = vpop.permute.xlu0 %40
  %44 = vset.pattern.permute.xlu0 0
  %45 = vperm.xlu0 %44, %v30
  %v46 = vpop.permute.xlu0 %45
  %49 = vset.pattern.permute.xlu0 0
  %50 = vperm.xlu0 %49, %v31
  %v51 = vpop.permute.xlu0 %50
  %54 = vset.pattern.permute.xlu0 0
  %55 = vperm.xlu0 %54, %v32
  %v56 = vpop.permute.xlu0 %55
  %59 = vset.pattern.permute.xlu0 0
  %60 = vperm.xlu0 %59, %v33
  %v61 = vpop.permute.xlu0 %60
  %64 = vset.pattern.permute.xlu0 0
  %65 = vperm.xlu0 %64, %v34
  %v66 = vpop.permute.xlu0 %65
  %69 = vset.pattern.permute.xlu0 0
  %70 = vperm.xlu0 %69, %v35
  %v71 = vpop.permute.xlu0 %70
  %74 = vset.pattern.permute.xlu0 0
  %75 = vperm.xlu0 %74, %v36
  %v76 = vpop.permute.xlu0 %75
  %79 = vset.pattern.permute.xlu0 0
  %80 = vperm.xlu0 %79, %v37
  %v81 = vpop.permute.xlu0 %80
  %v83 = vlaneseq
  %v84 = vshrl.u32 %v83, 7
  %v85 = vsub.s32 0, %v84
  %v86 = vrot.slane %v14, %v85
  %v87 = vmul.f32 %v41, %v86
  %v88 = vmul.f32 %v46, %v86
  %v89 = vmul.f32 %v51, %v86
  %v90 = vmul.f32 %v56, %v86
  %v91 = vmul.f32 %v61, %v86
  %v92 = vmul.f32 %v66, %v86
  %v93 = vmul.f32 %v71, %v86
  %v94 = vmul.f32 %v76, %v86
  %v95 = vmul.f32 %v81, %v86
  %v96 = vlaneseq
  %v97 = vshrl.u32 %v96, 7
  %v98 = vsub.s32 0, %v97
  %v99 = vrot.slane %v15, %v98
  %v100 = vadd.f32 %v87, %v99
  %v101 = vadd.f32 %v88, %v99
  %v102 = vadd.f32 %v89, %v99
  %v103 = vadd.f32 %v90, %v99
  %v104 = vadd.f32 %v91, %v99
  %v105 = vadd.f32 %v92, %v99
  %v106 = vadd.f32 %v93, %v99
  %v107 = vadd.f32 %v94, %v99
  %v108 = vadd.f32 %v95, %v99
  %v109 = vlaneseq
  %v110 = vand.u32 %v109, 127
  %vm111 = vcmp.ge.s32.totalorder %v110, 96
  %v112 = vsel %vm111, 1, 0
  %v113 = vcvt.s32.f32 %v112
  %v114 = vadd.f32 %v113, 1.0
  %v115 = vsub.f32 0.0, %v113
  %vm116 = vcmask 261120
  %v118 = vsel %vm116, 0.0, 0
  %120 = vmatprep.subr.mxu0 0.0
  %121 = vmatpush1.msra.mxu0 %v17
  %122 = vmatprep.subr.mxu0 0.0
  %123 = vmatpush1.msra.mxu0 %v18
  %124 = vmatprep.subr.mxu0 0.0
  %125 = vmatpush1.msra.mxu0 %v19
  %126 = vmatprep.subr.mxu0 0.0
  %127 = vmatpush1.msra.mxu0 %v20
  %128 = vmatprep.subr.mxu0 0.0
  %129 = vmatpush1.msra.mxu0 0.0
  %130 = vmatprep.subr.mxu0 0.0
  %131 = vmatpush1.msra.mxu0 0.0
  %132 = vmatprep.subr.mxu0 0.0
  %133 = vmatpush1.msra.mxu0 0.0
  %134 = vmatprep.subr.mxu0 0.0
  %135 = vmatpush1.msra.mxu0 0.0
  %136 = vmatprep.subr.mxu0 0.0
  %137 = vmatpush1.msra.mxu0 0.0
  %138 = vmatprep.subr.mxu0 0.0
  %139 = vmatpush1.msra.mxu0 0.0
  %140 = vmatprep.subr.mxu0 0.0
  %141 = vmatpush1.msra.mxu0 0.0
  %142 = vmatprep.subr.mxu0 0.0
  %143 = vmatpush1.msra.mxu0 0.0
  %144 = vmatprep.subr.mxu0 0.0
  %145 = vmatpush1.msra.mxu0 0.0
  %146 = vmatprep.subr.mxu0 0.0
  %147 = vmatpush1.msra.mxu0 0.0
  %148 = vmatprep.subr.mxu0 0.0
  %149 = vmatpush1.msra.mxu0 0.0
  %150 = vmatprep.subr.mxu0 0.0
  %151 = vmatpush1.msra.mxu0 0.0
  %152 = vmatprep.subr.mxu0 0.0
  %153 = vmatpush1.msra.mxu0 0.0
  %154 = vmatprep.subr.mxu0 0.0
  %155 = vmatpush1.msra.mxu0 0.0
  %156 = vmatprep.subr.mxu0 0.0
  %157 = vmatpush1.msra.mxu0 0.0
  %158 = vmatprep.subr.mxu0 0.0
  %159 = vmatpush1.msra.mxu0 0.0
  %160 = vmatprep.subr.mxu0 0.0
  %161 = vmatpush1.msra.mxu0 0.0
  %162 = vmatprep.subr.mxu0 0.0
  %163 = vmatpush1.msra.mxu0 0.0
  %164 = vmatprep.subr.mxu0 0.0
  %165 = vmatpush1.msra.mxu0 0.0
  %166 = vmatprep.subr.mxu0 0.0
  %167 = vmatpush1.msra.mxu0 0.0
  %168 = vmatprep.subr.mxu0 0.0
  %169 = vmatpush1.msra.mxu0 0.0
  %170 = vmatprep.subr.mxu0 0.0
  %171 = vmatpush1.msra.mxu0 0.0
  %172 = vmatprep.subr.mxu0 0.0
  %173 = vmatpush1.msra.mxu0 0.0
  %174 = vmatprep.subr.mxu0 0.0
  %175 = vmatpush1.msra.mxu0 0.0
  %176 = vmatprep.subr.mxu0 0.0
  %177 = vmatpush1.msra.mxu0 0.0
  %178 = vmatprep.subr.mxu0 0.0
  %179 = vmatpush1.msra.mxu0 0.0
  %180 = vmatprep.subr.mxu0 0.0
  %181 = vmatpush1.msra.mxu0 0.0
  %182 = vmatprep.subr.mxu0 0.0
  %183 = vmatpush1.msra.mxu0 0.0
  %184 = vmatprep.mubr.f32.mxu0 0.0
  %185 = vmatmul.mubr.f32.gmra.mrb[0].mxu0 %v118
  %v186 = vpop.f32.mrb[0].mxu0
  %v187 = vadd.f32 0.0, %v186
  %v188 = vpop.f32.mrb[0].mxu0
  %189 = vdwg.mxu0
  %v190 = vadd.f32 %v100, %v187
  %v191 = vmul.f32 %v190, %v114
  %v192 = vxor.u32 %v191, 2147483648
  %v193 = vmul.f32 %v192, 1.442695
  %v194 = vpow.pop %v193
  %v195 = vadd.f32 %v194, 1.0
  %v196 = vrcp.pop %v195
  %v197 = vmul.f32 1.0, %v196
  %v198 = vmul.f32 %v197, %v114
  %v199 = vadd.f32 %v198, %v115
  %v200 = vmul.f32 %v199, 0.0
  %202 = vrot.lane.b32.xlu0 %v199, 32
  %v203 = vpop.permute.xlu0 %202
  %v205 = vmul.f32 %v199, %v203
  %207 = vrot.lane.b32.xlu0 %v205, 32
  %v208 = vpop.permute.xlu0 %207
  %v210 = vadd.f32 %v200, %v208
  %v211 = vtanh.pop %v210
  %213 = vrot.lane.b32.xlu0 %v211, 32
  %v214 = vpop.permute.xlu0 %213
  %v216 = vmul.f32 %v199, %v214
  %218 = vrot.lane.b32.xlu0 %v216, 64
  %v219 = vpop.permute.xlu0 %218
  %v220 = vsel %vm116, %v219, 0
  %222 = vmatprep.subr.mxu0 0.0
  %223 = vmatpush1.msra.mxu0 %v21
  %224 = vmatprep.subr.mxu0 0.0
  %225 = vmatpush1.msra.mxu0 %v22
  %226 = vmatprep.subr.mxu0 0.0
  %227 = vmatpush1.msra.mxu0 %v23
  %228 = vmatprep.subr.mxu0 0.0
  %229 = vmatpush1.msra.mxu0 %v24
  %230 = vmatprep.subr.mxu0 0.0
  %231 = vmatpush1.msra.mxu0 0.0
  %232 = vmatprep.subr.mxu0 0.0
  %233 = vmatpush1.msra.mxu0 0.0
  %234 = vmatprep.subr.mxu0 0.0
  %235 = vmatpush1.msra.mxu0 0.0
  %236 = vmatprep.subr.mxu0 0.0
  %237 = vmatpush1.msra.mxu0 0.0
  %238 = vmatprep.subr.mxu0 0.0
  %239 = vmatpush1.msra.mxu0 0.0
  %240 = vmatprep.subr.mxu0 0.0
  %241 = vmatpush1.msra.mxu0 0.0
  %242 = vmatprep.subr.mxu0 0.0
  %243 = vmatpush1.msra.mxu0 0.0
  %244 = vmatprep.subr.mxu0 0.0
  %245 = vmatpush1.msra.mxu0 0.0
  %246 = vmatprep.subr.mxu0 0.0
  %247 = vmatpush1.msra.mxu0 0.0
  %248 = vmatprep.subr.mxu0 0.0
  %249 = vmatpush1.msra.mxu0 0.0
  %250 = vmatprep.subr.mxu0 0.0
  %251 = vmatpush1.msra.mxu0 0.0
  %252 = vmatprep.subr.mxu0 0.0
  %253 = vmatpush1.msra.mxu0 0.0
  %254 = vmatprep.subr.mxu0 0.0
  %255 = vmatpush1.msra.mxu0 0.0
  %256 = vmatprep.subr.mxu0 0.0
  %257 = vmatpush1.msra.mxu0 0.0
  %258 = vmatprep.subr.mxu0 0.0
  %259 = vmatpush1.msra.mxu0 0.0
  %260 = vmatprep.subr.mxu0 0.0
  %261 = vmatpush1.msra.mxu0 0.0
  %262 = vmatprep.subr.mxu0 0.0
  %263 = vmatpush1.msra.mxu0 0.0
  %264 = vmatprep.subr.mxu0 0.0
  %265 = vmatpush1.msra.mxu0 0.0
  %266 = vmatprep.subr.mxu0 0.0
  %267 = vmatpush1.msra.mxu0 0.0
  %268 = vmatprep.subr.mxu0 0.0
  %269 = vmatpush1.msra.mxu0 0.0
  %270 = vmatprep.subr.mxu0 0.0
  %271 = vmatpush1.msra.mxu0 0.0
  %272 = vmatprep.subr.mxu0 0.0
  %273 = vmatpush1.msra.mxu0 0.0
  %274 = vmatprep.subr.mxu0 0.0
  %275 = vmatpush1.msra.mxu0 0.0
  %276 = vmatprep.subr.mxu0 0.0
  %277 = vmatpush1.msra.mxu0 0.0
  %278 = vmatprep.subr.mxu0 0.0
  %279 = vmatpush1.msra.mxu0 0.0
  %280 = vmatprep.subr.mxu0 0.0
  %281 = vmatpush1.msra.mxu0 0.0
  %282 = vmatprep.subr.mxu0 0.0
  %283 = vmatpush1.msra.mxu0 0.0
  %284 = vmatprep.subr.mxu0 0.0
  %285 = vmatpush1.msra.mxu0 0.0
  %286 = vmatprep.mubr.f32.mxu0 0.0
  %287 = vmatmul.mubr.f32.gmra.mrb[0].mxu0 %v220
  %v288 = vpop.f32.mrb[0].mxu0
  %v289 = vadd.f32 0.0, %v288
  %v290 = vpop.f32.mrb[0].mxu0
  %291 = vdwg.mxu0
  %292 = vmatprep.subr.mxu0 0.0
  %293 = vmatpush1.msra.mxu0 %v25
  %294 = vmatprep.subr.mxu0 0.0
  %295 = vmatpush1.msra.mxu0 %v26
  %296 = vmatprep.subr.mxu0 0.0
  %297 = vmatpush1.msra.mxu0 %v27
  %298 = vmatprep.subr.mxu0 0.0
  %299 = vmatpush1.msra.mxu0 %v28
  %300 = vmatprep.subr.mxu0 0.0
  %301 = vmatpush1.msra.mxu0 0.0
  %302 = vmatprep.subr.mxu0 0.0
  %303 = vmatpush1.msra.mxu0 0.0
  %304 = vmatprep.subr.mxu0 0.0
  %305 = vmatpush1.msra.mxu0 0.0
  %306 = vmatprep.subr.mxu0 0.0
  %307 = vmatpush1.msra.mxu0 0.0
  %308 = vmatprep.subr.mxu0 0.0
  %309 = vmatpush1.msra.mxu0 0.0
  %310 = vmatprep.subr.mxu0 0.0
  %311 = vmatpush1.msra.mxu0 0.0
  %312 = vmatprep.subr.mxu0 0.0
  %313 = vmatpush1.msra.mxu0 0.0
  %314 = vmatprep.subr.mxu0 0.0
  %315 = vmatpush1.msra.mxu0 0.0
  %316 = vmatprep.subr.mxu0 0.0
  %317 = vmatpush1.msra.mxu0 0.0
  %318 = vmatprep.subr.mxu0 0.0
  %319 = vmatpush1.msra.mxu0 0.0
  %320 = vmatprep.subr.mxu0 0.0
  %321 = vmatpush1.msra.mxu0 0.0
  %322 = vmatprep.subr.mxu0 0.0
  %323 = vmatpush1.msra.mxu0 0.0
  %324 = vmatprep.subr.mxu0 0.0
  %325 = vmatpush1.msra.mxu0 0.0
  %326 = vmatprep.subr.mxu0 0.0
  %327 = vmatpush1.msra.mxu0 0.0
  %328 = vmatprep.subr.mxu0 0.0
  %329 = vmatpush1.msra.mxu0 0.0
  %330 = vmatprep.subr.mxu0 0.0
  %331 = vmatpush1.msra.mxu0 0.0
  %332 = vmatprep.subr.mxu0 0.0
  %333 = vmatpush1.msra.mxu0 0.0
  %334 = vmatprep.subr.mxu0 0.0
  %335 = vmatpush1.msra.mxu0 0.0
  %336 = vmatprep.subr.mxu0 0.0
  %337 = vmatpush1.msra.mxu0 0.0
  %338 = vmatprep.subr.mxu0 0.0
  %339 = vmatpush1.msra.mxu0 0.0
  %340 = vmatprep.subr.mxu0 0.0
  %341 = vmatpush1.msra.mxu0 0.0
  %342 = vmatprep.subr.mxu0 0.0
  %343 = vmatpush1.msra.mxu0 0.0
  %344 = vmatprep.subr.mxu0 0.0
  %345 = vmatpush1.msra.mxu0 0.0
  %346 = vmatprep.subr.mxu0 0.0
  %347 = vmatpush1.msra.mxu0 0.0
  %348 = vmatprep.subr.mxu0 0.0
  %349 = vmatpush1.msra.mxu0 0.0
  %350 = vmatprep.subr.mxu0 0.0
  %351 = vmatpush1.msra.mxu0 0.0
  %352 = vmatprep.subr.mxu0 0.0
  %353 = vmatpush1.msra.mxu0 0.0
  %354 = vmatprep.subr.mxu0 0.0
  %355 = vmatpush1.msra.mxu0 0.0
  %356 = vmatprep.mubr.f32.mxu0 0.0
  %357 = vmatmul.mubr.f32.gmra.mrb[0].mxu0 %v118
  %v358 = vpop.f32.mrb[0].mxu0
  %v359 = vadd.f32 %v289, %v358
  %v360 = vpop.f32.mrb[0].mxu0
  %361 = vdwg.mxu0
  %v362 = vlaneseq
  %v363 = vshrl.u32 %v362, 7
  %v364 = vsub.s32 0, %v363
  %v365 = vrot.slane %v16, %v364
  %v366 = vadd.f32 %v359, %v365
  %v367 = vmul.f32 %v366, %v114
  %v368 = vxor.u32 %v367, 2147483648
  %v369 = vmul.f32 %v368, 1.442695
  %v370 = vpow.pop %v369
  %v371 = vadd.f32 %v370, 1.0
  %v372 = vrcp.pop %v371
  %v373 = vmul.f32 1.0, %v372
  %v374 = vmul.f32 %v373, %v114
  %v375 = vadd.f32 %v374, %v115
  %v376 = vmul.f32 %v375, 0.0
  %378 = vrot.lane.b32.xlu0 %v375, 32
  %v379 = vpop.permute.xlu0 %378
  %v381 = vmul.f32 %v375, %v379
  %383 = vrot.lane.b32.xlu0 %v381, 32
  %v384 = vpop.permute.xlu0 %383
  %v386 = vadd.f32 %v376, %v384
  %v387 = vtanh.pop %v386
  %389 = vrot.lane.b32.xlu0 %v387, 32
  %v390 = vpop.permute.xlu0 %389
  %v392 = vmul.f32 %v375, %v390
  %393 = vmatprep.subr.mxu0 0.0
  %394 = vmatpush1.msra.mxu0 %v17
  %395 = vmatprep.subr.mxu0 0.0
  %396 = vmatpush1.msra.mxu0 %v18
  %397 = vmatprep.subr.mxu0 0.0
  %398 = vmatpush1.msra.mxu0 %v19
  %399 = vmatprep.subr.mxu0 0.0
  %400 = vmatpush1.msra.mxu0 %v20
  %401 = vmatprep.subr.mxu0 0.0
  %402 = vmatpush1.msra.mxu0 0.0
  %403 = vmatprep.subr.mxu0 0.0
  %404 = vmatpush1.msra.mxu0 0.0
  %405 = vmatprep.subr.mxu0 0.0
  %406 = vmatpush1.msra.mxu0 0.0
  %407 = vmatprep.subr.mxu0 0.0
  %408 = vmatpush1.msra.mxu0 0.0
  %409 = vmatprep.subr.mxu0 0.0
  %410 = vmatpush1.msra.mxu0 0.0
  %411 = vmatprep.subr.mxu0 0.0
  %412 = vmatpush1.msra.mxu0 0.0
  %413 = vmatprep.subr.mxu0 0.0
  %414 = vmatpush1.msra.mxu0 0.0
  %415 = vmatprep.subr.mxu0 0.0
  %416 = vmatpush1.msra.mxu0 0.0
  %417 = vmatprep.subr.mxu0 0.0
  %418 = vmatpush1.msra.mxu0 0.0
  %419 = vmatprep.subr.mxu0 0.0
  %420 = vmatpush1.msra.mxu0 0.0
  %421 = vmatprep.subr.mxu0 0.0
  %422 = vmatpush1.msra.mxu0 0.0
  %423 = vmatprep.subr.mxu0 0.0
  %424 = vmatpush1.msra.mxu0 0.0
  %425 = vmatprep.subr.mxu0 0.0
  %426 = vmatpush1.msra.mxu0 0.0
  %427 = vmatprep.subr.mxu0 0.0
  %428 = vmatpush1.msra.mxu0 0.0
  %429 = vmatprep.subr.mxu0 0.0
  %430 = vmatpush1.msra.mxu0 0.0
  %431 = vmatprep.subr.mxu0 0.0
  %432 = vmatpush1.msra.mxu0 0.0
  %433 = vmatprep.subr.mxu0 0.0
  %434 = vmatpush1.msra.mxu0 0.0
  %435 = vmatprep.subr.mxu0 0.0
  %436 = vmatpush1.msra.mxu0 0.0
  %437 = vmatprep.subr.mxu0 0.0
  %438 = vmatpush1.msra.mxu0 0.0
  %439 = vmatprep.subr.mxu0 0.0
  %440 = vmatpush1.msra.mxu0 0.0
  %441 = vmatprep.subr.mxu0 0.0
  %442 = vmatpush1.msra.mxu0 0.0
  %443 = vmatprep.subr.mxu0 0.0
  %444 = vmatpush1.msra.mxu0 0.0
  %445 = vmatprep.subr.mxu0 0.0
  %446 = vmatpush1.msra.mxu0 0.0
  %447 = vmatprep.subr.mxu0 0.0
  %448 = vmatpush1.msra.mxu0 0.0
  %449 = vmatprep.subr.mxu0 0.0
  %450 = vmatpush1.msra.mxu0 0.0
  %451 = vmatprep.subr.mxu0 0.0
  %452 = vmatpush1.msra.mxu0 0.0
  %453 = vmatprep.subr.mxu0 0.0
  %454 = vmatpush1.msra.mxu0 0.0
  %455 = vmatprep.subr.mxu0 0.0
  %456 = vmatpush1.msra.mxu0 0.0
  %457 = vmatprep.mubr.f32.mxu0 0.0
  %458 = vmatmul.mubr.f32.gmra.mrb[0].mxu0 %v220
  %v459 = vpop.f32.mrb[0].mxu0
  %v460 = vadd.f32 0.0, %v459
  %v461 = vpop.f32.mrb[0].mxu0
  %462 = vdwg.mxu0
  %v463 = vadd.f32 %v101, %v460
  %v464 = vmul.f32 %v463, %v114
  %v465 = vxor.u32 %v464, 2147483648
  %v466 = vmul.f32 %v465, 1.442695
  %v467 = vpow.pop %v466
  %v468 = vadd.f32 %v467, 1.0
  %v469 = vrcp.pop %v468
  %v470 = vmul.f32 1.0, %v469
  %v471 = vmul.f32 %v470, %v114
  %v472 = vadd.f32 %v471, %v115
  %v473 = vmul.f32 %v472, %v210
  %475 = vrot.lane.b32.xlu0 %v472, 32
  %v476 = vpop.permute.xlu0 %475
  %v478 = vmul.f32 %v472, %v476
  %480 = vrot.lane.b32.xlu0 %v478, 32
  %v481 = vpop.permute.xlu0 %480
  %v483 = vadd.f32 %v473, %v481
  %v484 = vtanh.pop %v483
  %486 = vrot.lane.b32.xlu0 %v484, 32
  %v487 = vpop.permute.xlu0 %486
  %v489 = vmul.f32 %v472, %v487
  %491 = vrot.lane.b32.xlu0 %v489, 64
  %v492 = vpop.permute.xlu0 %491
  %v493 = vsel %vm116, %v492, 0
  %495 = vmatprep.subr.mxu0 0.0
  %496 = vmatpush1.msra.mxu0 %v21
  %497 = vmatprep.subr.mxu0 0.0
  %498 = vmatpush1.msra.mxu0 %v22
  %499 = vmatprep.subr.mxu0 0.0
  %500 = vmatpush1.msra.mxu0 %v23
  %501 = vmatprep.subr.mxu0 0.0
  %502 = vmatpush1.msra.mxu0 %v24
  %503 = vmatprep.subr.mxu0 0.0
  %504 = vmatpush1.msra.mxu0 0.0
  %505 = vmatprep.subr.mxu0 0.0
  %506 = vmatpush1.msra.mxu0 0.0
  %507 = vmatprep.subr.mxu0 0.0
  %508 = vmatpush1.msra.mxu0 0.0
  %509 = vmatprep.subr.mxu0 0.0
  %510 = vmatpush1.msra.mxu0 0.0
  %511 = vmatprep.subr.mxu0 0.0
  %512 = vmatpush1.msra.mxu0 0.0
  %513 = vmatprep.subr.mxu0 0.0
  %514 = vmatpush1.msra.mxu0 0.0
  %515 = vmatprep.subr.mxu0 0.0
  %516 = vmatpush1.msra.mxu0 0.0
  %517 = vmatprep.subr.mxu0 0.0
  %518 = vmatpush1.msra.mxu0 0.0
  %519 = vmatprep.subr.mxu0 0.0
  %520 = vmatpush1.msra.mxu0 0.0
  %521 = vmatprep.subr.mxu0 0.0
  %522 = vmatpush1.msra.mxu0 0.0
  %523 = vmatprep.subr.mxu0 0.0
  %524 = vmatpush1.msra.mxu0 0.0
  %525 = vmatprep.subr.mxu0 0.0
  %526 = vmatpush1.msra.mxu0 0.0
  %527 = vmatprep.subr.mxu0 0.0
  %528 = vmatpush1.msra.mxu0 0.0
  %529 = vmatprep.subr.mxu0 0.0
  %530 = vmatpush1.msra.mxu0 0.0
  %531 = vmatprep.subr.mxu0 0.0
  %532 = vmatpush1.msra.mxu0 0.0
  %533 = vmatprep.subr.mxu0 0.0
  %534 = vmatpush1.msra.mxu0 0.0
  %535 = vmatprep.subr.mxu0 0.0
  %536 = vmatpush1.msra.mxu0 0.0
  %537 = vmatprep.subr.mxu0 0.0
  %538 = vmatpush1.msra.mxu0 0.0
  %539 = vmatprep.subr.mxu0 0.0
  %540 = vmatpush1.msra.mxu0 0.0
  %541 = vmatprep.subr.mxu0 0.0
  %542 = vmatpush1.msra.mxu0 0.0
  %543 = vmatprep.subr.mxu0 0.0
  %544 = vmatpush1.msra.mxu0 0.0
  %545 = vmatprep.subr.mxu0 0.0
  %546 = vmatpush1.msra.mxu0 0.0
  %547 = vmatprep.subr.mxu0 0.0
  %548 = vmatpush1.msra.mxu0 0.0
  %549 = vmatprep.subr.mxu0 0.0
  %550 = vmatpush1.msra.mxu0 0.0
  %551 = vmatprep.subr.mxu0 0.0
  %552 = vmatpush1.msra.mxu0 0.0
  %553 = vmatprep.subr.mxu0 0.0
  %554 = vmatpush1.msra.mxu0 0.0
  %555 = vmatprep.subr.mxu0 0.0
  %556 = vmatpush1.msra.mxu0 0.0
  %557 = vmatprep.subr.mxu0 0.0
  %558 = vmatpush1.msra.mxu0 0.0
  %559 = vmatprep.mubr.f32.mxu0 0.0
  %560 = vmatmul.mubr.f32.gmra.mrb[0].mxu0 %v493
  %v561 = vpop.f32.mrb[0].mxu0
  %v562 = vadd.f32 0.0, %v561
  %v563 = vpop.f32.mrb[0].mxu0
  %564 = vdwg.mxu0
  %566 = vrot.lane.b32.xlu0 %v392, 64
  %v567 = vpop.permute.xlu0 %566
  %v568 = vsel %vm116, %v567, 0
  %570 = vmatprep.subr.mxu0 0.0
  %571 = vmatpush1.msra.mxu0 %v25
  %572 = vmatprep.subr.mxu0 0.0
  %573 = vmatpush1.msra.mxu0 %v26
  %574 = vmatprep.subr.mxu0 0.0
  %575 = vmatpush1.msra.mxu0 %v27
  %576 = vmatprep.subr.mxu0 0.0
  %577 = vmatpush1.msra.mxu0 %v28
  %578 = vmatprep.subr.mxu0 0.0
  %579 = vmatpush1.msra.mxu0 0.0
  %580 = vmatprep.subr.mxu0 0.0
  %581 = vmatpush1.msra.mxu0 0.0
  %582 = vmatprep.subr.mxu0 0.0
  %583 = vmatpush1.msra.mxu0 0.0
  %584 = vmatprep.subr.mxu0 0.0
  %585 = vmatpush1.msra.mxu0 0.0
  %586 = vmatprep.subr.mxu0 0.0
  %587 = vmatpush1.msra.mxu0 0.0
  %588 = vmatprep.subr.mxu0 0.0
  %589 = vmatpush1.msra.mxu0 0.0
  %590 = vmatprep.subr.mxu0 0.0
  %591 = vmatpush1.msra.mxu0 0.0
  %592 = vmatprep.subr.mxu0 0.0
  %593 = vmatpush1.msra.mxu0 0.0
  %594 = vmatprep.subr.mxu0 0.0
  %595 = vmatpush1.msra.mxu0 0.0
  %596 = vmatprep.subr.mxu0 0.0
  %597 = vmatpush1.msra.mxu0 0.0
  %598 = vmatprep.subr.mxu0 0.0
  %599 = vmatpush1.msra.mxu0 0.0
  %600 = vmatprep.subr.mxu0 0.0
  %601 = vmatpush1.msra.mxu0 0.0
  %602 = vmatprep.subr.mxu0 0.0
  %603 = vmatpush1.msra.mxu0 0.0
  %604 = vmatprep.subr.mxu0 0.0
  %605 = vmatpush1.msra.mxu0 0.0
  %606 = vmatprep.subr.mxu0 0.0
  %607 = vmatpush1.msra.mxu0 0.0
  %608 = vmatprep.subr.mxu0 0.0
  %609 = vmatpush1.msra.mxu0 0.0
  %610 = vmatprep.subr.mxu0 0.0
  %611 = vmatpush1.msra.mxu0 0.0
  %612 = vmatprep.subr.mxu0 0.0
  %613 = vmatpush1.msra.mxu0 0.0
  %614 = vmatprep.subr.mxu0 0.0
  %615 = vmatpush1.msra.mxu0 0.0
  %616 = vmatprep.subr.mxu0 0.0
  %617 = vmatpush1.msra.mxu0 0.0
  %618 = vmatprep.subr.mxu0 0.0
  %619 = vmatpush1.msra.mxu0 0.0
  %620 = vmatprep.subr.mxu0 0.0
  %621 = vmatpush1.msra.mxu0 0.0
  %622 = vmatprep.subr.mxu0 0.0
  %623 = vmatpush1.msra.mxu0 0.0
  %624 = vmatprep.subr.mxu0 0.0
  %625 = vmatpush1.msra.mxu0 0.0
  %626 = vmatprep.subr.mxu0 0.0
  %627 = vmatpush1.msra.mxu0 0.0
  %628 = vmatprep.subr.mxu0 0.0
  %629 = vmatpush1.msra.mxu0 0.0
  %630 = vmatprep.subr.mxu0 0.0
  %631 = vmatpush1.msra.mxu0 0.0
  %632 = vmatprep.subr.mxu0 0.0
  %633 = vmatpush1.msra.mxu0 0.0
  %634 = vmatprep.mubr.f32.mxu0 0.0
  %635 = vmatmul.mubr.f32.gmra.mrb[0].mxu0 %v568
  %v636 = vpop.f32.mrb[0].mxu0
  %v637 = vadd.f32 %v562, %v636
  %v638 = vpop.f32.mrb[0].mxu0
  %639 = vdwg.mxu0
  %v640 = vadd.f32 %v637, %v365
  %v641 = vmul.f32 %v640, %v114
  %v642 = vxor.u32 %v641, 2147483648
  %v643 = vmul.f32 %v642, 1.442695
  %v644 = vpow.pop %v643
  %v645 = vadd.f32 %v644, 1.0
  %v646 = vrcp.pop %v645
  %v647 = vmul.f32 1.0, %v646
  %v648 = vmul.f32 %v647, %v114
  %v649 = vadd.f32 %v648, %v115
  %v650 = vmul.f32 %v649, %v386
  %652 = vrot.lane.b32.xlu0 %v649, 32
  %v653 = vpop.permute.xlu0 %652
  %v655 = vmul.f32 %v649, %v653
  %657 = vrot.lane.b32.xlu0 %v655, 32
  %v658 = vpop.permute.xlu0 %657
  %v660 = vadd.f32 %v650, %v658
  %v661 = vtanh.pop %v660
  %663 = vrot.lane.b32.xlu0 %v661, 32
  %v664 = vpop.permute.xlu0 %663
  %v666 = vmul.f32 %v649, %v664
  %667 = vmatprep.subr.mxu0 0.0
  %668 = vmatpush1.msra.mxu0 %v17
  %669 = vmatprep.subr.mxu0 0.0
  %670 = vmatpush1.msra.mxu0 %v18
  %671 = vmatprep.subr.mxu0 0.0
  %672 = vmatpush1.msra.mxu0 %v19
  %673 = vmatprep.subr.mxu0 0.0
  %674 = vmatpush1.msra.mxu0 %v20
  %675 = vmatprep.subr.mxu0 0.0
  %676 = vmatpush1.msra.mxu0 0.0
  %677 = vmatprep.subr.mxu0 0.0
  %678 = vmatpush1.msra.mxu0 0.0
  %679 = vmatprep.subr.mxu0 0.0
  %680 = vmatpush1.msra.mxu0 0.0
  %681 = vmatprep.subr.mxu0 0.0
  %682 = vmatpush1.msra.mxu0 0.0
  %683 = vmatprep.subr.mxu0 0.0
  %684 = vmatpush1.msra.mxu0 0.0
  %685 = vmatprep.subr.mxu0 0.0
  %686 = vmatpush1.msra.mxu0 0.0
  %687 = vmatprep.subr.mxu0 0.0
  %688 = vmatpush1.msra.mxu0 0.0
  %689 = vmatprep.subr.mxu0 0.0
  %690 = vmatpush1.msra.mxu0 0.0
  %691 = vmatprep.subr.mxu0 0.0
  %692 = vmatpush1.msra.mxu0 0.0
  %693 = vmatprep.subr.mxu0 0.0
  %694 = vmatpush1.msra.mxu0 0.0
  %695 = vmatprep.subr.mxu0 0.0
  %696 = vmatpush1.msra.mxu0 0.0
  %697 = vmatprep.subr.mxu0 0.0
  %698 = vmatpush1.msra.mxu0 0.0
  %699 = vmatprep.subr.mxu0 0.0
  %700 = vmatpush1.msra.mxu0 0.0
  %701 = vmatprep.subr.mxu0 0.0
  %702 = vmatpush1.msra.mxu0 0.0
  %703 = vmatprep.subr.mxu0 0.0
  %704 = vmatpush1.msra.mxu0 0.0
  %705 = vmatprep.subr.mxu0 0.0
  %706 = vmatpush1.msra.mxu0 0.0
  %707 = vmatprep.subr.mxu0 0.0
  %708 = vmatpush1.msra.mxu0 0.0
  %709 = vmatprep.subr.mxu0 0.0
  %710 = vmatpush1.msra.mxu0 0.0
  %711 = vmatprep.subr.mxu0 0.0
  %712 = vmatpush1.msra.mxu0 0.0
  %713 = vmatprep.subr.mxu0 0.0
  %714 = vmatpush1.msra.mxu0 0.0
  %715 = vmatprep.subr.mxu0 0.0
  %716 = vmatpush1.msra.mxu0 0.0
  %717 = vmatprep.subr.mxu0 0.0
  %718 = vmatpush1.msra.mxu0 0.0
  %719 = vmatprep.subr.mxu0 0.0
  %720 = vmatpush1.msra.mxu0 0.0
  %721 = vmatprep.subr.mxu0 0.0
  %722 = vmatpush1.msra.mxu0 0.0
  %723 = vmatprep.subr.mxu0 0.0
  %724 = vmatpush1.msra.mxu0 0.0
  %725 = vmatprep.subr.mxu0 0.0
  %726 = vmatpush1.msra.mxu0 0.0
  %727 = vmatprep.subr.mxu0 0.0
  %728 = vmatpush1.msra.mxu0 0.0
  %729 = vmatprep.subr.mxu0 0.0
  %730 = vmatpush1.msra.mxu0 0.0
  %731 = vmatprep.mubr.f32.mxu0 0.0
  %732 = vmatmul.mubr.f32.gmra.mrb[0].mxu0 %v493
  %v733 = vpop.f32.mrb[0].mxu0
  %v734 = vadd.f32 0.0, %v733
  %v735 = vpop.f32.mrb[0].mxu0
  %736 = vdwg.mxu0
  %v737 = vadd.f32 %v102, %v734
  %v738 = vmul.f32 %v737, %v114
  %v739 = vxor.u32 %v738, 2147483648
  %v740 = vmul.f32 %v739, 1.442695
  %v741 = vpow.pop %v740
  %v742 = vadd.f32 %v741, 1.0
  %v743 = vrcp.pop %v742
  %v744 = vmul.f32 1.0, %v743
  %v745 = vmul.f32 %v744, %v114
  %v746 = vadd.f32 %v745, %v115
  %v747 = vmul.f32 %v746, %v483
  %749 = vrot.lane.b32.xlu0 %v746, 32
  %v750 = vpop.permute.xlu0 %749
  %v752 = vmul.f32 %v746, %v750
  %754 = vrot.lane.b32.xlu0 %v752, 32
  %v755 = vpop.permute.xlu0 %754
  %v757 = vadd.f32 %v747, %v755
  %v758 = vtanh.pop %v757
  %760 = vrot.lane.b32.xlu0 %v758, 32
  %v761 = vpop.permute.xlu0 %760
  %v763 = vmul.f32 %v746, %v761
  %765 = vrot.lane.b32.xlu0 %v763, 64
  %v766 = vpop.permute.xlu0 %765
  %v767 = vsel %vm116, %v766, 0
  %769 = vmatprep.subr.mxu0 0.0
  %770 = vmatpush1.msra.mxu0 %v21
  %771 = vmatprep.subr.mxu0 0.0
  %772 = vmatpush1.msra.mxu0 %v22
  %773 = vmatprep.subr.mxu0 0.0
  %774 = vmatpush1.msra.mxu0 %v23
  %775 = vmatprep.subr.mxu0 0.0
  %776 = vmatpush1.msra.mxu0 %v24
  %777 = vmatprep.subr.mxu0 0.0
  %778 = vmatpush1.msra.mxu0 0.0
  %779 = vmatprep.subr.mxu0 0.0
  %780 = vmatpush1.msra.mxu0 0.0
  %781 = vmatprep.subr.mxu0 0.0
  %782 = vmatpush1.msra.mxu0 0.0
  %783 = vmatprep.subr.mxu0 0.0
  %784 = vmatpush1.msra.mxu0 0.0
  %785 = vmatprep.subr.mxu0 0.0
  %786 = vmatpush1.msra.mxu0 0.0
  %787 = vmatprep.subr.mxu0 0.0
  %788 = vmatpush1.msra.mxu0 0.0
  %789 = vmatprep.subr.mxu0 0.0
  %790 = vmatpush1.msra.mxu0 0.0
  %791 = vmatprep.subr.mxu0 0.0
  %792 = vmatpush1.msra.mxu0 0.0
  %793 = vmatprep.subr.mxu0 0.0
  %794 = vmatpush1.msra.mxu0 0.0
  %795 = vmatprep.subr.mxu0 0.0
  %796 = vmatpush1.msra.mxu0 0.0
  %797 = vmatprep.subr.mxu0 0.0
  %798 = vmatpush1.msra.mxu0 0.0
  %799 = vmatprep.subr.mxu0 0.0
  %800 = vmatpush1.msra.mxu0 0.0
  %801 = vmatprep.subr.mxu0 0.0
  %802 = vmatpush1.msra.mxu0 0.0
  %803 = vmatprep.subr.mxu0 0.0
  %804 = vmatpush1.msra.mxu0 0.0
  %805 = vmatprep.subr.mxu0 0.0
  %806 = vmatpush1.msra.mxu0 0.0
  %807 = vmatprep.subr.mxu0 0.0
  %808 = vmatpush1.msra.mxu0 0.0
  %809 = vmatprep.subr.mxu0 0.0
  %810 = vmatpush1.msra.mxu0 0.0
  %811 = vmatprep.subr.mxu0 0.0
  %812 = vmatpush1.msra.mxu0 0.0
  %813 = vmatprep.subr.mxu0 0.0
  %814 = vmatpush1.msra.mxu0 0.0
  %815 = vmatprep.subr.mxu0 0.0
  %816 = vmatpush1.msra.mxu0 0.0
  %817 = vmatprep.subr.mxu0 0.0
  %818 = vmatpush1.msra.mxu0 0.0
  %819 = vmatprep.subr.mxu0 0.0
  %820 = vmatpush1.msra.mxu0 0.0
  %821 = vmatprep.subr.mxu0 0.0
  %822 = vmatpush1.msra.mxu0 0.0
  %823 = vmatprep.subr.mxu0 0.0
  %824 = vmatpush1.msra.mxu0 0.0
  %825 = vmatprep.subr.mxu0 0.0
  %826 = vmatpush1.msra.mxu0 0.0
  %827 = vmatprep.subr.mxu0 0.0
  %828 = vmatpush1.msra.mxu0 0.0
  %829 = vmatprep.subr.mxu0 0.0
  %830 = vmatpush1.msra.mxu0 0.0
  %831 = vmatprep.subr.mxu0 0.0
  %832 = vmatpush1.msra.mxu0 0.0
  %833 = vmatprep.mubr.f32.mxu0 0.0
  %834 = vmatmul.mubr.f32.gmra.mrb[0].mxu0 %v767
  %v835 = vpop.f32.mrb[0].mxu0
  %v836 = vadd.f32 0.0, %v835
  %v837 = vpop.f32.mrb[0].mxu0
  %838 = vdwg.mxu0
  %840 = vrot.lane.b32.xlu0 %v666, 64
  %v841 = vpop.permute.xlu0 %840
  %v842 = vsel %vm116, %v841, 0
  %844 = vmatprep.subr.mxu0 0.0
  %845 = vmatpush1.msra.mxu0 %v25
  %846 = vmatprep.subr.mxu0 0.0
  %847 = vmatpush1.msra.mxu0 %v26
  %848 = vmatprep.subr.mxu0 0.0
  %849 = vmatpush1.msra.mxu0 %v27
  %850 = vmatprep.subr.mxu0 0.0
  %851 = vmatpush1.msra.mxu0 %v28
  %852 = vmatprep.subr.mxu0 0.0
  %853 = vmatpush1.msra.mxu0 0.0
  %854 = vmatprep.subr.mxu0 0.0
  %855 = vmatpush1.msra.mxu0 0.0
  %856 = vmatprep.subr.mxu0 0.0
  %857 = vmatpush1.msra.mxu0 0.0
  %858 = vmatprep.subr.mxu0 0.0
  %859 = vmatpush1.msra.mxu0 0.0
  %860 = vmatprep.subr.mxu0 0.0
  %861 = vmatpush1.msra.mxu0 0.0
  %862 = vmatprep.subr.mxu0 0.0
  %863 = vmatpush1.msra.mxu0 0.0
  %864 = vmatprep.subr.mxu0 0.0
  %865 = vmatpush1.msra.mxu0 0.0
  %866 = vmatprep.subr.mxu0 0.0
  %867 = vmatpush1.msra.mxu0 0.0
  %868 = vmatprep.subr.mxu0 0.0
  %869 = vmatpush1.msra.mxu0 0.0
  %870 = vmatprep.subr.mxu0 0.0
  %871 = vmatpush1.msra.mxu0 0.0
  %872 = vmatprep.subr.mxu0 0.0
  %873 = vmatpush1.msra.mxu0 0.0
  %874 = vmatprep.subr.mxu0 0.0
  %875 = vmatpush1.msra.mxu0 0.0
  %876 = vmatprep.subr.mxu0 0.0
  %877 = vmatpush1.msra.mxu0 0.0
  %878 = vmatprep.subr.mxu0 0.0
  %879 = vmatpush1.msra.mxu0 0.0
  %880 = vmatprep.subr.mxu0 0.0
  %881 = vmatpush1.msra.mxu0 0.0
  %882 = vmatprep.subr.mxu0 0.0
  %883 = vmatpush1.msra.mxu0 0.0
  %884 = vmatprep.subr.mxu0 0.0
  %885 = vmatpush1.msra.mxu0 0.0
  %886 = vmatprep.subr.mxu0 0.0
  %887 = vmatpush1.msra.mxu0 0.0
  %888 = vmatprep.subr.mxu0 0.0
  %889 = vmatpush1.msra.mxu0 0.0
  %890 = vmatprep.subr.mxu0 0.0
  %891 = vmatpush1.msra.mxu0 0.0
  %892 = vmatprep.subr.mxu0 0.0
  %893 = vmatpush1.msra.mxu0 0.0
  %894 = vmatprep.subr.mxu0 0.0
  %895 = vmatpush1.msra.mxu0 0.0
  %896 = vmatprep.subr.mxu0 0.0
  %897 = vmatpush1.msra.mxu0 0.0
  %898 = vmatprep.subr.mxu0 0.0
  %899 = vmatpush1.msra.mxu0 0.0
  %900 = vmatprep.subr.mxu0 0.0
  %901 = vmatpush1.msra.mxu0 0.0
  %902 = vmatprep.subr.mxu0 0.0
  %903 = vmatpush1.msra.mxu0 0.0
  %904 = vmatprep.subr.mxu0 0.0
  %905 = vmatpush1.msra.mxu0 0.0
  %906 = vmatprep.subr.mxu0 0.0
  %907 = vmatpush1.msra.mxu0 0.0
  %908 = vmatprep.mubr.f32.mxu0 0.0
  %909 = vmatmul.mubr.f32.gmra.mrb[0].mxu0 %v842
  %v910 = vpop.f32.mrb[0].mxu0
  %v911 = vadd.f32 %v836, %v910
  %v912 = vpop.f32.mrb[0].mxu0
  %913 = vdwg.mxu0
  %v914 = vadd.f32 %v911, %v365
  %v915 = vmul.f32 %v914, %v114
  %v916 = vxor.u32 %v915, 2147483648
  %v917 = vmul.f32 %v916, 1.442695
  %v918 = vpow.pop %v917
  %v919 = vadd.f32 %v918, 1.0
  %v920 = vrcp.pop %v919
  %v921 = vmul.f32 1.0, %v920
  %v922 = vmul.f32 %v921, %v114
  %v923 = vadd.f32 %v922, %v115
  %v924 = vmul.f32 %v923, %v660
  %926 = vrot.lane.b32.xlu0 %v923, 32
  %v927 = vpop.permute.xlu0 %926
  %v929 = vmul.f32 %v923, %v927
  %931 = vrot.lane.b32.xlu0 %v929, 32
  %v932 = vpop.permute.xlu0 %931
  %v934 = vadd.f32 %v924, %v932
  %v935 = vtanh.pop %v934
  %937 = vrot.lane.b32.xlu0 %v935, 32
  %v938 = vpop.permute.xlu0 %937
  %v940 = vmul.f32 %v923, %v938
  %941 = vmatprep.subr.mxu0 0.0
  %942 = vmatpush1.msra.mxu0 %v17
  %943 = vmatprep.subr.mxu0 0.0
  %944 = vmatpush1.msra.mxu0 %v18
  %945 = vmatprep.subr.mxu0 0.0
  %946 = vmatpush1.msra.mxu0 %v19
  %947 = vmatprep.subr.mxu0 0.0
  %948 = vmatpush1.msra.mxu0 %v20
  %949 = vmatprep.subr.mxu0 0.0
  %950 = vmatpush1.msra.mxu0 0.0
  %951 = vmatprep.subr.mxu0 0.0
  %952 = vmatpush1.msra.mxu0 0.0
  %953 = vmatprep.subr.mxu0 0.0
  %954 = vmatpush1.msra.mxu0 0.0
  %955 = vmatprep.subr.mxu0 0.0
  %956 = vmatpush1.msra.mxu0 0.0
  %957 = vmatprep.subr.mxu0 0.0
  %958 = vmatpush1.msra.mxu0 0.0
  %959 = vmatprep.subr.mxu0 0.0
  %960 = vmatpush1.msra.mxu0 0.0
  %961 = vmatprep.subr.mxu0 0.0
  %962 = vmatpush1.msra.mxu0 0.0
  %963 = vmatprep.subr.mxu0 0.0
  %964 = vmatpush1.msra.mxu0 0.0
  %965 = vmatprep.subr.mxu0 0.0
  %966 = vmatpush1.msra.mxu0 0.0
  %967 = vmatprep.subr.mxu0 0.0
  %968 = vmatpush1.msra.mxu0 0.0
  %969 = vmatprep.subr.mxu0 0.0
  %970 = vmatpush1.msra.mxu0 0.0
  %971 = vmatprep.subr.mxu0 0.0
  %972 = vmatpush1.msra.mxu0 0.0
  %973 = vmatprep.subr.mxu0 0.0
  %974 = vmatpush1.msra.mxu0 0.0
  %975 = vmatprep.subr.mxu0 0.0
  %976 = vmatpush1.msra.mxu0 0.0
  %977 = vmatprep.subr.mxu0 0.0
  %978 = vmatpush1.msra.mxu0 0.0
  %979 = vmatprep.subr.mxu0 0.0
  %980 = vmatpush1.msra.mxu0 0.0
  %981 = vmatprep.subr.mxu0 0.0
  %982 = vmatpush1.msra.mxu0 0.0
  %983 = vmatprep.subr.mxu0 0.0
  %984 = vmatpush1.msra.mxu0 0.0
  %985 = vmatprep.subr.mxu0 0.0
  %986 = vmatpush1.msra.mxu0 0.0
  %987 = vmatprep.subr.mxu0 0.0
  %988 = vmatpush1.msra.mxu0 0.0
  %989 = vmatprep.subr.mxu0 0.0
  %990 = vmatpush1.msra.mxu0 0.0
  %991 = vmatprep.subr.mxu0 0.0
  %992 = vmatpush1.msra.mxu0 0.0
  %993 = vmatprep.subr.mxu0 0.0
  %994 = vmatpush1.msra.mxu0 0.0
  %995 = vmatprep.subr.mxu0 0.0
  %996 = vmatpush1.msra.mxu0 0.0
  %997 = vmatprep.subr.mxu0 0.0
  %998 = vmatpush1.msra.mxu0 0.0
  %999 = vmatprep.subr.mxu0 0.0
  %1000 = vmatpush1.msra.mxu0 0.0
  %1001 = vmatprep.subr.mxu0 0.0
  %1002 = vmatpush1.msra.mxu0 0.0
  %1003 = vmatprep.subr.mxu0 0.0
  %1004 = vmatpush1.msra.mxu0 0.0
  %1005 = vmatprep.mubr.f32.mxu0 0.0
  %1006 = vmatmul.mubr.f32.gmra.mrb[0].mxu0 %v767
  %v1007 = vpop.f32.mrb[0].mxu0
  %v1008 = vadd.f32 0.0, %v1007
  %v1009 = vpop.f32.mrb[0].mxu0
  %1010 = vdwg.mxu0
  %v1011 = vadd.f32 %v103, %v1008
  %v1012 = vmul.f32 %v1011, %v114
  %v1013 = vxor.u32 %v1012, 2147483648
  %v1014 = vmul.f32 %v1013, 1.442695
  %v1015 = vpow.pop %v1014
  %v1016 = vadd.f32 %v1015, 1.0
  %v1017 = vrcp.pop %v1016
  %v1018 = vmul.f32 1.0, %v1017
  %v1019 = vmul.f32 %v1018, %v114
  %v1020 = vadd.f32 %v1019, %v115
  %v1021 = vmul.f32 %v1020, %v757
  %1023 = vrot.lane.b32.xlu0 %v1020, 32
  %v1024 = vpop.permute.xlu0 %1023
  %v1026 = vmul.f32 %v1020, %v1024
  %1028 = vrot.lane.b32.xlu0 %v1026, 32
  %v1029 = vpop.permute.xlu0 %1028
  %v1031 = vadd.f32 %v1021, %v1029
  %v1032 = vtanh.pop %v1031
  %1034 = vrot.lane.b32.xlu0 %v1032, 32
  %v1035 = vpop.permute.xlu0 %1034
  %v1037 = vmul.f32 %v1020, %v1035
  %1039 = vrot.lane.b32.xlu0 %v1037, 64
  %v1040 = vpop.permute.xlu0 %1039
  %v1041 = vsel %vm116, %v1040, 0
  %1043 = vmatprep.subr.mxu0 0.0
  %1044 = vmatpush1.msra.mxu0 %v21
  %1045 = vmatprep.subr.mxu0 0.0
  %1046 = vmatpush1.msra.mxu0 %v22
  %1047 = vmatprep.subr.mxu0 0.0
  %1048 = vmatpush1.msra.mxu0 %v23
  %1049 = vmatprep.subr.mxu0 0.0
  %1050 = vmatpush1.msra.mxu0 %v24
  %1051 = vmatprep.subr.mxu0 0.0
  %1052 = vmatpush1.msra.mxu0 0.0
  %1053 = vmatprep.subr.mxu0 0.0
  %1054 = vmatpush1.msra.mxu0 0.0
  %1055 = vmatprep.subr.mxu0 0.0
  %1056 = vmatpush1.msra.mxu0 0.0
  %1057 = vmatprep.subr.mxu0 0.0
  %1058 = vmatpush1.msra.mxu0 0.0
  %1059 = vmatprep.subr.mxu0 0.0
  %1060 = vmatpush1.msra.mxu0 0.0
  %1061 = vmatprep.subr.mxu0 0.0
  %1062 = vmatpush1.msra.mxu0 0.0
  %1063 = vmatprep.subr.mxu0 0.0
  %1064 = vmatpush1.msra.mxu0 0.0
  %1065 = vmatprep.subr.mxu0 0.0
  %1066 = vmatpush1.msra.mxu0 0.0
  %1067 = vmatprep.subr.mxu0 0.0
  %1068 = vmatpush1.msra.mxu0 0.0
  %1069 = vmatprep.subr.mxu0 0.0
  %1070 = vmatpush1.msra.mxu0 0.0
  %1071 = vmatprep.subr.mxu0 0.0
  %1072 = vmatpush1.msra.mxu0 0.0
  %1073 = vmatprep.subr.mxu0 0.0
  %1074 = vmatpush1.msra.mxu0 0.0
  %1075 = vmatprep.subr.mxu0 0.0
  %1076 = vmatpush1.msra.mxu0 0.0
  %1077 = vmatprep.subr.mxu0 0.0
  %1078 = vmatpush1.msra.mxu0 0.0
  %1079 = vmatprep.subr.mxu0 0.0
  %1080 = vmatpush1.msra.mxu0 0.0
  %1081 = vmatprep.subr.mxu0 0.0
  %1082 = vmatpush1.msra.mxu0 0.0
  %1083 = vmatprep.subr.mxu0 0.0
  %1084 = vmatpush1.msra.mxu0 0.0
  %1085 = vmatprep.subr.mxu0 0.0
  %1086 = vmatpush1.msra.mxu0 0.0
  %1087 = vmatprep.subr.mxu0 0.0
  %1088 = vmatpush1.msra.mxu0 0.0
  %1089 = vmatprep.subr.mxu0 0.0
  %1090 = vmatpush1.msra.mxu0 0.0
  %1091 = vmatprep.subr.mxu0 0.0
  %1092 = vmatpush1.msra.mxu0 0.0
  %1093 = vmatprep.subr.mxu0 0.0
  %1094 = vmatpush1.msra.mxu0 0.0
  %1095 = vmatprep.subr.mxu0 0.0
  %1096 = vmatpush1.msra.mxu0 0.0
  %1097 = vmatprep.subr.mxu0 0.0
  %1098 = vmatpush1.msra.mxu0 0.0
  %1099 = vmatprep.subr.mxu0 0.0
  %1100 = vmatpush1.msra.mxu0 0.0
  %1101 = vmatprep.subr.mxu0 0.0
  %1102 = vmatpush1.msra.mxu0 0.0
  %1103 = vmatprep.subr.mxu0 0.0
  %1104 = vmatpush1.msra.mxu0 0.0
  %1105 = vmatprep.subr.mxu0 0.0
  %1106 = vmatpush1.msra.mxu0 0.0
  %1107 = vmatprep.mubr.f32.mxu0 0.0
  %1108 = vmatmul.mubr.f32.gmra.mrb[0].mxu0 %v1041
  %v1109 = vpop.f32.mrb[0].mxu0
  %v1110 = vadd.f32 0.0, %v1109
  %v1111 = vpop.f32.mrb[0].mxu0
  %1112 = vdwg.mxu0
  %1114 = vrot.lane.b32.xlu0 %v940, 64
  %v1115 = vpop.permute.xlu0 %1114
  %v1116 = vsel %vm116, %v1115, 0
  %1118 = vmatprep.subr.mxu0 0.0
  %1119 = vmatpush1.msra.mxu0 %v25
  %1120 = vmatprep.subr.mxu0 0.0
  %1121 = vmatpush1.msra.mxu0 %v26
  %1122 = vmatprep.subr.mxu0 0.0
  %1123 = vmatpush1.msra.mxu0 %v27
  %1124 = vmatprep.subr.mxu0 0.0
  %1125 = vmatpush1.msra.mxu0 %v28
  %1126 = vmatprep.subr.mxu0 0.0
  %1127 = vmatpush1.msra.mxu0 0.0
  %1128 = vmatprep.subr.mxu0 0.0
  %1129 = vmatpush1.msra.mxu0 0.0
  %1130 = vmatprep.subr.mxu0 0.0
  %1131 = vmatpush1.msra.mxu0 0.0
  %1132 = vmatprep.subr.mxu0 0.0
  %1133 = vmatpush1.msra.mxu0 0.0
  %1134 = vmatprep.subr.mxu0 0.0
  %1135 = vmatpush1.msra.mxu0 0.0
  %1136 = vmatprep.subr.mxu0 0.0
  %1137 = vmatpush1.msra.mxu0 0.0
  %1138 = vmatprep.subr.mxu0 0.0
  %1139 = vmatpush1.msra.mxu0 0.0
  %1140 = vmatprep.subr.mxu0 0.0
  %1141 = vmatpush1.msra.mxu0 0.0
  %1142 = vmatprep.subr.mxu0 0.0
  %1143 = vmatpush1.msra.mxu0 0.0
  %1144 = vmatprep.subr.mxu0 0.0
  %1145 = vmatpush1.msra.mxu0 0.0
  %1146 = vmatprep.subr.mxu0 0.0
  %1147 = vmatpush1.msra.mxu0 0.0
  %1148 = vmatprep.subr.mxu0 0.0
  %1149 = vmatpush1.msra.mxu0 0.0
  %1150 = vmatprep.subr.mxu0 0.0
  %1151 = vmatpush1.msra.mxu0 0.0
  %1152 = vmatprep.subr.mxu0 0.0
  %1153 = vmatpush1.msra.mxu0 0.0
  %1154 = vmatprep.subr.mxu0 0.0
  %1155 = vmatpush1.msra.mxu0 0.0
  %1156 = vmatprep.subr.mxu0 0.0
  %1157 = vmatpush1.msra.mxu0 0.0
  %1158 = vmatprep.subr.mxu0 0.0
  %1159 = vmatpush1.msra.mxu0 0.0
  %1160 = vmatprep.subr.mxu0 0.0
  %1161 = vmatpush1.msra.mxu0 0.0
  %1162 = vmatprep.subr.mxu0 0.0
  %1163 = vmatpush1.msra.mxu0 0.0
  %1164 = vmatprep.subr.mxu0 0.0
  %1165 = vmatpush1.msra.mxu0 0.0
  %1166 = vmatprep.subr.mxu0 0.0
  %1167 = vmatpush1.msra.mxu0 0.0
  %1168 = vmatprep.subr.mxu0 0.0
  %1169 = vmatpush1.msra.mxu0 0.0
  %1170 = vmatprep.subr.mxu0 0.0
  %1171 = vmatpush1.msra.mxu0 0.0
  %1172 = vmatprep.subr.mxu0 0.0
  %1173 = vmatpush1.msra.mxu0 0.0
  %1174 = vmatprep.subr.mxu0 0.0
  %1175 = vmatpush1.msra.mxu0 0.0
  %1176 = vmatprep.subr.mxu0 0.0
  %1177 = vmatpush1.msra.mxu0 0.0
  %1178 = vmatprep.subr.mxu0 0.0
  %1179 = vmatpush1.msra.mxu0 0.0
  %1180 = vmatprep.subr.mxu0 0.0
  %1181 = vmatpush1.msra.mxu0 0.0
  %1182 = vmatprep.mubr.f32.mxu0 0.0
  %1183 = vmatmul.mubr.f32.gmra.mrb[0].mxu0 %v1116
  %v1184 = vpop.f32.mrb[0].mxu0
  %v1185 = vadd.f32 %v1110, %v1184
  %v1186 = vpop.f32.mrb[0].mxu0
  %1187 = vdwg.mxu0
  %v1188 = vadd.f32 %v1185, %v365
  %v1189 = vmul.f32 %v1188, %v114
  %v1190 = vxor.u32 %v1189, 2147483648
  %v1191 = vmul.f32 %v1190, 1.442695
  %v1192 = vpow.pop %v1191
  %v1193 = vadd.f32 %v1192, 1.0
  %v1194 = vrcp.pop %v1193
  %v1195 = vmul.f32 1.0, %v1194
  %v1196 = vmul.f32 %v1195, %v114
  %v1197 = vadd.f32 %v1196, %v115
  %v1198 = vmul.f32 %v1197, %v934
  %1200 = vrot.lane.b32.xlu0 %v1197, 32
  %v1201 = vpop.permute.xlu0 %1200
  %v1203 = vmul.f32 %v1197, %v1201
  %1205 = vrot.lane.b32.xlu0 %v1203, 32
  %v1206 = vpop.permute.xlu0 %1205
  %v1208 = vadd.f32 %v1198, %v1206
  %v1209 = vtanh.pop %v1208
  %1211 = vrot.lane.b32.xlu0 %v1209, 32
  %v1212 = vpop.permute.xlu0 %1211
  %v1214 = vmul.f32 %v1197, %v1212
  %1215 = vmatprep.subr.mxu0 0.0
  %1216 = vmatpush1.msra.mxu0 %v17
  %1217 = vmatprep.subr.mxu0 0.0
  %1218 = vmatpush1.msra.mxu0 %v18
  %1219 = vmatprep.subr.mxu0 0.0
  %1220 = vmatpush1.msra.mxu0 %v19
  %1221 = vmatprep.subr.mxu0 0.0
  %1222 = vmatpush1.msra.mxu0 %v20
  %1223 = vmatprep.subr.mxu0 0.0
  %1224 = vmatpush1.msra.mxu0 0.0
  %1225 = vmatprep.subr.mxu0 0.0
  %1226 = vmatpush1.msra.mxu0 0.0
  %1227 = vmatprep.subr.mxu0 0.0
  %1228 = vmatpush1.msra.mxu0 0.0
  %1229 = vmatprep.subr.mxu0 0.0
  %1230 = vmatpush1.msra.mxu0 0.0
  %1231 = vmatprep.subr.mxu0 0.0
  %1232 = vmatpush1.msra.mxu0 0.0
  %1233 = vmatprep.subr.mxu0 0.0
  %1234 = vmatpush1.msra.mxu0 0.0
  %1235 = vmatprep.subr.mxu0 0.0
  %1236 = vmatpush1.msra.mxu0 0.0
  %1237 = vmatprep.subr.mxu0 0.0
  %1238 = vmatpush1.msra.mxu0 0.0
  %1239 = vmatprep.subr.mxu0 0.0
  %1240 = vmatpush1.msra.mxu0 0.0
  %1241 = vmatprep.subr.mxu0 0.0
  %1242 = vmatpush1.msra.mxu0 0.0
  %1243 = vmatprep.subr.mxu0 0.0
  %1244 = vmatpush1.msra.mxu0 0.0
  %1245 = vmatprep.subr.mxu0 0.0
  %1246 = vmatpush1.msra.mxu0 0.0
  %1247 = vmatprep.subr.mxu0 0.0
  %1248 = vmatpush1.msra.mxu0 0.0
  %1249 = vmatprep.subr.mxu0 0.0
  %1250 = vmatpush1.msra.mxu0 0.0
  %1251 = vmatprep.subr.mxu0 0.0
  %1252 = vmatpush1.msra.mxu0 0.0
  %1253 = vmatprep.subr.mxu0 0.0
  %1254 = vmatpush1.msra.mxu0 0.0
  %1255 = vmatprep.subr.mxu0 0.0
  %1256 = vmatpush1.msra.mxu0 0.0
  %1257 = vmatprep.subr.mxu0 0.0
  %1258 = vmatpush1.msra.mxu0 0.0
  %1259 = vmatprep.subr.mxu0 0.0
  %1260 = vmatpush1.msra.mxu0 0.0
  %1261 = vmatprep.subr.mxu0 0.0
  %1262 = vmatpush1.msra.mxu0 0.0
  %1263 = vmatprep.subr.mxu0 0.0
  %1264 = vmatpush1.msra.mxu0 0.0
  %1265 = vmatprep.subr.mxu0 0.0
  %1266 = vmatpush1.msra.mxu0 0.0
  %1267 = vmatprep.subr.mxu0 0.0
  %1268 = vmatpush1.msra.mxu0 0.0
  %1269 = vmatprep.subr.mxu0 0.0
  %1270 = vmatpush1.msra.mxu0 0.0
  %1271 = vmatprep.subr.mxu0 0.0
  %1272 = vmatpush1.msra.mxu0 0.0
  %1273 = vmatprep.subr.mxu0 0.0
  %1274 = vmatpush1.msra.mxu0 0.0
  %1275 = vmatprep.subr.mxu0 0.0
  %1276 = vmatpush1.msra.mxu0 0.0
  %1277 = vmatprep.subr.mxu0 0.0
  %1278 = vmatpush1.msra.mxu0 0.0
  %1279 = vmatprep.mubr.f32.mxu0 0.0
  %1280 = vmatmul.mubr.f32.gmra.mrb[0].mxu0 %v1041
  %v1281 = vpop.f32.mrb[0].mxu0
  %v1282 = vadd.f32 0.0, %v1281
  %v1283 = vpop.f32.mrb[0].mxu0
  %1284 = vdwg.mxu0
  %v1285 = vadd.f32 %v104, %v1282
  %v1286 = vmul.f32 %v1285, %v114
  %v1287 = vxor.u32 %v1286, 2147483648
  %v1288 = vmul.f32 %v1287, 1.442695
  %v1289 = vpow.pop %v1288
  %v1290 = vadd.f32 %v1289, 1.0
  %v1291 = vrcp.pop %v1290
  %v1292 = vmul.f32 1.0, %v1291
  %v1293 = vmul.f32 %v1292, %v114
  %v1294 = vadd.f32 %v1293, %v115
  %v1295 = vmul.f32 %v1294, %v1031
  %1297 = vrot.lane.b32.xlu0 %v1294, 32
  %v1298 = vpop.permute.xlu0 %1297
  %v1300 = vmul.f32 %v1294, %v1298
  %1302 = vrot.lane.b32.xlu0 %v1300, 32
  %v1303 = vpop.permute.xlu0 %1302
  %v1305 = vadd.f32 %v1295, %v1303
  %v1306 = vtanh.pop %v1305
  %1308 = vrot.lane.b32.xlu0 %v1306, 32
  %v1309 = vpop.permute.xlu0 %1308
  %v1311 = vmul.f32 %v1294, %v1309
  %1313 = vrot.lane.b32.xlu0 %v1311, 64
  %v1314 = vpop.permute.xlu0 %1313
  %v1315 = vsel %vm116, %v1314, 0
  %1317 = vmatprep.subr.mxu0 0.0
  %1318 = vmatpush1.msra.mxu0 %v21
  %1319 = vmatprep.subr.mxu0 0.0
  %1320 = vmatpush1.msra.mxu0 %v22
  %1321 = vmatprep.subr.mxu0 0.0
  %1322 = vmatpush1.msra.mxu0 %v23
  %1323 = vmatprep.subr.mxu0 0.0
  %1324 = vmatpush1.msra.mxu0 %v24
  %1325 = vmatprep.subr.mxu0 0.0
  %1326 = vmatpush1.msra.mxu0 0.0
  %1327 = vmatprep.subr.mxu0 0.0
  %1328 = vmatpush1.msra.mxu0 0.0
  %1329 = vmatprep.subr.mxu0 0.0
  %1330 = vmatpush1.msra.mxu0 0.0
  %1331 = vmatprep.subr.mxu0 0.0
  %1332 = vmatpush1.msra.mxu0 0.0
  %1333 = vmatprep.subr.mxu0 0.0
  %1334 = vmatpush1.msra.mxu0 0.0
  %1335 = vmatprep.subr.mxu0 0.0
  %1336 = vmatpush1.msra.mxu0 0.0
  %1337 = vmatprep.subr.mxu0 0.0
  %1338 = vmatpush1.msra.mxu0 0.0
  %1339 = vmatprep.subr.mxu0 0.0
  %1340 = vmatpush1.msra.mxu0 0.0
  %1341 = vmatprep.subr.mxu0 0.0
  %1342 = vmatpush1.msra.mxu0 0.0
  %1343 = vmatprep.subr.mxu0 0.0
  %1344 = vmatpush1.msra.mxu0 0.0
  %1345 = vmatprep.subr.mxu0 0.0
  %1346 = vmatpush1.msra.mxu0 0.0
  %1347 = vmatprep.subr.mxu0 0.0
  %1348 = vmatpush1.msra.mxu0 0.0
  %1349 = vmatprep.subr.mxu0 0.0
  %1350 = vmatpush1.msra.mxu0 0.0
  %1351 = vmatprep.subr.mxu0 0.0
  %1352 = vmatpush1.msra.mxu0 0.0
  %1353 = vmatprep.subr.mxu0 0.0
  %1354 = vmatpush1.msra.mxu0 0.0
  %1355 = vmatprep.subr.mxu0 0.0
  %1356 = vmatpush1.msra.mxu0 0.0
  %1357 = vmatprep.subr.mxu0 0.0
  %1358 = vmatpush1.msra.mxu0 0.0
  %1359 = vmatprep.subr.mxu0 0.0
  %1360 = vmatpush1.msra.mxu0 0.0
  %1361 = vmatprep.subr.mxu0 0.0
  %1362 = vmatpush1.msra.mxu0 0.0
  %1363 = vmatprep.subr.mxu0 0.0
  %1364 = vmatpush1.msra.mxu0 0.0
  %1365 = vmatprep.subr.mxu0 0.0
  %1366 = vmatpush1.msra.mxu0 0.0
  %1367 = vmatprep.subr.mxu0 0.0
  %1368 = vmatpush1.msra.mxu0 0.0
  %1369 = vmatprep.subr.mxu0 0.0
  %1370 = vmatpush1.msra.mxu0 0.0
  %1371 = vmatprep.subr.mxu0 0.0
  %1372 = vmatpush1.msra.mxu0 0.0
  %1373 = vmatprep.subr.mxu0 0.0
  %1374 = vmatpush1.msra.mxu0 0.0
  %1375 = vmatprep.subr.mxu0 0.0
  %1376 = vmatpush1.msra.mxu0 0.0
  %1377 = vmatprep.subr.mxu0 0.0
  %1378 = vmatpush1.msra.mxu0 0.0
  %1379 = vmatprep.subr.mxu0 0.0
  %1380 = vmatpush1.msra.mxu0 0.0
  %1381 = vmatprep.mubr.f32.mxu0 0.0
  %1382 = vmatmul.mubr.f32.gmra.mrb[0].mxu0 %v1315
  %v1383 = vpop.f32.mrb[0].mxu0
  %v1384 = vadd.f32 0.0, %v1383
  %v1385 = vpop.f32.mrb[0].mxu0
  %1386 = vdwg.mxu0
  %1388 = vrot.lane.b32.xlu0 %v1214, 64
  %v1389 = vpop.permute.xlu0 %1388
  %v1390 = vsel %vm116, %v1389, 0
  %1392 = vmatprep.subr.mxu0 0.0
  %1393 = vmatpush1.msra.mxu0 %v25
  %1394 = vmatprep.subr.mxu0 0.0
  %1395 = vmatpush1.msra.mxu0 %v26
  %1396 = vmatprep.subr.mxu0 0.0
  %1397 = vmatpush1.msra.mxu0 %v27
  %1398 = vmatprep.subr.mxu0 0.0
  %1399 = vmatpush1.msra.mxu0 %v28
  %1400 = vmatprep.subr.mxu0 0.0
  %1401 = vmatpush1.msra.mxu0 0.0
  %1402 = vmatprep.subr.mxu0 0.0
  %1403 = vmatpush1.msra.mxu0 0.0
  %1404 = vmatprep.subr.mxu0 0.0
  %1405 = vmatpush1.msra.mxu0 0.0
  %1406 = vmatprep.subr.mxu0 0.0
  %1407 = vmatpush1.msra.mxu0 0.0
  %1408 = vmatprep.subr.mxu0 0.0
  %1409 = vmatpush1.msra.mxu0 0.0
  %1410 = vmatprep.subr.mxu0 0.0
  %1411 = vmatpush1.msra.mxu0 0.0
  %1412 = vmatprep.subr.mxu0 0.0
  %1413 = vmatpush1.msra.mxu0 0.0
  %1414 = vmatprep.subr.mxu0 0.0
  %1415 = vmatpush1.msra.mxu0 0.0
  %1416 = vmatprep.subr.mxu0 0.0
  %1417 = vmatpush1.msra.mxu0 0.0
  %1418 = vmatprep.subr.mxu0 0.0
  %1419 = vmatpush1.msra.mxu0 0.0
  %1420 = vmatprep.subr.mxu0 0.0
  %1421 = vmatpush1.msra.mxu0 0.0
  %1422 = vmatprep.subr.mxu0 0.0
  %1423 = vmatpush1.msra.mxu0 0.0
  %1424 = vmatprep.subr.mxu0 0.0
  %1425 = vmatpush1.msra.mxu0 0.0
  %1426 = vmatprep.subr.mxu0 0.0
  %1427 = vmatpush1.msra.mxu0 0.0
  %1428 = vmatprep.subr.mxu0 0.0
  %1429 = vmatpush1.msra.mxu0 0.0
  %1430 = vmatprep.subr.mxu0 0.0
  %1431 = vmatpush1.msra.mxu0 0.0
  %1432 = vmatprep.subr.mxu0 0.0
  %1433 = vmatpush1.msra.mxu0 0.0
  %1434 = vmatprep.subr.mxu0 0.0
  %1435 = vmatpush1.msra.mxu0 0.0
  %1436 = vmatprep.subr.mxu0 0.0
  %1437 = vmatpush1.msra.mxu0 0.0
  %1438 = vmatprep.subr.mxu0 0.0
  %1439 = vmatpush1.msra.mxu0 0.0
  %1440 = vmatprep.subr.mxu0 0.0
  %1441 = vmatpush1.msra.mxu0 0.0
  %1442 = vmatprep.subr.mxu0 0.0
  %1443 = vmatpush1.msra.mxu0 0.0
  %1444 = vmatprep.subr.mxu0 0.0
  %1445 = vmatpush1.msra.mxu0 0.0
  %1446 = vmatprep.subr.mxu0 0.0
  %1447 = vmatpush1.msra.mxu0 0.0
  %1448 = vmatprep.subr.mxu0 0.0
  %1449 = vmatpush1.msra.mxu0 0.0
  %1450 = vmatprep.subr.mxu0 0.0
  %1451 = vmatpush1.msra.mxu0 0.0
  %1452 = vmatprep.subr.mxu0 0.0
  %1453 = vmatpush1.msra.mxu0 0.0
  %1454 = vmatprep.subr.mxu0 0.0
  %1455 = vmatpush1.msra.mxu0 0.0
  %1456 = vmatprep.mubr.f32.mxu0 0.0
  %1457 = vmatmul.mubr.f32.gmra.mrb[0].mxu0 %v1390
  %v1458 = vpop.f32.mrb[0].mxu0
  %v1459 = vadd.f32 %v1384, %v1458
  %v1460 = vpop.f32.mrb[0].mxu0
  %1461 = vdwg.mxu0
  %v1462 = vadd.f32 %v1459, %v365
  %v1463 = vmul.f32 %v1462, %v114
  %v1464 = vxor.u32 %v1463, 2147483648
  %v1465 = vmul.f32 %v1464, 1.442695
  %v1466 = vpow.pop %v1465
  %v1467 = vadd.f32 %v1466, 1.0
  %v1468 = vrcp.pop %v1467
  %v1469 = vmul.f32 1.0, %v1468
  %v1470 = vmul.f32 %v1469, %v114
  %v1471 = vadd.f32 %v1470, %v115
  %v1472 = vmul.f32 %v1471, %v1208
  %1474 = vrot.lane.b32.xlu0 %v1471, 32
  %v1475 = vpop.permute.xlu0 %1474
  %v1477 = vmul.f32 %v1471, %v1475
  %1479 = vrot.lane.b32.xlu0 %v1477, 32
  %v1480 = vpop.permute.xlu0 %1479
  %v1482 = vadd.f32 %v1472, %v1480
  %v1483 = vtanh.pop %v1482
  %1485 = vrot.lane.b32.xlu0 %v1483, 32
  %v1486 = vpop.permute.xlu0 %1485
  %v1488 = vmul.f32 %v1471, %v1486
  %1489 = vmatprep.subr.mxu0 0.0
  %1490 = vmatpush1.msra.mxu0 %v17
  %1491 = vmatprep.subr.mxu0 0.0
  %1492 = vmatpush1.msra.mxu0 %v18
  %1493 = vmatprep.subr.mxu0 0.0
  %1494 = vmatpush1.msra.mxu0 %v19
  %1495 = vmatprep.subr.mxu0 0.0
  %1496 = vmatpush1.msra.mxu0 %v20
  %1497 = vmatprep.subr.mxu0 0.0
  %1498 = vmatpush1.msra.mxu0 0.0
  %1499 = vmatprep.subr.mxu0 0.0
  %1500 = vmatpush1.msra.mxu0 0.0
  %1501 = vmatprep.subr.mxu0 0.0
  %1502 = vmatpush1.msra.mxu0 0.0
  %1503 = vmatprep.subr.mxu0 0.0
  %1504 = vmatpush1.msra.mxu0 0.0
  %1505 = vmatprep.subr.mxu0 0.0
  %1506 = vmatpush1.msra.mxu0 0.0
  %1507 = vmatprep.subr.mxu0 0.0
  %1508 = vmatpush1.msra.mxu0 0.0
  %1509 = vmatprep.subr.mxu0 0.0
  %1510 = vmatpush1.msra.mxu0 0.0
  %1511 = vmatprep.subr.mxu0 0.0
  %1512 = vmatpush1.msra.mxu0 0.0
  %1513 = vmatprep.subr.mxu0 0.0
  %1514 = vmatpush1.msra.mxu0 0.0
  %1515 = vmatprep.subr.mxu0 0.0
  %1516 = vmatpush1.msra.mxu0 0.0
  %1517 = vmatprep.subr.mxu0 0.0
  %1518 = vmatpush1.msra.mxu0 0.0
  %1519 = vmatprep.subr.mxu0 0.0
  %1520 = vmatpush1.msra.mxu0 0.0
  %1521 = vmatprep.subr.mxu0 0.0
  %1522 = vmatpush1.msra.mxu0 0.0
  %1523 = vmatprep.subr.mxu0 0.0
  %1524 = vmatpush1.msra.mxu0 0.0
  %1525 = vmatprep.subr.mxu0 0.0
  %1526 = vmatpush1.msra.mxu0 0.0
  %1527 = vmatprep.subr.mxu0 0.0
  %1528 = vmatpush1.msra.mxu0 0.0
  %1529 = vmatprep.subr.mxu0 0.0
  %1530 = vmatpush1.msra.mxu0 0.0
  %1531 = vmatprep.subr.mxu0 0.0
  %1532 = vmatpush1.msra.mxu0 0.0
  %1533 = vmatprep.subr.mxu0 0.0
  %1534 = vmatpush1.msra.mxu0 0.0
  %1535 = vmatprep.subr.mxu0 0.0
  %1536 = vmatpush1.msra.mxu0 0.0
  %1537 = vmatprep.subr.mxu0 0.0
  %1538 = vmatpush1.msra.mxu0 0.0
  %1539 = vmatprep.subr.mxu0 0.0
  %1540 = vmatpush1.msra.mxu0 0.0
  %1541 = vmatprep.subr.mxu0 0.0
  %1542 = vmatpush1.msra.mxu0 0.0
  %1543 = vmatprep.subr.mxu0 0.0
  %1544 = vmatpush1.msra.mxu0 0.0
  %1545 = vmatprep.subr.mxu0 0.0
  %1546 = vmatpush1.msra.mxu0 0.0
  %1547 = vmatprep.subr.mxu0 0.0
  %1548 = vmatpush1.msra.mxu0 0.0
  %1549 = vmatprep.subr.mxu0 0.0
  %1550 = vmatpush1.msra.mxu0 0.0
  %1551 = vmatprep.subr.mxu0 0.0
  %1552 = vmatpush1.msra.mxu0 0.0
  %1553 = vmatprep.mubr.f32.mxu0 0.0
  %1554 = vmatmul.mubr.f32.gmra.mrb[0].mxu0 %v1315
  %v1555 = vpop.f32.mrb[0].mxu0
  %v1556 = vadd.f32 0.0, %v1555
  %v1557 = vpop.f32.mrb[0].mxu0
  %1558 = vdwg.mxu0
  %v1559 = vadd.f32 %v105, %v1556
  %v1560 = vmul.f32 %v1559, %v114
  %v1561 = vxor.u32 %v1560, 2147483648
  %v1562 = vmul.f32 %v1561, 1.442695
  %v1563 = vpow.pop %v1562
  %v1564 = vadd.f32 %v1563, 1.0
  %v1565 = vrcp.pop %v1564
  %v1566 = vmul.f32 1.0, %v1565
  %v1567 = vmul.f32 %v1566, %v114
  %v1568 = vadd.f32 %v1567, %v115
  %v1569 = vmul.f32 %v1568, %v1305
  %1571 = vrot.lane.b32.xlu0 %v1568, 32
  %v1572 = vpop.permute.xlu0 %1571
  %v1574 = vmul.f32 %v1568, %v1572
  %1576 = vrot.lane.b32.xlu0 %v1574, 32
  %v1577 = vpop.permute.xlu0 %1576
  %v1579 = vadd.f32 %v1569, %v1577
  %v1580 = vtanh.pop %v1579
  %1582 = vrot.lane.b32.xlu0 %v1580, 32
  %v1583 = vpop.permute.xlu0 %1582
  %v1585 = vmul.f32 %v1568, %v1583
  %1587 = vrot.lane.b32.xlu0 %v1585, 64
  %v1588 = vpop.permute.xlu0 %1587
  %v1589 = vsel %vm116, %v1588, 0
  %1591 = vmatprep.subr.mxu0 0.0
  %1592 = vmatpush1.msra.mxu0 %v21
  %1593 = vmatprep.subr.mxu0 0.0
  %1594 = vmatpush1.msra.mxu0 %v22
  %1595 = vmatprep.subr.mxu0 0.0
  %1596 = vmatpush1.msra.mxu0 %v23
  %1597 = vmatprep.subr.mxu0 0.0
  %1598 = vmatpush1.msra.mxu0 %v24
  %1599 = vmatprep.subr.mxu0 0.0
  %1600 = vmatpush1.msra.mxu0 0.0
  %1601 = vmatprep.subr.mxu0 0.0
  %1602 = vmatpush1.msra.mxu0 0.0
  %1603 = vmatprep.subr.mxu0 0.0
  %1604 = vmatpush1.msra.mxu0 0.0
  %1605 = vmatprep.subr.mxu0 0.0
  %1606 = vmatpush1.msra.mxu0 0.0
  %1607 = vmatprep.subr.mxu0 0.0
  %1608 = vmatpush1.msra.mxu0 0.0
  %1609 = vmatprep.subr.mxu0 0.0
  %1610 = vmatpush1.msra.mxu0 0.0
  %1611 = vmatprep.subr.mxu0 0.0
  %1612 = vmatpush1.msra.mxu0 0.0
  %1613 = vmatprep.subr.mxu0 0.0
  %1614 = vmatpush1.msra.mxu0 0.0
  %1615 = vmatprep.subr.mxu0 0.0
  %1616 = vmatpush1.msra.mxu0 0.0
  %1617 = vmatprep.subr.mxu0 0.0
  %1618 = vmatpush1.msra.mxu0 0.0
  %1619 = vmatprep.subr.mxu0 0.0
  %1620 = vmatpush1.msra.mxu0 0.0
  %1621 = vmatprep.subr.mxu0 0.0
  %1622 = vmatpush1.msra.mxu0 0.0
  %1623 = vmatprep.subr.mxu0 0.0
  %1624 = vmatpush1.msra.mxu0 0.0
  %1625 = vmatprep.subr.mxu0 0.0
  %1626 = vmatpush1.msra.mxu0 0.0
  %1627 = vmatprep.subr.mxu0 0.0
  %1628 = vmatpush1.msra.mxu0 0.0
  %1629 = vmatprep.subr.mxu0 0.0
  %1630 = vmatpush1.msra.mxu0 0.0
  %1631 = vmatprep.subr.mxu0 0.0
  %1632 = vmatpush1.msra.mxu0 0.0
  %1633 = vmatprep.subr.mxu0 0.0
  %1634 = vmatpush1.msra.mxu0 0.0
  %1635 = vmatprep.subr.mxu0 0.0
  %1636 = vmatpush1.msra.mxu0 0.0
  %1637 = vmatprep.subr.mxu0 0.0
  %1638 = vmatpush1.msra.mxu0 0.0
  %1639 = vmatprep.subr.mxu0 0.0
  %1640 = vmatpush1.msra.mxu0 0.0
  %1641 = vmatprep.subr.mxu0 0.0
  %1642 = vmatpush1.msra.mxu0 0.0
  %1643 = vmatprep.subr.mxu0 0.0
  %1644 = vmatpush1.msra.mxu0 0.0
  %1645 = vmatprep.subr.mxu0 0.0
  %1646 = vmatpush1.msra.mxu0 0.0
  %1647 = vmatprep.subr.mxu0 0.0
  %1648 = vmatpush1.msra.mxu0 0.0
  %1649 = vmatprep.subr.mxu0 0.0
  %1650 = vmatpush1.msra.mxu0 0.0
  %1651 = vmatprep.subr.mxu0 0.0
  %1652 = vmatpush1.msra.mxu0 0.0
  %1653 = vmatprep.subr.mxu0 0.0
  %1654 = vmatpush1.msra.mxu0 0.0
  %1655 = vmatprep.mubr.f32.mxu0 0.0
  %1656 = vmatmul.mubr.f32.gmra.mrb[0].mxu0 %v1589
  %v1657 = vpop.f32.mrb[0].mxu0
  %v1658 = vadd.f32 0.0, %v1657
  %v1659 = vpop.f32.mrb[0].mxu0
  %1660 = vdwg.mxu0
  %1662 = vrot.lane.b32.xlu0 %v1488, 64
  %v1663 = vpop.permute.xlu0 %1662
  %v1664 = vsel %vm116, %v1663, 0
  %1666 = vmatprep.subr.mxu0 0.0
  %1667 = vmatpush1.msra.mxu0 %v25
  %1668 = vmatprep.subr.mxu0 0.0
  %1669 = vmatpush1.msra.mxu0 %v26
  %1670 = vmatprep.subr.mxu0 0.0
  %1671 = vmatpush1.msra.mxu0 %v27
  %1672 = vmatprep.subr.mxu0 0.0
  %1673 = vmatpush1.msra.mxu0 %v28
  %1674 = vmatprep.subr.mxu0 0.0
  %1675 = vmatpush1.msra.mxu0 0.0
  %1676 = vmatprep.subr.mxu0 0.0
  %1677 = vmatpush1.msra.mxu0 0.0
  %1678 = vmatprep.subr.mxu0 0.0
  %1679 = vmatpush1.msra.mxu0 0.0
  %1680 = vmatprep.subr.mxu0 0.0
  %1681 = vmatpush1.msra.mxu0 0.0
  %1682 = vmatprep.subr.mxu0 0.0
  %1683 = vmatpush1.msra.mxu0 0.0
  %1684 = vmatprep.subr.mxu0 0.0
  %1685 = vmatpush1.msra.mxu0 0.0
  %1686 = vmatprep.subr.mxu0 0.0
  %1687 = vmatpush1.msra.mxu0 0.0
  %1688 = vmatprep.subr.mxu0 0.0
  %1689 = vmatpush1.msra.mxu0 0.0
  %1690 = vmatprep.subr.mxu0 0.0
  %1691 = vmatpush1.msra.mxu0 0.0
  %1692 = vmatprep.subr.mxu0 0.0
  %1693 = vmatpush1.msra.mxu0 0.0
  %1694 = vmatprep.subr.mxu0 0.0
  %1695 = vmatpush1.msra.mxu0 0.0
  %1696 = vmatprep.subr.mxu0 0.0
  %1697 = vmatpush1.msra.mxu0 0.0
  %1698 = vmatprep.subr.mxu0 0.0
  %1699 = vmatpush1.msra.mxu0 0.0
  %1700 = vmatprep.subr.mxu0 0.0
  %1701 = vmatpush1.msra.mxu0 0.0
  %1702 = vmatprep.subr.mxu0 0.0
  %1703 = vmatpush1.msra.mxu0 0.0
  %1704 = vmatprep.subr.mxu0 0.0
  %1705 = vmatpush1.msra.mxu0 0.0
  %1706 = vmatprep.subr.mxu0 0.0
  %1707 = vmatpush1.msra.mxu0 0.0
  %1708 = vmatprep.subr.mxu0 0.0
  %1709 = vmatpush1.msra.mxu0 0.0
  %1710 = vmatprep.subr.mxu0 0.0
  %1711 = vmatpush1.msra.mxu0 0.0
  %1712 = vmatprep.subr.mxu0 0.0
  %1713 = vmatpush1.msra.mxu0 0.0
  %1714 = vmatprep.subr.mxu0 0.0
  %1715 = vmatpush1.msra.mxu0 0.0
  %1716 = vmatprep.subr.mxu0 0.0
  %1717 = vmatpush1.msra.mxu0 0.0
  %1718 = vmatprep.subr.mxu0 0.0
  %1719 = vmatpush1.msra.mxu0 0.0
  %1720 = vmatprep.subr.mxu0 0.0
  %1721 = vmatpush1.msra.mxu0 0.0
  %1722 = vmatprep.subr.mxu0 0.0
  %1723 = vmatpush1.msra.mxu0 0.0
  %1724 = vmatprep.subr.mxu0 0.0
  %1725 = vmatpush1.msra.mxu0 0.0
  %1726 = vmatprep.subr.mxu0 0.0
  %1727 = vmatpush1.msra.mxu0 0.0
  %1728 = vmatprep.subr.mxu0 0.0
  %1729 = vmatpush1.msra.mxu0 0.0
  %1730 = vmatprep.mubr.f32.mxu0 0.0
  %1731 = vmatmul.mubr.f32.gmra.mrb[0].mxu0 %v1664
  %v1732 = vpop.f32.mrb[0].mxu0
  %v1733 = vadd.f32 %v1658, %v1732
  %v1734 = vpop.f32.mrb[0].mxu0
  %1735 = vdwg.mxu0
  %v1736 = vadd.f32 %v1733, %v365
  %v1737 = vmul.f32 %v1736, %v114
  %v1738 = vxor.u32 %v1737, 2147483648
  %v1739 = vmul.f32 %v1738, 1.442695
  %v1740 = vpow.pop %v1739
  %v1741 = vadd.f32 %v1740, 1.0
  %v1742 = vrcp.pop %v1741
  %v1743 = vmul.f32 1.0, %v1742
  %v1744 = vmul.f32 %v1743, %v114
  %v1745 = vadd.f32 %v1744, %v115
  %v1746 = vmul.f32 %v1745, %v1482
  %1748 = vrot.lane.b32.xlu0 %v1745, 32
  %v1749 = vpop.permute.xlu0 %1748
  %v1751 = vmul.f32 %v1745, %v1749
  %1753 = vrot.lane.b32.xlu0 %v1751, 32
  %v1754 = vpop.permute.xlu0 %1753
  %v1756 = vadd.f32 %v1746, %v1754
  %v1757 = vtanh.pop %v1756
  %1759 = vrot.lane.b32.xlu0 %v1757, 32
  %v1760 = vpop.permute.xlu0 %1759
  %v1762 = vmul.f32 %v1745, %v1760
  %1763 = vmatprep.subr.mxu0 0.0
  %1764 = vmatpush1.msra.mxu0 %v17
  %1765 = vmatprep.subr.mxu0 0.0
  %1766 = vmatpush1.msra.mxu0 %v18
  %1767 = vmatprep.subr.mxu0 0.0
  %1768 = vmatpush1.msra.mxu0 %v19
  %1769 = vmatprep.subr.mxu0 0.0
  %1770 = vmatpush1.msra.mxu0 %v20
  %1771 = vmatprep.subr.mxu0 0.0
  %1772 = vmatpush1.msra.mxu0 0.0
  %1773 = vmatprep.subr.mxu0 0.0
  %1774 = vmatpush1.msra.mxu0 0.0
  %1775 = vmatprep.subr.mxu0 0.0
  %1776 = vmatpush1.msra.mxu0 0.0
  %1777 = vmatprep.subr.mxu0 0.0
  %1778 = vmatpush1.msra.mxu0 0.0
  %1779 = vmatprep.subr.mxu0 0.0
  %1780 = vmatpush1.msra.mxu0 0.0
  %1781 = vmatprep.subr.mxu0 0.0
  %1782 = vmatpush1.msra.mxu0 0.0
  %1783 = vmatprep.subr.mxu0 0.0
  %1784 = vmatpush1.msra.mxu0 0.0
  %1785 = vmatprep.subr.mxu0 0.0
  %1786 = vmatpush1.msra.mxu0 0.0
  %1787 = vmatprep.subr.mxu0 0.0
  %1788 = vmatpush1.msra.mxu0 0.0
  %1789 = vmatprep.subr.mxu0 0.0
  %1790 = vmatpush1.msra.mxu0 0.0
  %1791 = vmatprep.subr.mxu0 0.0
  %1792 = vmatpush1.msra.mxu0 0.0
  %1793 = vmatprep.subr.mxu0 0.0
  %1794 = vmatpush1.msra.mxu0 0.0
  %1795 = vmatprep.subr.mxu0 0.0
  %1796 = vmatpush1.msra.mxu0 0.0
  %1797 = vmatprep.subr.mxu0 0.0
  %1798 = vmatpush1.msra.mxu0 0.0
  %1799 = vmatprep.subr.mxu0 0.0
  %1800 = vmatpush1.msra.mxu0 0.0
  %1801 = vmatprep.subr.mxu0 0.0
  %1802 = vmatpush1.msra.mxu0 0.0
  %1803 = vmatprep.subr.mxu0 0.0
  %1804 = vmatpush1.msra.mxu0 0.0
  %1805 = vmatprep.subr.mxu0 0.0
  %1806 = vmatpush1.msra.mxu0 0.0
  %1807 = vmatprep.subr.mxu0 0.0
  %1808 = vmatpush1.msra.mxu0 0.0
  %1809 = vmatprep.subr.mxu0 0.0
  %1810 = vmatpush1.msra.mxu0 0.0
  %1811 = vmatprep.subr.mxu0 0.0
  %1812 = vmatpush1.msra.mxu0 0.0
  %1813 = vmatprep.subr.mxu0 0.0
  %1814 = vmatpush1.msra.mxu0 0.0
  %1815 = vmatprep.subr.mxu0 0.0
  %1816 = vmatpush1.msra.mxu0 0.0
  %1817 = vmatprep.subr.mxu0 0.0
  %1818 = vmatpush1.msra.mxu0 0.0
  %1819 = vmatprep.subr.mxu0 0.0
  %1820 = vmatpush1.msra.mxu0 0.0
  %1821 = vmatprep.subr.mxu0 0.0
  %1822 = vmatpush1.msra.mxu0 0.0
  %1823 = vmatprep.subr.mxu0 0.0
  %1824 = vmatpush1.msra.mxu0 0.0
  %1825 = vmatprep.subr.mxu0 0.0
  %1826 = vmatpush1.msra.mxu0 0.0
  %1827 = vmatprep.mubr.f32.mxu0 0.0
  %1828 = vmatmul.mubr.f32.gmra.mrb[0].mxu0 %v1589
  %v1829 = vpop.f32.mrb[0].mxu0
  %v1830 = vadd.f32 0.0, %v1829
  %v1831 = vpop.f32.mrb[0].mxu0
  %1832 = vdwg.mxu0
  %v1833 = vadd.f32 %v106, %v1830
  %v1834 = vmul.f32 %v1833, %v114
  %v1835 = vxor.u32 %v1834, 2147483648
  %v1836 = vmul.f32 %v1835, 1.442695
  %v1837 = vpow.pop %v1836
  %v1838 = vadd.f32 %v1837, 1.0
  %v1839 = vrcp.pop %v1838
  %v1840 = vmul.f32 1.0, %v1839
  %v1841 = vmul.f32 %v1840, %v114
  %v1842 = vadd.f32 %v1841, %v115
  %v1843 = vmul.f32 %v1842, %v1579
  %1845 = vrot.lane.b32.xlu0 %v1842, 32
  %v1846 = vpop.permute.xlu0 %1845
  %v1848 = vmul.f32 %v1842, %v1846
  %1850 = vrot.lane.b32.xlu0 %v1848, 32
  %v1851 = vpop.permute.xlu0 %1850
  %v1853 = vadd.f32 %v1843, %v1851
  %v1854 = vtanh.pop %v1853
  %1856 = vrot.lane.b32.xlu0 %v1854, 32
  %v1857 = vpop.permute.xlu0 %1856
  %v1859 = vmul.f32 %v1842, %v1857
  %1861 = vrot.lane.b32.xlu0 %v1859, 64
  %v1862 = vpop.permute.xlu0 %1861
  %v1863 = vsel %vm116, %v1862, 0
  %1865 = vmatprep.subr.mxu0 0.0
  %1866 = vmatpush1.msra.mxu0 %v21
  %1867 = vmatprep.subr.mxu0 0.0
  %1868 = vmatpush1.msra.mxu0 %v22
  %1869 = vmatprep.subr.mxu0 0.0
  %1870 = vmatpush1.msra.mxu0 %v23
  %1871 = vmatprep.subr.mxu0 0.0
  %1872 = vmatpush1.msra.mxu0 %v24
  %1873 = vmatprep.subr.mxu0 0.0
  %1874 = vmatpush1.msra.mxu0 0.0
  %1875 = vmatprep.subr.mxu0 0.0
  %1876 = vmatpush1.msra.mxu0 0.0
  %1877 = vmatprep.subr.mxu0 0.0
  %1878 = vmatpush1.msra.mxu0 0.0
  %1879 = vmatprep.subr.mxu0 0.0
  %1880 = vmatpush1.msra.mxu0 0.0
  %1881 = vmatprep.subr.mxu0 0.0
  %1882 = vmatpush1.msra.mxu0 0.0
  %1883 = vmatprep.subr.mxu0 0.0
  %1884 = vmatpush1.msra.mxu0 0.0
  %1885 = vmatprep.subr.mxu0 0.0
  %1886 = vmatpush1.msra.mxu0 0.0
  %1887 = vmatprep.subr.mxu0 0.0
  %1888 = vmatpush1.msra.mxu0 0.0
  %1889 = vmatprep.subr.mxu0 0.0
  %1890 = vmatpush1.msra.mxu0 0.0
  %1891 = vmatprep.subr.mxu0 0.0
  %1892 = vmatpush1.msra.mxu0 0.0
  %1893 = vmatprep.subr.mxu0 0.0
  %1894 = vmatpush1.msra.mxu0 0.0
  %1895 = vmatprep.subr.mxu0 0.0
  %1896 = vmatpush1.msra.mxu0 0.0
  %1897 = vmatprep.subr.mxu0 0.0
  %1898 = vmatpush1.msra.mxu0 0.0
  %1899 = vmatprep.subr.mxu0 0.0
  %1900 = vmatpush1.msra.mxu0 0.0
  %1901 = vmatprep.subr.mxu0 0.0
  %1902 = vmatpush1.msra.mxu0 0.0
  %1903 = vmatprep.subr.mxu0 0.0
  %1904 = vmatpush1.msra.mxu0 0.0
  %1905 = vmatprep.subr.mxu0 0.0
  %1906 = vmatpush1.msra.mxu0 0.0
  %1907 = vmatprep.subr.mxu0 0.0
  %1908 = vmatpush1.msra.mxu0 0.0
  %1909 = vmatprep.subr.mxu0 0.0
  %1910 = vmatpush1.msra.mxu0 0.0
  %1911 = vmatprep.subr.mxu0 0.0
  %1912 = vmatpush1.msra.mxu0 0.0
  %1913 = vmatprep.subr.mxu0 0.0
  %1914 = vmatpush1.msra.mxu0 0.0
  %1915 = vmatprep.subr.mxu0 0.0
  %1916 = vmatpush1.msra.mxu0 0.0
  %1917 = vmatprep.subr.mxu0 0.0
  %1918 = vmatpush1.msra.mxu0 0.0
  %1919 = vmatprep.subr.mxu0 0.0
  %1920 = vmatpush1.msra.mxu0 0.0
  %1921 = vmatprep.subr.mxu0 0.0
  %1922 = vmatpush1.msra.mxu0 0.0
  %1923 = vmatprep.subr.mxu0 0.0
  %1924 = vmatpush1.msra.mxu0 0.0
  %1925 = vmatprep.subr.mxu0 0.0
  %1926 = vmatpush1.msra.mxu0 0.0
  %1927 = vmatprep.subr.mxu0 0.0
  %1928 = vmatpush1.msra.mxu0 0.0
  %1929 = vmatprep.mubr.f32.mxu0 0.0
  %1930 = vmatmul.mubr.f32.gmra.mrb[0].mxu0 %v1863
  %v1931 = vpop.f32.mrb[0].mxu0
  %v1932 = vadd.f32 0.0, %v1931
  %v1933 = vpop.f32.mrb[0].mxu0
  %1934 = vdwg.mxu0
  %1936 = vrot.lane.b32.xlu0 %v1762, 64
  %v1937 = vpop.permute.xlu0 %1936
  %v1938 = vsel %vm116, %v1937, 0
  %1940 = vmatprep.subr.mxu0 0.0
  %1941 = vmatpush1.msra.mxu0 %v25
  %1942 = vmatprep.subr.mxu0 0.0
  %1943 = vmatpush1.msra.mxu0 %v26
  %1944 = vmatprep.subr.mxu0 0.0
  %1945 = vmatpush1.msra.mxu0 %v27
  %1946 = vmatprep.subr.mxu0 0.0
  %1947 = vmatpush1.msra.mxu0 %v28
  %1948 = vmatprep.subr.mxu0 0.0
  %1949 = vmatpush1.msra.mxu0 0.0
  %1950 = vmatprep.subr.mxu0 0.0
  %1951 = vmatpush1.msra.mxu0 0.0
  %1952 = vmatprep.subr.mxu0 0.0
  %1953 = vmatpush1.msra.mxu0 0.0
  %1954 = vmatprep.subr.mxu0 0.0
  %1955 = vmatpush1.msra.mxu0 0.0
  %1956 = vmatprep.subr.mxu0 0.0
  %1957 = vmatpush1.msra.mxu0 0.0
  %1958 = vmatprep.subr.mxu0 0.0
  %1959 = vmatpush1.msra.mxu0 0.0
  %1960 = vmatprep.subr.mxu0 0.0
  %1961 = vmatpush1.msra.mxu0 0.0
  %1962 = vmatprep.subr.mxu0 0.0
  %1963 = vmatpush1.msra.mxu0 0.0
  %1964 = vmatprep.subr.mxu0 0.0
  %1965 = vmatpush1.msra.mxu0 0.0
  %1966 = vmatprep.subr.mxu0 0.0
  %1967 = vmatpush1.msra.mxu0 0.0
  %1968 = vmatprep.subr.mxu0 0.0
  %1969 = vmatpush1.msra.mxu0 0.0
  %1970 = vmatprep.subr.mxu0 0.0
  %1971 = vmatpush1.msra.mxu0 0.0
  %1972 = vmatprep.subr.mxu0 0.0
  %1973 = vmatpush1.msra.mxu0 0.0
  %1974 = vmatprep.subr.mxu0 0.0
  %1975 = vmatpush1.msra.mxu0 0.0
  %1976 = vmatprep.subr.mxu0 0.0
  %1977 = vmatpush1.msra.mxu0 0.0
  %1978 = vmatprep.subr.mxu0 0.0
  %1979 = vmatpush1.msra.mxu0 0.0
  %1980 = vmatprep.subr.mxu0 0.0
  %1981 = vmatpush1.msra.mxu0 0.0
  %1982 = vmatprep.subr.mxu0 0.0
  %1983 = vmatpush1.msra.mxu0 0.0
  %1984 = vmatprep.subr.mxu0 0.0
  %1985 = vmatpush1.msra.mxu0 0.0
  %1986 = vmatprep.subr.mxu0 0.0
  %1987 = vmatpush1.msra.mxu0 0.0
  %1988 = vmatprep.subr.mxu0 0.0
  %1989 = vmatpush1.msra.mxu0 0.0
  %1990 = vmatprep.subr.mxu0 0.0
  %1991 = vmatpush1.msra.mxu0 0.0
  %1992 = vmatprep.subr.mxu0 0.0
  %1993 = vmatpush1.msra.mxu0 0.0
  %1994 = vmatprep.subr.mxu0 0.0
  %1995 = vmatpush1.msra.mxu0 0.0
  %1996 = vmatprep.subr.mxu0 0.0
  %1997 = vmatpush1.msra.mxu0 0.0
  %1998 = vmatprep.subr.mxu0 0.0
  %1999 = vmatpush1.msra.mxu0 0.0
  %2000 = vmatprep.subr.mxu0 0.0
  %2001 = vmatpush1.msra.mxu0 0.0
  %2002 = vmatprep.subr.mxu0 0.0
  %2003 = vmatpush1.msra.mxu0 0.0
  %2004 = vmatprep.mubr.f32.mxu0 0.0
  %2005 = vmatmul.mubr.f32.gmra.mrb[0].mxu0 %v1938
  %v2006 = vpop.f32.mrb[0].mxu0
  %v2007 = vadd.f32 %v1932, %v2006
  %v2008 = vpop.f32.mrb[0].mxu0
  %2009 = vdwg.mxu0
  %v2010 = vadd.f32 %v2007, %v365
  %v2011 = vmul.f32 %v2010, %v114
  %v2012 = vxor.u32 %v2011, 2147483648
  %v2013 = vmul.f32 %v2012, 1.442695
  %v2014 = vpow.pop %v2013
  %v2015 = vadd.f32 %v2014, 1.0
  %v2016 = vrcp.pop %v2015
  %v2017 = vmul.f32 1.0, %v2016
  %v2018 = vmul.f32 %v2017, %v114
  %v2019 = vadd.f32 %v2018, %v115
  %v2020 = vmul.f32 %v2019, %v1756
  %2022 = vrot.lane.b32.xlu0 %v2019, 32
  %v2023 = vpop.permute.xlu0 %2022
  %v2025 = vmul.f32 %v2019, %v2023
  %2027 = vrot.lane.b32.xlu0 %v2025, 32
  %v2028 = vpop.permute.xlu0 %2027
  %v2030 = vadd.f32 %v2020, %v2028
  %v2031 = vtanh.pop %v2030
  %2033 = vrot.lane.b32.xlu0 %v2031, 32
  %v2034 = vpop.permute.xlu0 %2033
  %v2036 = vmul.f32 %v2019, %v2034
  %2037 = vmatprep.subr.mxu0 0.0
  %2038 = vmatpush1.msra.mxu0 %v17
  %2039 = vmatprep.subr.mxu0 0.0
  %2040 = vmatpush1.msra.mxu0 %v18
  %2041 = vmatprep.subr.mxu0 0.0
  %2042 = vmatpush1.msra.mxu0 %v19
  %2043 = vmatprep.subr.mxu0 0.0
  %2044 = vmatpush1.msra.mxu0 %v20
  %2045 = vmatprep.subr.mxu0 0.0
  %2046 = vmatpush1.msra.mxu0 0.0
  %2047 = vmatprep.subr.mxu0 0.0
  %2048 = vmatpush1.msra.mxu0 0.0
  %2049 = vmatprep.subr.mxu0 0.0
  %2050 = vmatpush1.msra.mxu0 0.0
  %2051 = vmatprep.subr.mxu0 0.0
  %2052 = vmatpush1.msra.mxu0 0.0
  %2053 = vmatprep.subr.mxu0 0.0
  %2054 = vmatpush1.msra.mxu0 0.0
  %2055 = vmatprep.subr.mxu0 0.0
  %2056 = vmatpush1.msra.mxu0 0.0
  %2057 = vmatprep.subr.mxu0 0.0
  %2058 = vmatpush1.msra.mxu0 0.0
  %2059 = vmatprep.subr.mxu0 0.0
  %2060 = vmatpush1.msra.mxu0 0.0
  %2061 = vmatprep.subr.mxu0 0.0
  %2062 = vmatpush1.msra.mxu0 0.0
  %2063 = vmatprep.subr.mxu0 0.0
  %2064 = vmatpush1.msra.mxu0 0.0
  %2065 = vmatprep.subr.mxu0 0.0
  %2066 = vmatpush1.msra.mxu0 0.0
  %2067 = vmatprep.subr.mxu0 0.0
  %2068 = vmatpush1.msra.mxu0 0.0
  %2069 = vmatprep.subr.mxu0 0.0
  %2070 = vmatpush1.msra.mxu0 0.0
  %2071 = vmatprep.subr.mxu0 0.0
  %2072 = vmatpush1.msra.mxu0 0.0
  %2073 = vmatprep.subr.mxu0 0.0
  %2074 = vmatpush1.msra.mxu0 0.0
  %2075 = vmatprep.subr.mxu0 0.0
  %2076 = vmatpush1.msra.mxu0 0.0
  %2077 = vmatprep.subr.mxu0 0.0
  %2078 = vmatpush1.msra.mxu0 0.0
  %2079 = vmatprep.subr.mxu0 0.0
  %2080 = vmatpush1.msra.mxu0 0.0
  %2081 = vmatprep.subr.mxu0 0.0
  %2082 = vmatpush1.msra.mxu0 0.0
  %2083 = vmatprep.subr.mxu0 0.0
  %2084 = vmatpush1.msra.mxu0 0.0
  %2085 = vmatprep.subr.mxu0 0.0
  %2086 = vmatpush1.msra.mxu0 0.0
  %2087 = vmatprep.subr.mxu0 0.0
  %2088 = vmatpush1.msra.mxu0 0.0
  %2089 = vmatprep.subr.mxu0 0.0
  %2090 = vmatpush1.msra.mxu0 0.0
  %2091 = vmatprep.subr.mxu0 0.0
  %2092 = vmatpush1.msra.mxu0 0.0
  %2093 = vmatprep.subr.mxu0 0.0
  %2094 = vmatpush1.msra.mxu0 0.0
  %2095 = vmatprep.subr.mxu0 0.0
  %2096 = vmatpush1.msra.mxu0 0.0
  %2097 = vmatprep.subr.mxu0 0.0
  %2098 = vmatpush1.msra.mxu0 0.0
  %2099 = vmatprep.subr.mxu0 0.0
  %2100 = vmatpush1.msra.mxu0 0.0
  %2101 = vmatprep.mubr.f32.mxu0 0.0
  %2102 = vmatmul.mubr.f32.gmra.mrb[0].mxu0 %v1863
  %v2103 = vpop.f32.mrb[0].mxu0
  %v2104 = vadd.f32 0.0, %v2103
  %v2105 = vpop.f32.mrb[0].mxu0
  %2106 = vdwg.mxu0
  %v2107 = vadd.f32 %v107, %v2104
  %v2108 = vmul.f32 %v2107, %v114
  %v2109 = vxor.u32 %v2108, 2147483648
  %v2110 = vmul.f32 %v2109, 1.442695
  %v2111 = vpow.pop %v2110
  %v2112 = vadd.f32 %v2111, 1.0
  %v2113 = vrcp.pop %v2112
  %v2114 = vmul.f32 1.0, %v2113
  %v2115 = vmul.f32 %v2114, %v114
  %v2116 = vadd.f32 %v2115, %v115
  %v2117 = vmul.f32 %v2116, %v1853
  %2119 = vrot.lane.b32.xlu0 %v2116, 32
  %v2120 = vpop.permute.xlu0 %2119
  %v2122 = vmul.f32 %v2116, %v2120
  %2124 = vrot.lane.b32.xlu0 %v2122, 32
  %v2125 = vpop.permute.xlu0 %2124
  %v2127 = vadd.f32 %v2117, %v2125
  %v2128 = vtanh.pop %v2127
  %2130 = vrot.lane.b32.xlu0 %v2128, 32
  %v2131 = vpop.permute.xlu0 %2130
  %v2133 = vmul.f32 %v2116, %v2131
  %2135 = vrot.lane.b32.xlu0 %v2133, 64
  %v2136 = vpop.permute.xlu0 %2135
  %v2137 = vsel %vm116, %v2136, 0
  %2139 = vmatprep.subr.mxu0 0.0
  %2140 = vmatpush1.msra.mxu0 %v21
  %2141 = vmatprep.subr.mxu0 0.0
  %2142 = vmatpush1.msra.mxu0 %v22
  %2143 = vmatprep.subr.mxu0 0.0
  %2144 = vmatpush1.msra.mxu0 %v23
  %2145 = vmatprep.subr.mxu0 0.0
  %2146 = vmatpush1.msra.mxu0 %v24
  %2147 = vmatprep.subr.mxu0 0.0
  %2148 = vmatpush1.msra.mxu0 0.0
  %2149 = vmatprep.subr.mxu0 0.0
  %2150 = vmatpush1.msra.mxu0 0.0
  %2151 = vmatprep.subr.mxu0 0.0
  %2152 = vmatpush1.msra.mxu0 0.0
  %2153 = vmatprep.subr.mxu0 0.0
  %2154 = vmatpush1.msra.mxu0 0.0
  %2155 = vmatprep.subr.mxu0 0.0
  %2156 = vmatpush1.msra.mxu0 0.0
  %2157 = vmatprep.subr.mxu0 0.0
  %2158 = vmatpush1.msra.mxu0 0.0
  %2159 = vmatprep.subr.mxu0 0.0
  %2160 = vmatpush1.msra.mxu0 0.0
  %2161 = vmatprep.subr.mxu0 0.0
  %2162 = vmatpush1.msra.mxu0 0.0
  %2163 = vmatprep.subr.mxu0 0.0
  %2164 = vmatpush1.msra.mxu0 0.0
  %2165 = vmatprep.subr.mxu0 0.0
  %2166 = vmatpush1.msra.mxu0 0.0
  %2167 = vmatprep.subr.mxu0 0.0
  %2168 = vmatpush1.msra.mxu0 0.0
  %2169 = vmatprep.subr.mxu0 0.0
  %2170 = vmatpush1.msra.mxu0 0.0
  %2171 = vmatprep.subr.mxu0 0.0
  %2172 = vmatpush1.msra.mxu0 0.0
  %2173 = vmatprep.subr.mxu0 0.0
  %2174 = vmatpush1.msra.mxu0 0.0
  %2175 = vmatprep.subr.mxu0 0.0
  %2176 = vmatpush1.msra.mxu0 0.0
  %2177 = vmatprep.subr.mxu0 0.0
  %2178 = vmatpush1.msra.mxu0 0.0
  %2179 = vmatprep.subr.mxu0 0.0
  %2180 = vmatpush1.msra.mxu0 0.0
  %2181 = vmatprep.subr.mxu0 0.0
  %2182 = vmatpush1.msra.mxu0 0.0
  %2183 = vmatprep.subr.mxu0 0.0
  %2184 = vmatpush1.msra.mxu0 0.0
  %2185 = vmatprep.subr.mxu0 0.0
  %2186 = vmatpush1.msra.mxu0 0.0
  %2187 = vmatprep.subr.mxu0 0.0
  %2188 = vmatpush1.msra.mxu0 0.0
  %2189 = vmatprep.subr.mxu0 0.0
  %2190 = vmatpush1.msra.mxu0 0.0
  %2191 = vmatprep.subr.mxu0 0.0
  %2192 = vmatpush1.msra.mxu0 0.0
  %2193 = vmatprep.subr.mxu0 0.0
  %2194 = vmatpush1.msra.mxu0 0.0
  %2195 = vmatprep.subr.mxu0 0.0
  %2196 = vmatpush1.msra.mxu0 0.0
  %2197 = vmatprep.subr.mxu0 0.0
  %2198 = vmatpush1.msra.mxu0 0.0
  %2199 = vmatprep.subr.mxu0 0.0
  %2200 = vmatpush1.msra.mxu0 0.0
  %2201 = vmatprep.subr.mxu0 0.0
  %2202 = vmatpush1.msra.mxu0 0.0
  %2203 = vmatprep.mubr.f32.mxu0 0.0
  %2204 = vmatmul.mubr.f32.gmra.mrb[0].mxu0 %v2137
  %v2205 = vpop.f32.mrb[0].mxu0
  %v2206 = vadd.f32 0.0, %v2205
  %v2207 = vpop.f32.mrb[0].mxu0
  %2208 = vdwg.mxu0
  %2210 = vrot.lane.b32.xlu0 %v2036, 64
  %v2211 = vpop.permute.xlu0 %2210
  %v2212 = vsel %vm116, %v2211, 0
  %2214 = vmatprep.subr.mxu0 0.0
  %2215 = vmatpush1.msra.mxu0 %v25
  %2216 = vmatprep.subr.mxu0 0.0
  %2217 = vmatpush1.msra.mxu0 %v26
  %2218 = vmatprep.subr.mxu0 0.0
  %2219 = vmatpush1.msra.mxu0 %v27
  %2220 = vmatprep.subr.mxu0 0.0
  %2221 = vmatpush1.msra.mxu0 %v28
  %2222 = vmatprep.subr.mxu0 0.0
  %2223 = vmatpush1.msra.mxu0 0.0
  %2224 = vmatprep.subr.mxu0 0.0
  %2225 = vmatpush1.msra.mxu0 0.0
  %2226 = vmatprep.subr.mxu0 0.0
  %2227 = vmatpush1.msra.mxu0 0.0
  %2228 = vmatprep.subr.mxu0 0.0
  %2229 = vmatpush1.msra.mxu0 0.0
  %2230 = vmatprep.subr.mxu0 0.0
  %2231 = vmatpush1.msra.mxu0 0.0
  %2232 = vmatprep.subr.mxu0 0.0
  %2233 = vmatpush1.msra.mxu0 0.0
  %2234 = vmatprep.subr.mxu0 0.0
  %2235 = vmatpush1.msra.mxu0 0.0
  %2236 = vmatprep.subr.mxu0 0.0
  %2237 = vmatpush1.msra.mxu0 0.0
  %2238 = vmatprep.subr.mxu0 0.0
  %2239 = vmatpush1.msra.mxu0 0.0
  %2240 = vmatprep.subr.mxu0 0.0
  %2241 = vmatpush1.msra.mxu0 0.0
  %2242 = vmatprep.subr.mxu0 0.0
  %2243 = vmatpush1.msra.mxu0 0.0
  %2244 = vmatprep.subr.mxu0 0.0
  %2245 = vmatpush1.msra.mxu0 0.0
  %2246 = vmatprep.subr.mxu0 0.0
  %2247 = vmatpush1.msra.mxu0 0.0
  %2248 = vmatprep.subr.mxu0 0.0
  %2249 = vmatpush1.msra.mxu0 0.0
  %2250 = vmatprep.subr.mxu0 0.0
  %2251 = vmatpush1.msra.mxu0 0.0
  %2252 = vmatprep.subr.mxu0 0.0
  %2253 = vmatpush1.msra.mxu0 0.0
  %2254 = vmatprep.subr.mxu0 0.0
  %2255 = vmatpush1.msra.mxu0 0.0
  %2256 = vmatprep.subr.mxu0 0.0
  %2257 = vmatpush1.msra.mxu0 0.0
  %2258 = vmatprep.subr.mxu0 0.0
  %2259 = vmatpush1.msra.mxu0 0.0
  %2260 = vmatprep.subr.mxu0 0.0
  %2261 = vmatpush1.msra.mxu0 0.0
  %2262 = vmatprep.subr.mxu0 0.0
  %2263 = vmatpush1.msra.mxu0 0.0
  %2264 = vmatprep.subr.mxu0 0.0
  %2265 = vmatpush1.msra.mxu0 0.0
  %2266 = vmatprep.subr.mxu0 0.0
  %2267 = vmatpush1.msra.mxu0 0.0
  %2268 = vmatprep.subr.mxu0 0.0
  %2269 = vmatpush1.msra.mxu0 0.0
  %2270 = vmatprep.subr.mxu0 0.0
  %2271 = vmatpush1.msra.mxu0 0.0
  %2272 = vmatprep.subr.mxu0 0.0
  %2273 = vmatpush1.msra.mxu0 0.0
  %2274 = vmatprep.subr.mxu0 0.0
  %2275 = vmatpush1.msra.mxu0 0.0
  %2276 = vmatprep.subr.mxu0 0.0
  %2277 = vmatpush1.msra.mxu0 0.0
  %2278 = vmatprep.mubr.f32.mxu0 0.0
  %2279 = vmatmul.mubr.f32.gmra.mrb[0].mxu0 %v2212
  %v2280 = vpop.f32.mrb[0].mxu0
  %v2281 = vadd.f32 %v2206, %v2280
  %v2282 = vpop.f32.mrb[0].mxu0
  %2283 = vdwg.mxu0
  %v2284 = vadd.f32 %v2281, %v365
  %v2285 = vmul.f32 %v2284, %v114
  %v2286 = vxor.u32 %v2285, 2147483648
  %v2287 = vmul.f32 %v2286, 1.442695
  %v2288 = vpow.pop %v2287
  %v2289 = vadd.f32 %v2288, 1.0
  %v2290 = vrcp.pop %v2289
  %v2291 = vmul.f32 1.0, %v2290
  %v2292 = vmul.f32 %v2291, %v114
  %v2293 = vadd.f32 %v2292, %v115
  %v2294 = vmul.f32 %v2293, %v2030
  %2296 = vrot.lane.b32.xlu0 %v2293, 32
  %v2297 = vpop.permute.xlu0 %2296
  %v2299 = vmul.f32 %v2293, %v2297
  %2301 = vrot.lane.b32.xlu0 %v2299, 32
  %v2302 = vpop.permute.xlu0 %2301
  %v2304 = vadd.f32 %v2294, %v2302
  %v2305 = vtanh.pop %v2304
  %2307 = vrot.lane.b32.xlu0 %v2305, 32
  %v2308 = vpop.permute.xlu0 %2307
  %v2310 = vmul.f32 %v2293, %v2308
  %2311 = vmatprep.subr.mxu0 0.0
  %2312 = vmatpush1.msra.mxu0 %v17
  %2313 = vmatprep.subr.mxu0 0.0
  %2314 = vmatpush1.msra.mxu0 %v18
  %2315 = vmatprep.subr.mxu0 0.0
  %2316 = vmatpush1.msra.mxu0 %v19
  %2317 = vmatprep.subr.mxu0 0.0
  %2318 = vmatpush1.msra.mxu0 %v20
  %2319 = vmatprep.subr.mxu0 0.0
  %2320 = vmatpush1.msra.mxu0 0.0
  %2321 = vmatprep.subr.mxu0 0.0
  %2322 = vmatpush1.msra.mxu0 0.0
  %2323 = vmatprep.subr.mxu0 0.0
  %2324 = vmatpush1.msra.mxu0 0.0
  %2325 = vmatprep.subr.mxu0 0.0
  %2326 = vmatpush1.msra.mxu0 0.0
  %2327 = vmatprep.subr.mxu0 0.0
  %2328 = vmatpush1.msra.mxu0 0.0
  %2329 = vmatprep.subr.mxu0 0.0
  %2330 = vmatpush1.msra.mxu0 0.0
  %2331 = vmatprep.subr.mxu0 0.0
  %2332 = vmatpush1.msra.mxu0 0.0
  %2333 = vmatprep.subr.mxu0 0.0
  %2334 = vmatpush1.msra.mxu0 0.0
  %2335 = vmatprep.subr.mxu0 0.0
  %2336 = vmatpush1.msra.mxu0 0.0
  %2337 = vmatprep.subr.mxu0 0.0
  %2338 = vmatpush1.msra.mxu0 0.0
  %2339 = vmatprep.subr.mxu0 0.0
  %2340 = vmatpush1.msra.mxu0 0.0
  %2341 = vmatprep.subr.mxu0 0.0
  %2342 = vmatpush1.msra.mxu0 0.0
  %2343 = vmatprep.subr.mxu0 0.0
  %2344 = vmatpush1.msra.mxu0 0.0
  %2345 = vmatprep.subr.mxu0 0.0
  %2346 = vmatpush1.msra.mxu0 0.0
  %2347 = vmatprep.subr.mxu0 0.0
  %2348 = vmatpush1.msra.mxu0 0.0
  %2349 = vmatprep.subr.mxu0 0.0
  %2350 = vmatpush1.msra.mxu0 0.0
  %2351 = vmatprep.subr.mxu0 0.0
  %2352 = vmatpush1.msra.mxu0 0.0
  %2353 = vmatprep.subr.mxu0 0.0
  %2354 = vmatpush1.msra.mxu0 0.0
  %2355 = vmatprep.subr.mxu0 0.0
  %2356 = vmatpush1.msra.mxu0 0.0
  %2357 = vmatprep.subr.mxu0 0.0
  %2358 = vmatpush1.msra.mxu0 0.0
  %2359 = vmatprep.subr.mxu0 0.0
  %2360 = vmatpush1.msra.mxu0 0.0
  %2361 = vmatprep.subr.mxu0 0.0
  %2362 = vmatpush1.msra.mxu0 0.0
  %2363 = vmatprep.subr.mxu0 0.0
  %2364 = vmatpush1.msra.mxu0 0.0
  %2365 = vmatprep.subr.mxu0 0.0
  %2366 = vmatpush1.msra.mxu0 0.0
  %2367 = vmatprep.subr.mxu0 0.0
  %2368 = vmatpush1.msra.mxu0 0.0
  %2369 = vmatprep.subr.mxu0 0.0
  %2370 = vmatpush1.msra.mxu0 0.0
  %2371 = vmatprep.subr.mxu0 0.0
  %2372 = vmatpush1.msra.mxu0 0.0
  %2373 = vmatprep.subr.mxu0 0.0
  %2374 = vmatpush1.msra.mxu0 0.0
  %2375 = vmatprep.mubr.f32.mxu0 0.0
  %2376 = vmatmul.mubr.f32.gmra.mrb[0].mxu0 %v2137
  %v2377 = vpop.f32.mrb[0].mxu0
  %v2378 = vadd.f32 0.0, %v2377
  %v2379 = vpop.f32.mrb[0].mxu0
  %2380 = vdwg.mxu0
  %v2381 = vadd.f32 %v108, %v2378
  %v2382 = vmul.f32 %v2381, %v114
  %v2383 = vxor.u32 %v2382, 2147483648
  %v2384 = vmul.f32 %v2383, 1.442695
  %v2385 = vpow.pop %v2384
  %v2386 = vadd.f32 %v2385, 1.0
  %v2387 = vrcp.pop %v2386
  %v2388 = vmul.f32 1.0, %v2387
  %v2389 = vmul.f32 %v2388, %v114
  %v2390 = vadd.f32 %v2389, %v115
  %v2391 = vmul.f32 %v2390, %v2127
  %2393 = vrot.lane.b32.xlu0 %v2390, 32
  %v2394 = vpop.permute.xlu0 %2393
  %v2396 = vmul.f32 %v2390, %v2394
  %2398 = vrot.lane.b32.xlu0 %v2396, 32
  %v2399 = vpop.permute.xlu0 %2398
  %v2401 = vadd.f32 %v2391, %v2399
  %v2402 = vtanh.pop %v2401
  %2404 = vrot.lane.b32.xlu0 %v2402, 32
  %v2405 = vpop.permute.xlu0 %2404
  %v2407 = vmul.f32 %v2390, %v2405
  %2409 = vrot.lane.b32.xlu0 %v2407, 64
  %v2410 = vpop.permute.xlu0 %2409
  %v2411 = vsel %vm116, %v2410, 0
  %2413 = vmatprep.subr.mxu0 0.0
  %2414 = vmatpush1.msra.mxu0 %v21
  %2415 = vmatprep.subr.mxu0 0.0
  %2416 = vmatpush1.msra.mxu0 %v22
  %2417 = vmatprep.subr.mxu0 0.0
  %2418 = vmatpush1.msra.mxu0 %v23
  %2419 = vmatprep.subr.mxu0 0.0
  %2420 = vmatpush1.msra.mxu0 %v24
  %2421 = vmatprep.subr.mxu0 0.0
  %2422 = vmatpush1.msra.mxu0 0.0
  %2423 = vmatprep.subr.mxu0 0.0
  %2424 = vmatpush1.msra.mxu0 0.0
  %2425 = vmatprep.subr.mxu0 0.0
  %2426 = vmatpush1.msra.mxu0 0.0
  %2427 = vmatprep.subr.mxu0 0.0
  %2428 = vmatpush1.msra.mxu0 0.0
  %2429 = vmatprep.subr.mxu0 0.0
  %2430 = vmatpush1.msra.mxu0 0.0
  %2431 = vmatprep.subr.mxu0 0.0
  %2432 = vmatpush1.msra.mxu0 0.0
  %2433 = vmatprep.subr.mxu0 0.0
  %2434 = vmatpush1.msra.mxu0 0.0
  %2435 = vmatprep.subr.mxu0 0.0
  %2436 = vmatpush1.msra.mxu0 0.0
  %2437 = vmatprep.subr.mxu0 0.0
  %2438 = vmatpush1.msra.mxu0 0.0
  %2439 = vmatprep.subr.mxu0 0.0
  %2440 = vmatpush1.msra.mxu0 0.0
  %2441 = vmatprep.subr.mxu0 0.0
  %2442 = vmatpush1.msra.mxu0 0.0
  %2443 = vmatprep.subr.mxu0 0.0
  %2444 = vmatpush1.msra.mxu0 0.0
  %2445 = vmatprep.subr.mxu0 0.0
  %2446 = vmatpush1.msra.mxu0 0.0
  %2447 = vmatprep.subr.mxu0 0.0
  %2448 = vmatpush1.msra.mxu0 0.0
  %2449 = vmatprep.subr.mxu0 0.0
  %2450 = vmatpush1.msra.mxu0 0.0
  %2451 = vmatprep.subr.mxu0 0.0
  %2452 = vmatpush1.msra.mxu0 0.0
  %2453 = vmatprep.subr.mxu0 0.0
  %2454 = vmatpush1.msra.mxu0 0.0
  %2455 = vmatprep.subr.mxu0 0.0
  %2456 = vmatpush1.msra.mxu0 0.0
  %2457 = vmatprep.subr.mxu0 0.0
  %2458 = vmatpush1.msra.mxu0 0.0
  %2459 = vmatprep.subr.mxu0 0.0
  %2460 = vmatpush1.msra.mxu0 0.0
  %2461 = vmatprep.subr.mxu0 0.0
  %2462 = vmatpush1.msra.mxu0 0.0
  %2463 = vmatprep.subr.mxu0 0.0
  %2464 = vmatpush1.msra.mxu0 0.0
  %2465 = vmatprep.subr.mxu0 0.0
  %2466 = vmatpush1.msra.mxu0 0.0
  %2467 = vmatprep.subr.mxu0 0.0
  %2468 = vmatpush1.msra.mxu0 0.0
  %2469 = vmatprep.subr.mxu0 0.0
  %2470 = vmatpush1.msra.mxu0 0.0
  %2471 = vmatprep.subr.mxu0 0.0
  %2472 = vmatpush1.msra.mxu0 0.0
  %2473 = vmatprep.subr.mxu0 0.0
  %2474 = vmatpush1.msra.mxu0 0.0
  %2475 = vmatprep.subr.mxu0 0.0
  %2476 = vmatpush1.msra.mxu0 0.0
  %2477 = vmatprep.mubr.f32.mxu0 0.0
  %2478 = vmatmul.mubr.f32.gmra.mrb[0].mxu0 %v2411
  %v2479 = vpop.f32.mrb[0].mxu0
  %v2480 = vadd.f32 0.0, %v2479
  %v2481 = vpop.f32.mrb[0].mxu0
  %2482 = vdwg.mxu0
  %2484 = vrot.lane.b32.xlu0 %v2310, 64
  %v2485 = vpop.permute.xlu0 %2484
  %v2486 = vsel %vm116, %v2485, 0
  %2488 = vmatprep.subr.mxu0 0.0
  %2489 = vmatpush1.msra.mxu0 %v25
  %2490 = vmatprep.subr.mxu0 0.0
  %2491 = vmatpush1.msra.mxu0 %v26
  %2492 = vmatprep.subr.mxu0 0.0
  %2493 = vmatpush1.msra.mxu0 %v27
  %2494 = vmatprep.subr.mxu0 0.0
  %2495 = vmatpush1.msra.mxu0 %v28
  %2496 = vmatprep.subr.mxu0 0.0
  %2497 = vmatpush1.msra.mxu0 0.0
  %2498 = vmatprep.subr.mxu0 0.0
  %2499 = vmatpush1.msra.mxu0 0.0
  %2500 = vmatprep.subr.mxu0 0.0
  %2501 = vmatpush1.msra.mxu0 0.0
  %2502 = vmatprep.subr.mxu0 0.0
  %2503 = vmatpush1.msra.mxu0 0.0
  %2504 = vmatprep.subr.mxu0 0.0
  %2505 = vmatpush1.msra.mxu0 0.0
  %2506 = vmatprep.subr.mxu0 0.0
  %2507 = vmatpush1.msra.mxu0 0.0
  %2508 = vmatprep.subr.mxu0 0.0
  %2509 = vmatpush1.msra.mxu0 0.0
  %2510 = vmatprep.subr.mxu0 0.0
  %2511 = vmatpush1.msra.mxu0 0.0
  %2512 = vmatprep.subr.mxu0 0.0
  %2513 = vmatpush1.msra.mxu0 0.0
  %2514 = vmatprep.subr.mxu0 0.0
  %2515 = vmatpush1.msra.mxu0 0.0
  %2516 = vmatprep.subr.mxu0 0.0
  %2517 = vmatpush1.msra.mxu0 0.0
  %2518 = vmatprep.subr.mxu0 0.0
  %2519 = vmatpush1.msra.mxu0 0.0
  %2520 = vmatprep.subr.mxu0 0.0
  %2521 = vmatpush1.msra.mxu0 0.0
  %2522 = vmatprep.subr.mxu0 0.0
  %2523 = vmatpush1.msra.mxu0 0.0
  %2524 = vmatprep.subr.mxu0 0.0
  %2525 = vmatpush1.msra.mxu0 0.0
  %2526 = vmatprep.subr.mxu0 0.0
  %2527 = vmatpush1.msra.mxu0 0.0
  %2528 = vmatprep.subr.mxu0 0.0
  %2529 = vmatpush1.msra.mxu0 0.0
  %2530 = vmatprep.subr.mxu0 0.0
  %2531 = vmatpush1.msra.mxu0 0.0
  %2532 = vmatprep.subr.mxu0 0.0
  %2533 = vmatpush1.msra.mxu0 0.0
  %2534 = vmatprep.subr.mxu0 0.0
  %2535 = vmatpush1.msra.mxu0 0.0
  %2536 = vmatprep.subr.mxu0 0.0
  %2537 = vmatpush1.msra.mxu0 0.0
  %2538 = vmatprep.subr.mxu0 0.0
  %2539 = vmatpush1.msra.mxu0 0.0
  %2540 = vmatprep.subr.mxu0 0.0
  %2541 = vmatpush1.msra.mxu0 0.0
  %2542 = vmatprep.subr.mxu0 0.0
  %2543 = vmatpush1.msra.mxu0 0.0
  %2544 = vmatprep.subr.mxu0 0.0
  %2545 = vmatpush1.msra.mxu0 0.0
  %2546 = vmatprep.subr.mxu0 0.0
  %2547 = vmatpush1.msra.mxu0 0.0
  %2548 = vmatprep.subr.mxu0 0.0
  %2549 = vmatpush1.msra.mxu0 0.0
  %2550 = vmatprep.subr.mxu0 0.0
  %2551 = vmatpush1.msra.mxu0 0.0
  %2552 = vmatprep.mubr.f32.mxu0 0.0
  %2553 = vmatmul.mubr.f32.gmra.mrb[0].mxu0 %v2486
  %v2554 = vpop.f32.mrb[0].mxu0
  %v2555 = vadd.f32 %v2480, %v2554
  %v2556 = vpop.f32.mrb[0].mxu0
  %2557 = vdwg.mxu0
  %v2558 = vadd.f32 %v2555, %v365
  %v2559 = vmul.f32 %v2558, %v114
  %v2560 = vxor.u32 %v2559, 2147483648
  %v2561 = vmul.f32 %v2560, 1.442695
  %v2562 = vpow.pop %v2561
  %v2563 = vadd.f32 %v2562, 1.0
  %v2564 = vrcp.pop %v2563
  %v2565 = vmul.f32 1.0, %v2564
  %v2566 = vmul.f32 %v2565, %v114
  %v2567 = vadd.f32 %v2566, %v115
  %v2568 = vmul.f32 %v2567, %v2304
  %2570 = vrot.lane.b32.xlu0 %v2567, 32
  %v2571 = vpop.permute.xlu0 %2570
  %v2573 = vmul.f32 %v2567, %v2571
  %2575 = vrot.lane.b32.xlu0 %v2573, 32
  %v2576 = vpop.permute.xlu0 %2575
  %v2578 = vadd.f32 %v2568, %v2576
  %v2579 = vtanh.pop %v2578
  %2581 = vrot.lane.b32.xlu0 %v2579, 32
  %v2582 = vpop.permute.xlu0 %2581
  %v2584 = vmul.f32 %v2567, %v2582
  %v2585 = vld [vmem:[%s2] sm:$0xff]
  %v2586 = vld [vmem:[%s2 + $0x8] sm:$0xff]
  %v2587 = vld [vmem:[%s2 + $0x10] sm:$0xff]
  %v2588 = vld [vmem:[%s2 + $0x18] sm:$0xff]
  %v2589 = vld [vmem:[%s2 + $0x20] sm:$0x1]
  %v2590 = vld [vmem:[%s2 + $0x21] sm:$0x1]
  %v2591 = vld [vmem:[%s2 + $0x22] sm:$0x1]
  %v2592 = vlaneseq
  %v2593 = vshrl.u32 %v2592, 7
  %v2594 = vsub.s32 0, %v2593
  %v2595 = vrot.slane %v2589, %v2594
  %2597 = vrot.lane.b32.xlu0 %v2584, 64
  %v2598 = vpop.permute.xlu0 %2597
  %v2599 = vsel %vm116, %v2598, 0
  %2601 = vmatprep.subr.mxu0 0.0
  %2602 = vmatpush1.msra.mxu0 %v2585
  %2603 = vmatprep.subr.mxu0 0.0
  %2604 = vmatpush1.msra.mxu0 %v2586
  %2605 = vmatprep.subr.mxu0 0.0
  %2606 = vmatpush1.msra.mxu0 %v2587
  %2607 = vmatprep.subr.mxu0 0.0
  %2608 = vmatpush1.msra.mxu0 %v2588
  %2609 = vmatprep.subr.mxu0 0.0
  %2610 = vmatpush1.msra.mxu0 0.0
  %2611 = vmatprep.subr.mxu0 0.0
  %2612 = vmatpush1.msra.mxu0 0.0
  %2613 = vmatprep.subr.mxu0 0.0
  %2614 = vmatpush1.msra.mxu0 0.0
  %2615 = vmatprep.subr.mxu0 0.0
  %2616 = vmatpush1.msra.mxu0 0.0
  %2617 = vmatprep.subr.mxu0 0.0
  %2618 = vmatpush1.msra.mxu0 0.0
  %2619 = vmatprep.subr.mxu0 0.0
  %2620 = vmatpush1.msra.mxu0 0.0
  %2621 = vmatprep.subr.mxu0 0.0
  %2622 = vmatpush1.msra.mxu0 0.0
  %2623 = vmatprep.subr.mxu0 0.0
  %2624 = vmatpush1.msra.mxu0 0.0
  %2625 = vmatprep.subr.mxu0 0.0
  %2626 = vmatpush1.msra.mxu0 0.0
  %2627 = vmatprep.subr.mxu0 0.0
  %2628 = vmatpush1.msra.mxu0 0.0
  %2629 = vmatprep.subr.mxu0 0.0
  %2630 = vmatpush1.msra.mxu0 0.0
  %2631 = vmatprep.subr.mxu0 0.0
  %2632 = vmatpush1.msra.mxu0 0.0
  %2633 = vmatprep.subr.mxu0 0.0
  %2634 = vmatpush1.msra.mxu0 0.0
  %2635 = vmatprep.subr.mxu0 0.0
  %2636 = vmatpush1.msra.mxu0 0.0
  %2637 = vmatprep.subr.mxu0 0.0
  %2638 = vmatpush1.msra.mxu0 0.0
  %2639 = vmatprep.subr.mxu0 0.0
  %2640 = vmatpush1.msra.mxu0 0.0
  %2641 = vmatprep.subr.mxu0 0.0
  %2642 = vmatpush1.msra.mxu0 0.0
  %2643 = vmatprep.subr.mxu0 0.0
  %2644 = vmatpush1.msra.mxu0 0.0
  %2645 = vmatprep.subr.mxu0 0.0
  %2646 = vmatpush1.msra.mxu0 0.0
  %2647 = vmatprep.subr.mxu0 0.0
  %2648 = vmatpush1.msra.mxu0 0.0
  %2649 = vmatprep.subr.mxu0 0.0
  %2650 = vmatpush1.msra.mxu0 0.0
  %2651 = vmatprep.subr.mxu0 0.0
  %2652 = vmatpush1.msra.mxu0 0.0
  %2653 = vmatprep.subr.mxu0 0.0
  %2654 = vmatpush1.msra.mxu0 0.0
  %2655 = vmatprep.subr.mxu0 0.0
  %2656 = vmatpush1.msra.mxu0 0.0
  %2657 = vmatprep.subr.mxu0 0.0
  %2658 = vmatpush1.msra.mxu0 0.0
  %2659 = vmatprep.subr.mxu0 0.0
  %2660 = vmatpush1.msra.mxu0 0.0
  %2661 = vmatprep.subr.mxu0 0.0
  %2662 = vmatpush1.msra.mxu0 0.0
  %2663 = vmatprep.subr.mxu0 0.0
  %2664 = vmatpush1.msra.mxu0 0.0
  %2665 = vmatprep.mubr.f32.mxu0 0.0
  %2666 = vmatmul.mubr.f32.gmra.mrb[0].mxu0 %v2599
  %v2667 = vpop.f32.mrb[0].mxu0
  %v2668 = vadd.f32 %v2595, %v2667
  %v2669 = vpop.f32.mrb[0].mxu0
  %2670 = vdwg.mxu0
  %v2671 = vlaneseq
  %v2672 = vshrl.u32 %v2671, 7
  %v2673 = vsub.s32 0, %v2672
  %v2674 = vrot.slane %v2590, %v2673
  %v2675 = vmul.f32 %v2668, %v2674
  %vm2676 = vcmask 130048
  %v2677 = vsel %vm2676, %v2675, 0.0
  %2678 = vadd.xlane.f32.xlu0 %v2677
  %v2679 = vpop.xlane.xlu0 %2678
  %v2680 = vlaneseq
  %v2681 = vshrl.u32 %v2680, 7
  %v2682 = vsub.s32 0, %v2681
  %v2683 = vrot.slane %v2591, %v2682
  %v2684 = vadd.f32 %v2679, %v2683
  %vm2685 = vcmask 7168
  %2686 = vst.msk [vmem:[%s3] sm:$0xff] %vm2685, %v2684
  // Predicated region
  $region14: #{tpu_custom_call.1} parent=0 // pred_check
    _
  $region15: #{tpu_custom_call.1} parent=0 // pred_check_branch
    %2688 = sbr.rel (0) target = $region17
  $region16: #{tpu_custom_call.1} parent=0 // pred_region
    _
  $region17: #{tpu_custom_call.1} parent=0 // pred_fallthru
    _
  // Predicated region
  $region18: #{tpu_custom_call.1} parent=0 // pred_check
    _
  $region19: #{tpu_custom_call.1} parent=0 // pred_check_branch
    %2690 = sbr.rel (0) target = $region21
  $region20: #{tpu_custom_call.1} parent=0 // pred_region
    _
  $region21: #{tpu_custom_call.1} parent=0 // pred_fallthru
    _

</llo_original>
